<compile_context>
chip_gen: v7x
topology: tpu7x:2x2x1
jax: 0.10.0
libtpu: 0.0.40
codegen_flags: <defaults>
</compile_context>

<pallas_src>
import functools

import jax
import jax.numpy as jnp
from jax.experimental import pallas as pl
from jax.experimental.pallas import tpu as pltpu


_VMEM = pl.BlockSpec(memory_space=pltpu.MemorySpace.VMEM)
_SLOPE = 0.2   # LeakyReLU negative slope
_EPS = 0.8     # torch: nn.BatchNorm2d(C, 0.8) -> eps = 0.8


# ----------------------------------------------------------------------------
# Pallas kernels
# ----------------------------------------------------------------------------

def conv_leaky_kernel(p_ref, w_ref, b_ref, o_ref):
  """Conv as ONE MXU matmul over the folded 9*Cin contraction + bias + LeakyReLU.

  p_ref: (tm, 9*Cin) bf16   w_ref: (9*Cin, Cout) bf16
  b_ref: (1, Cout)   f32    o_ref: (tm, Cout)    bf16
  """
  acc = jnp.dot(p_ref[...], w_ref[...], preferred_element_type=jnp.float32)
  acc = acc + b_ref[...]
  o_ref[...] = jnp.where(acc >= 0, acc, _SLOPE * acc).astype(o_ref.dtype)


def conv_leaky_bn_kernel(p_ref, w_ref, b_ref, g_ref, be_ref, o_ref):
  """Conv + bias + LeakyReLU + training-mode BatchNorm (one-pass sum/sumsq stats).

  p_ref: (M, 9*Cin) bf16    w_ref: (9*Cin, Cout) bf16
  b/g/be_ref: (1, Cout) f32 o_ref: (M, Cout) bf16
  """
  acc = jnp.dot(p_ref[...], w_ref[...], preferred_element_type=jnp.float32)
  acc = acc + b_ref[...]
  y = jnp.where(acc >= 0, acc, _SLOPE * acc)
  # One-pass batch stats (biased variance), eps = 0.8, affine gamma/beta.
  inv_m = 1.0 / y.shape[0]
  mean = jnp.sum(y, axis=0, keepdims=True) * inv_m
  var = jnp.sum(y * y, axis=0, keepdims=True) * inv_m - mean * mean
  y = (y - mean) * jax.lax.rsqrt(var + _EPS) * g_ref[...] + be_ref[...]
  o_ref[...] = y.astype(o_ref.dtype)


def conv_bn_linear_kernel(p_ref, w_ref, b_ref, g_ref, be_ref, wl_ref, bl_ref,
                          o_ref, *, n):
  """Last conv block fused with the NCHW flatten + Linear(512 -> 300, padded 384).

  p_ref:  (4*n, 576) bf16, rows ordered (spatial s, batch n)
  w_ref:  (576, 128) bf16   b/g/be_ref: (1, 128) f32
  wl_ref: (4, 128, 384) bf16 (Linear weight, re-laid-out + zero-padded)
  bl_ref: (1, 384) f32      o_ref: (n, 384) f32
  """
  acc = jnp.dot(p_ref[...], w_ref[...], preferred_element_type=jnp.float32)
  acc = acc + b_ref[...]
  y = jnp.where(acc >= 0, acc, _SLOPE * acc)
  inv_m = 1.0 / y.shape[0]
  mean = jnp.sum(y, axis=0, keepdims=True) * inv_m
  var = jnp.sum(y * y, axis=0, keepdims=True) * inv_m - mean * mean
  y = (y - mean) * jax.lax.rsqrt(var + _EPS) * g_ref[...] + be_ref[...]

  # Linear over the flattened (c, s) features, done as 4 accumulated K=128 matmuls
  # (one per spatial position s), directly on the VMEM-resident conv output.
  yb = y.astype(jnp.bfloat16)
  out = jnp.zeros(o_ref.shape, jnp.float32)
  for s in range(4):  # static unroll
    out = out + jnp.dot(yb[s * n:(s + 1) * n, :], wl_ref[s],
                        preferred_element_type=jnp.float32)
  o_ref[...] = out + bl_ref[...]


# ----------------------------------------------------------------------------
# Wrappers (pallas_call plumbing)
# ----------------------------------------------------------------------------

def _conv0(patches, w, b):
  """First block (no BN): M-tiled grid, 'parallel' so v7x can use both TCs."""
  M, K = patches.shape
  Cout = w.shape[1]
  tm = 256 if M % 256 == 0 else M            # M = N*256, so 256 always divides
  nbytes = patches.size * 2 + w.size * 2 + b.size * 4 + M * Cout * 2
  return pl.pallas_call(
      conv_leaky_kernel,
      out_shape=jax.ShapeDtypeStruct((M, Cout), jnp.bfloat16),
      grid_spec=pltpu.PrefetchScalarGridSpec(
          num_scalar_prefetch=0,
          grid=(M // tm,),
          in_specs=[
              pl.BlockSpec((tm, K), lambda i: (i, 0)),
              pl.BlockSpec((K, Cout), lambda i: (0, 0)),
              pl.BlockSpec((1, Cout), lambda i: (0, 0)),
          ],
          out_specs=pl.BlockSpec((tm, Cout), lambda i: (i, 0))),
      compiler_params=pltpu.CompilerParams(
          dimension_semantics=("parallel",)),
      cost_estimate=pl.CostEstimate(flops=2 * M * K * Cout, transcendentals=0,
                                    bytes_accessed=int(nbytes)),
  )(patches, w, b)


def _conv_bn(patches, w, b, g, be):
  """Conv + LeakyReLU + BatchNorm block (grid-less: BN needs full-batch stats)."""
  M = patches.shape[0]
  Cout = w.shape[1]
  return pl.pallas_call(
      conv_leaky_bn_kernel,
      out_shape=jax.ShapeDtypeStruct((M, Cout), jnp.bfloat16),
      in_specs=[_VMEM] * 5,
      out_specs=_VMEM,
  )(patches, w, b, g, be)


def _conv_bn_linear(patches, w, b, g, be, wl, bl, n):
  """Fused last conv block + flatten + Linear; output is lane-padded to 384."""
  out_w = wl.shape[-1]
  return pl.pallas_call(
      functools.partial(conv_bn_linear_kernel, n=n),
      out_shape=jax.ShapeDtypeStruct((n, out_w), jnp.float32),
      in_specs=[_VMEM] * 7,
      out_specs=_VMEM,
  )(patches, w, b, g, be, wl, bl)


# ----------------------------------------------------------------------------
# im2col glue (thin XLA; produces the folded (M, 9*Cin) patch layout)
# ----------------------------------------------------------------------------

def _im2col_s2(x):
  """3x3 / stride-2 / pad-1 im2col: (N,H,W,C) -> (N*Ho*Wo, 9*C), cols (tap, cin)."""
  N, H, W, C = x.shape
  Ho, Wo = H // 2, W // 2
  xp = jnp.pad(x, ((0, 0), (1, 1), (1, 1), (0, 0)))
  cols = [xp[:, kh:kh + 2 * Ho:2, kw:kw + 2 * Wo:2, :]
          for kh in range(3) for kw in range(3)]
  return jnp.concatenate(cols, axis=-1).reshape(N * Ho * Wo, 9 * C)


def _im2col_s2_spatial_major(x):
  """Same, but rows ordered (i, j, n) so the fused Linear can slice per position."""
  N, H, W, C = x.shape
  Ho, Wo = H // 2, W // 2
  xp = jnp.pad(x, ((0, 0), (1, 1), (1, 1), (0, 0)))
  cols = [xp[:, kh:kh + 2 * Ho:2, kw:kw + 2 * Wo:2, :]
          for kh in range(3) for kw in range(3)]
  p = jnp.concatenate(cols, axis=-1)                       # (N, Ho, Wo, 9*C)
  return p.transpose(1, 2, 0, 3).reshape(Ho * Wo * N, 9 * C)


# ----------------------------------------------------------------------------
# Parameters
# ----------------------------------------------------------------------------

def init_params(key):
  """Deterministic synthetic parameters in torch layouts/shapes."""
  ks = jax.random.split(key, 20)
  p = {}
  chans = [(3, 16), (16, 32), (32, 64), (64, 128)]
  for i, (cin, cout) in enumerate(chans):
    p[f"conv{i}_w"] = 0.1 * jax.random.normal(ks[i], (cout, cin, 3, 3), jnp.float32)
    p[f"conv{i}_b"] = 0.05 * jax.random.normal(ks[4 + i], (cout,), jnp.float32)
    if i > 0:  # block 0 has no BatchNorm
      p[f"bn{i}_gamma"] = 1.0 + 0.01 * jax.random.normal(ks[8 + i], (cout,), jnp.float32)
      p[f"bn{i}_beta"] = 0.01 * jax.random.normal(ks[12 + i], (cout,), jnp.float32)
  p["lin_w"] = 0.05 * jax.random.normal(ks[16], (300, 128 * 2 * 2), jnp.float32)
  p["lin_b"] = 0.05 * jax.random.normal(ks[17], (300,), jnp.float32)
  return p


def prepare_params(p):
  """One-time conversion of torch-layout params into kernel layouts/dtypes."""
  kp = {}
  cins = (3, 16, 32, 64)
  for i, cin in enumerate(cins):
    w = p[f"conv{i}_w"]                                        # (Cout, Cin, 3, 3)
    cout = w.shape[0]
    # (Cout,Cin,kh,kw) -> (kh,kw,Cin,Cout) -> (9*Cin, Cout); bf16 MXU operand.
    kp[f"w{i}"] = (jnp.transpose(w, (2, 3, 1, 0))
                   .reshape(9 * cin, cout).astype(jnp.bfloat16))
    kp[f"b{i}"] = p[f"conv{i}_b"].reshape(1, cout).astype(jnp.float32)
    if i > 0:
      kp[f"g{i}"] = p[f"bn{i}_gamma"].reshape(1, cout).astype(jnp.float32)
      kp[f"be{i}"] = p[f"bn{i}_beta"].reshape(1, cout).astype(jnp.float32)
  # Linear: torch weight (300, 512) with input index c*4 + s (NCHW flatten).
  # Re-layout ONCE to (s, c, 300) so the kernel consumes the NHWC-ordered conv
  # output directly, and zero-pad the output dim 300 -> 384 (3*128 lanes).
  wl = p["lin_w"].reshape(300, 128, 4).transpose(2, 1, 0)      # (4, 128, 300)
  kp["wl"] = jnp.pad(wl, ((0, 0), (0, 0), (0, 84))).astype(jnp.bfloat16)
  kp["bl"] = jnp.pad(p["lin_b"], (0, 84)).reshape(1, 384).astype(jnp.float32)
  return kp


# ----------------------------------------------------------------------------
# Forward
# ----------------------------------------------------------------------------

@jax.jit
def convnet_cifar10_forward(img_flat, kp):
  """img_flat: (N, 3*32*32) -> features (N, 300)."""
  N = img_flat.shape[0]
  # Unflatten to NCHW (torch semantics), move to NHWC, cast matmul operand to bf16.
  x = img_flat.reshape(N, 3, 32, 32).transpose(0, 2, 3, 1).astype(jnp.bfloat16)

  y0 = _conv0(_im2col_s2(x), kp["w0"], kp["b0"])                   # (256N, 16)
  y1 = _conv_bn(_im2col_s2(y0.reshape(N, 16, 16, 16)),
                kp["w1"], kp["b1"], kp["g1"], kp["be1"])           # (64N, 32)
  y2 = _conv_bn(_im2col_s2(y1.reshape(N, 8, 8, 32)),
                kp["w2"], kp["b2"], kp["g2"], kp["be2"])           # (16N, 64)
  p3 = _im2col_s2_spatial_major(y2.reshape(N, 4, 4, 64))           # (4N, 576)
  feat = _conv_bn_linear(p3, kp["w3"], kp["b3"], kp["g3"], kp["be3"],
                         kp["wl"], kp["bl"], N)                    # (N, 384)
  return feat[:, :300]


if __name__ == "__main__":
  key = jax.random.PRNGKey(0)
  k_img, k_par = jax.random.split(key)

  # The module hard-codes CIFAR10 geometry: input must be (N, 3*32*32).
  batch = 2
  img = jax.random.normal(k_img, (batch, 3 * 32 * 32), jnp.float32)
  params = init_params(k_par)
  kparams = prepare_params(params)   # one-time layout/dtype prep (pre-transposes)

  feat = convnet_cifar10_forward(img, kparams)
  feat = jax.block_until_ready(feat)

  assert feat.shape == (batch, 300), feat.shape
  assert feat.dtype == jnp.float32
  assert bool(jnp.all(jnp.isfinite(feat)))
  print("KERNEL_OK")
</pallas_src>

<mosaic_0001>
module attributes {stable_mosaic.version = 11 : i64} {
  func.func @conv_leaky_kernel(%arg0: i32, %arg1: memref<256x27xbf16, #tpu.memory_space<vmem>>, %arg2: memref<27x16xbf16, #tpu.memory_space<vmem>>, %arg3: memref<1x16xf32, #tpu.memory_space<vmem>>, %arg4: memref<256x16xbf16, #tpu.memory_space<vmem>>) attributes {dimension_semantics = [#tpu.dimension_semantics<parallel>], iteration_bounds = array<i64: 2>, scalar_prefetch = 0 : i64, scratch_operands = 0 : i64, tpu.core_type = #tpu.core_type<tc>, window_params = [{transform_indices = @transform_0, window_bounds = array<i64: 256, 27>}, {pipeline_mode = #tpu.pipeline_mode<synchronous>, transform_indices = @transform_1, window_bounds = array<i64: 27, 16>}, {pipeline_mode = #tpu.pipeline_mode<synchronous>, transform_indices = @transform_2, window_bounds = array<i64: 1, 16>}, {transform_indices = @transform_3, window_bounds = array<i64: 256, 16>}]} {
    %c0 = arith.constant 0 : index
    %c0_0 = arith.constant 0 : index
    %0 = vector.load %arg1[%c0, %c0_0] : memref<256x27xbf16, #tpu.memory_space<vmem>>, vector<256x27xbf16>
    %c0_1 = arith.constant 0 : index
    %c0_2 = arith.constant 0 : index
    %1 = vector.load %arg2[%c0_1, %c0_2] : memref<27x16xbf16, #tpu.memory_space<vmem>>, vector<27x16xbf16>
    %cst = arith.constant dense<0.000000e+00> : vector<256x16xf32>
    %2 = tpu.matmul %0, %1, %cst {dimension_numbers = #tpu.dot_dimension_numbers<[1], [0], [0], [1], [0, 0, 1, 1], [], []>} : vector<256x27xbf16>, vector<27x16xbf16>, vector<256x16xf32> -> vector<256x16xf32>
    %c0_3 = arith.constant 0 : index
    %c0_4 = arith.constant 0 : index
    %3 = vector.load %arg3[%c0_3, %c0_4] : memref<1x16xf32, #tpu.memory_space<vmem>>, vector<1x16xf32>
    %4 = vector.broadcast %3 : vector<1x16xf32> to vector<256x16xf32>
    %5 = arith.addf %2, %4 : vector<256x16xf32>
    %cst_5 = arith.constant 0.000000e+00 : f32
    %6 = vector.broadcast %cst_5 : f32 to vector<256x16xf32>
    %7 = arith.cmpf oge, %5, %6 : vector<256x16xf32>
    %cst_6 = arith.constant 2.000000e-01 : f32
    %8 = vector.broadcast %cst_6 : f32 to vector<256x16xf32>
    %9 = arith.mulf %8, %5 : vector<256x16xf32>
    %10 = arith.select %7, %5, %9 : vector<256x16xi1>, vector<256x16xf32>
    %11 = arith.truncf %10 : vector<256x16xf32> to vector<256x16xbf16>
    %c0_7 = arith.constant 0 : index
    %c0_8 = arith.constant 0 : index
    %12 = vector.load %arg4[%c0_7, %c0_8] : memref<256x16xbf16, #tpu.memory_space<vmem>>, vector<256x16xbf16>
    tpu.vector_store %arg4[%c0_7, %c0_8], %11 {strides = array<i32>} : memref<256x16xbf16, #tpu.memory_space<vmem>>, vector<256x16xbf16>,
    return
  }
  func.func @transform_0(%arg0: i32) -> (i32, i32) {
    %c0_i32 = arith.constant 0 : i32
    %c0_i32_0 = arith.constant 0 : i32
    return %arg0, %c0_i32 : i32, i32
  }
  func.func @transform_1(%arg0: i32) -> (i32, i32) {
    %c0_i32 = arith.constant 0 : i32
    %c0_i32_0 = arith.constant 0 : i32
    %c0_i32_1 = arith.constant 0 : i32
    return %c0_i32, %c0_i32_0 : i32, i32
  }
  func.func @transform_2(%arg0: i32) -> (i32, i32) {
    %c0_i32 = arith.constant 0 : i32
    %c0_i32_0 = arith.constant 0 : i32
    %c0_i32_1 = arith.constant 0 : i32
    return %c0_i32, %c0_i32_0 : i32, i32
  }
  func.func @transform_3(%arg0: i32) -> (i32, i32) {
    %c0_i32 = arith.constant 0 : i32
    %c0_i32_0 = arith.constant 0 : i32
    return %arg0, %c0_i32 : i32, i32
  }
}

module attributes {stable_mosaic.version = 11 : i64} {
  func.func @conv_leaky_bn_kernel(%arg0: memref<128x144xbf16, #tpu.memory_space<vmem>>, %arg1: memref<144x32xbf16, #tpu.memory_space<vmem>>, %arg2: memref<1x32xf32, #tpu.memory_space<vmem>>, %arg3: memref<1x32xf32, #tpu.memory_space<vmem>>, %arg4: memref<1x32xf32, #tpu.memory_space<vmem>>, %arg5: memref<128x32xbf16, #tpu.memory_space<vmem>>) attributes {dimension_semantics = [], scalar_prefetch = 0 : i64, scratch_operands = 0 : i64, tpu.core_type = #tpu.core_type<tc>} {
    %c0 = arith.constant 0 : index
    %c0_0 = arith.constant 0 : index
    %0 = vector.load %arg0[%c0, %c0_0] : memref<128x144xbf16, #tpu.memory_space<vmem>>, vector<128x144xbf16>
    %c0_1 = arith.constant 0 : index
    %c0_2 = arith.constant 0 : index
    %1 = vector.load %arg1[%c0_1, %c0_2] : memref<144x32xbf16, #tpu.memory_space<vmem>>, vector<144x32xbf16>
    %cst = arith.constant dense<0.000000e+00> : vector<128x32xf32>
    %2 = tpu.matmul %0, %1, %cst {dimension_numbers = #tpu.dot_dimension_numbers<[1], [0], [0], [1], [0, 0, 1, 1], [], []>} : vector<128x144xbf16>, vector<144x32xbf16>, vector<128x32xf32> -> vector<128x32xf32>
    %c0_3 = arith.constant 0 : index
    %c0_4 = arith.constant 0 : index
    %3 = vector.load %arg2[%c0_3, %c0_4] : memref<1x32xf32, #tpu.memory_space<vmem>>, vector<1x32xf32>
    %4 = vector.broadcast %3 : vector<1x32xf32> to vector<128x32xf32>
    %5 = arith.addf %2, %4 : vector<128x32xf32>
    %cst_5 = arith.constant 0.000000e+00 : f32
    %6 = vector.broadcast %cst_5 : f32 to vector<128x32xf32>
    %7 = arith.cmpf oge, %5, %6 : vector<128x32xf32>
    %cst_6 = arith.constant 2.000000e-01 : f32
    %8 = vector.broadcast %cst_6 : f32 to vector<128x32xf32>
    %9 = arith.mulf %8, %5 : vector<128x32xf32>
    %10 = arith.select %7, %5, %9 : vector<128x32xi1>, vector<128x32xf32>
    %cst_7 = arith.constant dense<0.000000e+00> : vector<32xf32>
    %11 = vector.multi_reduction <add>, %10, %cst_7 [0] : vector<128x32xf32> to vector<32xf32>
    %12 = vector.shape_cast %11 : vector<32xf32> to vector<1x32xf32>
    %cst_8 = arith.constant 7.812500e-03 : f32
    %13 = vector.broadcast %cst_8 : f32 to vector<1x32xf32>
    %14 = arith.mulf %12, %13 : vector<1x32xf32>
    %15 = arith.mulf %10, %10 : vector<128x32xf32>
    %cst_9 = arith.constant dense<0.000000e+00> : vector<32xf32>
    %16 = vector.multi_reduction <add>, %15, %cst_9 [0] : vector<128x32xf32> to vector<32xf32>
    %17 = vector.shape_cast %16 : vector<32xf32> to vector<1x32xf32>
    %cst_10 = arith.constant 7.812500e-03 : f32
    %18 = vector.broadcast %cst_10 : f32 to vector<1x32xf32>
    %19 = arith.mulf %17, %18 : vector<1x32xf32>
    %20 = arith.mulf %14, %14 : vector<1x32xf32>
    %21 = arith.subf %19, %20 : vector<1x32xf32>
    %22 = vector.broadcast %14 : vector<1x32xf32> to vector<128x32xf32>
    %23 = arith.subf %10, %22 : vector<128x32xf32>
    %cst_11 = arith.constant 8.000000e-01 : f32
    %24 = vector.broadcast %cst_11 : f32 to vector<1x32xf32>
    %25 = arith.addf %21, %24 : vector<1x32xf32>
    %26 = math.rsqrt %25 : vector<1x32xf32>
    %27 = vector.broadcast %26 : vector<1x32xf32> to vector<128x32xf32>
    %28 = arith.mulf %23, %27 : vector<128x32xf32>
    %c0_12 = arith.constant 0 : index
    %c0_13 = arith.constant 0 : index
    %29 = vector.load %arg3[%c0_12, %c0_13] : memref<1x32xf32, #tpu.memory_space<vmem>>, vector<1x32xf32>
    %30 = vector.broadcast %29 : vector<1x32xf32> to vector<128x32xf32>
    %31 = arith.mulf %28, %30 : vector<128x32xf32>
    %c0_14 = arith.constant 0 : index
    %c0_15 = arith.constant 0 : index
    %32 = vector.load %arg4[%c0_14, %c0_15] : memref<1x32xf32, #tpu.memory_space<vmem>>, vector<1x32xf32>
    %33 = vector.broadcast %32 : vector<1x32xf32> to vector<128x32xf32>
    %34 = arith.addf %31, %33 : vector<128x32xf32>
    %35 = arith.truncf %34 : vector<128x32xf32> to vector<128x32xbf16>
    %c0_16 = arith.constant 0 : index
    %c0_17 = arith.constant 0 : index
    %36 = vector.load %arg5[%c0_16, %c0_17] : memref<128x32xbf16, #tpu.memory_space<vmem>>, vector<128x32xbf16>
    tpu.vector_store %arg5[%c0_16, %c0_17], %35 {strides = array<i32>} : memref<128x32xbf16, #tpu.memory_space<vmem>>, vector<128x32xbf16>,
    return
  }
}

module attributes {stable_mosaic.version = 11 : i64} {
  func.func @conv_bn_linear_kernel(%arg0: memref<8x576xbf16, #tpu.memory_space<vmem>>, %arg1: memref<576x128xbf16, #tpu.memory_space<vmem>>, %arg2: memref<1x128xf32, #tpu.memory_space<vmem>>, %arg3: memref<1x128xf32, #tpu.memory_space<vmem>>, %arg4: memref<1x128xf32, #tpu.memory_space<vmem>>, %arg5: memref<4x128x384xbf16, #tpu.memory_space<vmem>>, %arg6: memref<1x384xf32, #tpu.memory_space<vmem>>, %arg7: memref<2x384xf32, #tpu.memory_space<vmem>>) attributes {dimension_semantics = [], scalar_prefetch = 0 : i64, scratch_operands = 0 : i64, tpu.core_type = #tpu.core_type<tc>} {
    %c0 = arith.constant 0 : index
    %c0_0 = arith.constant 0 : index
    %0 = vector.load %arg0[%c0, %c0_0] : memref<8x576xbf16, #tpu.memory_space<vmem>>, vector<8x576xbf16>
    %c0_1 = arith.constant 0 : index
    %c0_2 = arith.constant 0 : index
    %1 = vector.load %arg1[%c0_1, %c0_2] : memref<576x128xbf16, #tpu.memory_space<vmem>>, vector<576x128xbf16>
    %cst = arith.constant dense<0.000000e+00> : vector<8x128xf32>
    %2 = tpu.matmul %0, %1, %cst {dimension_numbers = #tpu.dot_dimension_numbers<[1], [0], [0], [1], [0, 0, 1, 1], [], []>} : vector<8x576xbf16>, vector<576x128xbf16>, vector<8x128xf32> -> vector<8x128xf32>
    %c0_3 = arith.constant 0 : index
    %c0_4 = arith.constant 0 : index
    %3 = vector.load %arg2[%c0_3, %c0_4] : memref<1x128xf32, #tpu.memory_space<vmem>>, vector<1x128xf32>
    %4 = vector.broadcast %3 : vector<1x128xf32> to vector<8x128xf32>
    %5 = arith.addf %2, %4 : vector<8x128xf32>
    %cst_5 = arith.constant 0.000000e+00 : f32
    %6 = vector.broadcast %cst_5 : f32 to vector<8x128xf32>
    %7 = arith.cmpf oge, %5, %6 : vector<8x128xf32>
    %cst_6 = arith.constant 2.000000e-01 : f32
    %8 = vector.broadcast %cst_6 : f32 to vector<8x128xf32>
    %9 = arith.mulf %8, %5 : vector<8x128xf32>
    %10 = arith.select %7, %5, %9 : vector<8x128xi1>, vector<8x128xf32>
    %cst_7 = arith.constant dense<0.000000e+00> : vector<128xf32>
    %11 = vector.multi_reduction <add>, %10, %cst_7 [0] : vector<8x128xf32> to vector<128xf32>
    %12 = vector.shape_cast %11 : vector<128xf32> to vector<1x128xf32>
    %cst_8 = arith.constant 1.250000e-01 : f32
    %13 = vector.broadcast %cst_8 : f32 to vector<1x128xf32>
    %14 = arith.mulf %12, %13 : vector<1x128xf32>
    %15 = arith.mulf %10, %10 : vector<8x128xf32>
    %cst_9 = arith.constant dense<0.000000e+00> : vector<128xf32>
    %16 = vector.multi_reduction <add>, %15, %cst_9 [0] : vector<8x128xf32> to vector<128xf32>
    %17 = vector.shape_cast %16 : vector<128xf32> to vector<1x128xf32>
    %cst_10 = arith.constant 1.250000e-01 : f32
    %18 = vector.broadcast %cst_10 : f32 to vector<1x128xf32>
    %19 = arith.mulf %17, %18 : vector<1x128xf32>
    %20 = arith.mulf %14, %14 : vector<1x128xf32>
    %21 = arith.subf %19, %20 : vector<1x128xf32>
    %22 = vector.broadcast %14 : vector<1x128xf32> to vector<8x128xf32>
    %23 = arith.subf %10, %22 : vector<8x128xf32>
    %cst_11 = arith.constant 8.000000e-01 : f32
    %24 = vector.broadcast %cst_11 : f32 to vector<1x128xf32>
    %25 = arith.addf %21, %24 : vector<1x128xf32>
    %26 = math.rsqrt %25 : vector<1x128xf32>
    %27 = vector.broadcast %26 : vector<1x128xf32> to vector<8x128xf32>
    %28 = arith.mulf %23, %27 : vector<8x128xf32>
    %c0_12 = arith.constant 0 : index
    %c0_13 = arith.constant 0 : index
    %29 = vector.load %arg3[%c0_12, %c0_13] : memref<1x128xf32, #tpu.memory_space<vmem>>, vector<1x128xf32>
    %30 = vector.broadcast %29 : vector<1x128xf32> to vector<8x128xf32>
    %31 = arith.mulf %28, %30 : vector<8x128xf32>
    %c0_14 = arith.constant 0 : index
    %c0_15 = arith.constant 0 : index
    %32 = vector.load %arg4[%c0_14, %c0_15] : memref<1x128xf32, #tpu.memory_space<vmem>>, vector<1x128xf32>
    %33 = vector.broadcast %32 : vector<1x128xf32> to vector<8x128xf32>
    %34 = arith.addf %31, %33 : vector<8x128xf32>
    %35 = arith.truncf %34 : vector<8x128xf32> to vector<8x128xbf16>
    %cst_16 = arith.constant 0.000000e+00 : f32
    %36 = vector.broadcast %cst_16 : f32 to vector<2x384xf32>
    %37 = vector.extract_strided_slice %35 {offsets = [0, 0], sizes = [2, 128], strides = [1, 1]} : vector<8x128xbf16> to vector<2x128xbf16>
    %c0_17 = arith.constant 0 : index
    %c0_18 = arith.constant 0 : index
    %c0_19 = arith.constant 0 : index
    %38 = vector.load %arg5[%c0_17, %c0_18, %c0_19] : memref<4x128x384xbf16, #tpu.memory_space<vmem>>, vector<1x128x384xbf16>
    %39 = vector.shape_cast %38 : vector<1x128x384xbf16> to vector<128x384xbf16>
    %cst_20 = arith.constant dense<0.000000e+00> : vector<2x384xf32>
    %40 = tpu.matmul %37, %39, %cst_20 {dimension_numbers = #tpu.dot_dimension_numbers<[1], [0], [0], [1], [0, 0, 1, 1], [], []>} : vector<2x128xbf16>, vector<128x384xbf16>, vector<2x384xf32> -> vector<2x384xf32>
    %41 = arith.addf %36, %40 : vector<2x384xf32>
    %42 = vector.extract_strided_slice %35 {offsets = [2, 0], sizes = [2, 128], strides = [1, 1]} : vector<8x128xbf16> to vector<2x128xbf16>
    %c1 = arith.constant 1 : index
    %c0_21 = arith.constant 0 : index
    %c0_22 = arith.constant 0 : index
    %43 = vector.load %arg5[%c1, %c0_21, %c0_22] : memref<4x128x384xbf16, #tpu.memory_space<vmem>>, vector<1x128x384xbf16>
    %44 = vector.shape_cast %43 : vector<1x128x384xbf16> to vector<128x384xbf16>
    %cst_23 = arith.constant dense<0.000000e+00> : vector<2x384xf32>
    %45 = tpu.matmul %42, %44, %cst_23 {dimension_numbers = #tpu.dot_dimension_numbers<[1], [0], [0], [1], [0, 0, 1, 1], [], []>} : vector<2x128xbf16>, vector<128x384xbf16>, vector<2x384xf32> -> vector<2x384xf32>
    %46 = arith.addf %41, %45 : vector<2x384xf32>
    %47 = vector.extract_strided_slice %35 {offsets = [4, 0], sizes = [2, 128], strides = [1, 1]} : vector<8x128xbf16> to vector<2x128xbf16>
    %c2 = arith.constant 2 : index
    %c0_24 = arith.constant 0 : index
    %c0_25 = arith.constant 0 : index
    %48 = vector.load %arg5[%c2, %c0_24, %c0_25] : memref<4x128x384xbf16, #tpu.memory_space<vmem>>, vector<1x128x384xbf16>
    %49 = vector.shape_cast %48 : vector<1x128x384xbf16> to vector<128x384xbf16>
    %cst_26 = arith.constant dense<0.000000e+00> : vector<2x384xf32>
    %50 = tpu.matmul %47, %49, %cst_26 {dimension_numbers = #tpu.dot_dimension_numbers<[1], [0], [0], [1], [0, 0, 1, 1], [], []>} : vector<2x128xbf16>, vector<128x384xbf16>, vector<2x384xf32> -> vector<2x384xf32>
    %51 = arith.addf %46, %50 : vector<2x384xf32>
    %52 = vector.extract_strided_slice %35 {offsets = [6, 0], sizes = [2, 128], strides = [1, 1]} : vector<8x128xbf16> to vector<2x128xbf16>
    %c3 = arith.constant 3 : index
    %c0_27 = arith.constant 0 : index
    %c0_28 = arith.constant 0 : index
    %53 = vector.load %arg5[%c3, %c0_27, %c0_28] : memref<4x128x384xbf16, #tpu.memory_space<vmem>>, vector<1x128x384xbf16>
    %54 = vector.shape_cast %53 : vector<1x128x384xbf16> to vector<128x384xbf16>
    %cst_29 = arith.constant dense<0.000000e+00> : vector<2x384xf32>
    %55 = tpu.matmul %52, %54, %cst_29 {dimension_numbers = #tpu.dot_dimension_numbers<[1], [0], [0], [1], [0, 0, 1, 1], [], []>} : vector<2x128xbf16>, vector<128x384xbf16>, vector<2x384xf32> -> vector<2x384xf32>
    %56 = arith.addf %51, %55 : vector<2x384xf32>
    %c0_30 = arith.constant 0 : index
    %c0_31 = arith.constant 0 : index
    %57 = vector.load %arg6[%c0_30, %c0_31] : memref<1x384xf32, #tpu.memory_space<vmem>>, vector<1x384xf32>
    %58 = vector.broadcast %57 : vector<1x384xf32> to vector<2x384xf32>
    %59 = arith.addf %56, %58 : vector<2x384xf32>
    %c0_32 = arith.constant 0 : index
    %c0_33 = arith.constant 0 : index
    %60 = vector.load %arg7[%c0_32, %c0_33] : memref<2x384xf32, #tpu.memory_space<vmem>>, vector<2x384xf32>
    tpu.vector_store %arg7[%c0_32, %c0_33], %59 {strides = array<i32>} : memref<2x384xf32, #tpu.memory_space<vmem>>, vector<2x384xf32>,
    return
  }
}

module attributes {stable_mosaic.version = 11 : i64} {
  func.func @conv_leaky_bn_kernel(%arg0: memref<32x288xbf16, #tpu.memory_space<vmem>>, %arg1: memref<288x64xbf16, #tpu.memory_space<vmem>>, %arg2: memref<1x64xf32, #tpu.memory_space<vmem>>, %arg3: memref<1x64xf32, #tpu.memory_space<vmem>>, %arg4: memref<1x64xf32, #tpu.memory_space<vmem>>, %arg5: memref<32x64xbf16, #tpu.memory_space<vmem>>) attributes {dimension_semantics = [], scalar_prefetch = 0 : i64, scratch_operands = 0 : i64, tpu.core_type = #tpu.core_type<tc>} {
    %c0 = arith.constant 0 : index
    %c0_0 = arith.constant 0 : index
    %0 = vector.load %arg0[%c0, %c0_0] : memref<32x288xbf16, #tpu.memory_space<vmem>>, vector<32x288xbf16>
    %c0_1 = arith.constant 0 : index
    %c0_2 = arith.constant 0 : index
    %1 = vector.load %arg1[%c0_1, %c0_2] : memref<288x64xbf16, #tpu.memory_space<vmem>>, vector<288x64xbf16>
    %cst = arith.constant dense<0.000000e+00> : vector<32x64xf32>
    %2 = tpu.matmul %0, %1, %cst {dimension_numbers = #tpu.dot_dimension_numbers<[1], [0], [0], [1], [0, 0, 1, 1], [], []>} : vector<32x288xbf16>, vector<288x64xbf16>, vector<32x64xf32> -> vector<32x64xf32>
    %c0_3 = arith.constant 0 : index
    %c0_4 = arith.constant 0 : index
    %3 = vector.load %arg2[%c0_3, %c0_4] : memref<1x64xf32, #tpu.memory_space<vmem>>, vector<1x64xf32>
    %4 = vector.broadcast %3 : vector<1x64xf32> to vector<32x64xf32>
    %5 = arith.addf %2, %4 : vector<32x64xf32>
    %cst_5 = arith.constant 0.000000e+00 : f32
    %6 = vector.broadcast %cst_5 : f32 to vector<32x64xf32>
    %7 = arith.cmpf oge, %5, %6 : vector<32x64xf32>
    %cst_6 = arith.constant 2.000000e-01 : f32
    %8 = vector.broadcast %cst_6 : f32 to vector<32x64xf32>
    %9 = arith.mulf %8, %5 : vector<32x64xf32>
    %10 = arith.select %7, %5, %9 : vector<32x64xi1>, vector<32x64xf32>
    %cst_7 = arith.constant dense<0.000000e+00> : vector<64xf32>
    %11 = vector.multi_reduction <add>, %10, %cst_7 [0] : vector<32x64xf32> to vector<64xf32>
    %12 = vector.shape_cast %11 : vector<64xf32> to vector<1x64xf32>
    %cst_8 = arith.constant 3.125000e-02 : f32
    %13 = vector.broadcast %cst_8 : f32 to vector<1x64xf32>
    %14 = arith.mulf %12, %13 : vector<1x64xf32>
    %15 = arith.mulf %10, %10 : vector<32x64xf32>
    %cst_9 = arith.constant dense<0.000000e+00> : vector<64xf32>
    %16 = vector.multi_reduction <add>, %15, %cst_9 [0] : vector<32x64xf32> to vector<64xf32>
    %17 = vector.shape_cast %16 : vector<64xf32> to vector<1x64xf32>
    %cst_10 = arith.constant 3.125000e-02 : f32
    %18 = vector.broadcast %cst_10 : f32 to vector<1x64xf32>
    %19 = arith.mulf %17, %18 : vector<1x64xf32>
    %20 = arith.mulf %14, %14 : vector<1x64xf32>
    %21 = arith.subf %19, %20 : vector<1x64xf32>
    %22 = vector.broadcast %14 : vector<1x64xf32> to vector<32x64xf32>
    %23 = arith.subf %10, %22 : vector<32x64xf32>
    %cst_11 = arith.constant 8.000000e-01 : f32
    %24 = vector.broadcast %cst_11 : f32 to vector<1x64xf32>
    %25 = arith.addf %21, %24 : vector<1x64xf32>
    %26 = math.rsqrt %25 : vector<1x64xf32>
    %27 = vector.broadcast %26 : vector<1x64xf32> to vector<32x64xf32>
    %28 = arith.mulf %23, %27 : vector<32x64xf32>
    %c0_12 = arith.constant 0 : index
    %c0_13 = arith.constant 0 : index
    %29 = vector.load %arg3[%c0_12, %c0_13] : memref<1x64xf32, #tpu.memory_space<vmem>>, vector<1x64xf32>
    %30 = vector.broadcast %29 : vector<1x64xf32> to vector<32x64xf32>
    %31 = arith.mulf %28, %30 : vector<32x64xf32>
    %c0_14 = arith.constant 0 : index
    %c0_15 = arith.constant 0 : index
    %32 = vector.load %arg4[%c0_14, %c0_15] : memref<1x64xf32, #tpu.memory_space<vmem>>, vector<1x64xf32>
    %33 = vector.broadcast %32 : vector<1x64xf32> to vector<32x64xf32>
    %34 = arith.addf %31, %33 : vector<32x64xf32>
    %35 = arith.truncf %34 : vector<32x64xf32> to vector<32x64xbf16>
    %c0_16 = arith.constant 0 : index
    %c0_17 = arith.constant 0 : index
    %36 = vector.load %arg5[%c0_16, %c0_17] : memref<32x64xbf16, #tpu.memory_space<vmem>>, vector<32x64xbf16>
    tpu.vector_store %arg5[%c0_16, %c0_17], %35 {strides = array<i32>} : memref<32x64xbf16, #tpu.memory_space<vmem>>, vector<32x64xbf16>,
    return
  }
}

</mosaic_0001>

<llo_original>
// kernel: convnet_cifar10_forward.4
$region0: #{convnet_cifar10_forward.4}
  #allocation0 [shape = 'u32[]', space=smem, size = 0x4, offset = 0x4, fixed_abs, tag = 'smem constant byte address 0x4 - core index']
  #allocation1 [shape = 'u32[144,128]{1,0:T(1,128)}', space=vmem, size = 0x12000, scoped, tag = 'internal scratch']
  %s0 = inlined_call_operand.vmem [shape: bf16[512,27], index: 0, kind: input, shape index: {}]
  %s1 = inlined_call_operand.vmem [shape: bf16[27,16], index: 1, kind: input, shape index: {}]
  %s2 = inlined_call_operand.vmem [shape: f32[1,16], index: 2, kind: input, shape index: {}]
  %s3 = inlined_call_operand.vmem [shape: bf16[512,16], index: 3, kind: output, shape index: {}]
  %s4 = sld [smem:[#allocation0]]
  $region45: #{convnet_cifar10_forward.4} parent=0
    _
  %s6 = ssub.s32 1, %s4
  %s7 = scalar_select 0, %s6, %s4
  loop: start=0, step=1, limit=4
  $region2: #{convnet_cifar10_forward.4} parent=0 // loop_pre_header
    _
  $region3: #{convnet_cifar10_forward.4} parent=0 // loop_header
    %s9 = sphi 0, %s13
    %p10 = scmp.ge.s32.totalorder %s9, 4
    %s19 = sphi 0, %s21
    %s22 = sphi 0, %s19
    %s23 = sphi 0, %s22
    %s39 = sphi 0, %s23
    %s43 = sphi 0, %s43
    %s45 = sphi 0, %s43
    %s46 = sphi 0, %s45
    %s60 = sphi 0, %s46
    %s64 = sphi 0, %s64
    %s66 = sphi 0, %s64
    %s67 = sphi 0, %s66
    %s81 = sphi 0, %s67
    %s87 = sphi 0, %s89
    %s90 = sphi 0, %s87
    %s91 = sphi 0, %s90
    %s107 = sphi 0, %s91
  $region4: #{convnet_cifar10_forward.4} parent=0 // loop_header_branch
    %12 = sbr.rel (%p10) target = $region8
  $region5: #{convnet_cifar10_forward.4} parent=0 // loop_body
    %s14 = ssub.s32 %s9, 1
    %s15 = ssub.s32 %s9, 2
    %s16 = sadd.s32 %s9, 1
    %s17 = ssub.s32 %s9, %s16
    %p18 = scmp.eq.s32.totalorder %s17, 0
    %s20 = sadd.s32 %s19, 1
    %s21 = scalar_select %p18, %s19, %s20
    %p24 = pneg %p18
    %p25 = scmp.eq.s32.totalorder %s9, 1
    %p26 = por %p24, %p25
    %p27 = scmp.ne.s32.totalorder %s19, %s22
    %p28 = scmp.eq.s32.totalorder %s9, 0
    %p29 = por %p27, %p28
    %p30 = scmp.ne.s32.totalorder %s19, %s22
    %p31 = scmp.eq.s32.totalorder %s14, 1
    %p32 = por %p30, %p31
    %p33 = scmp.ne.s32.totalorder %s22, %s23
    %p34 = scmp.eq.s32.totalorder %s14, 0
    %p35 = por %p33, %p34
    %p36 = scmp.ne.s32.totalorder %s22, %s23
    %p37 = scmp.eq.s32.totalorder %s15, 1
    %p38 = por %p36, %p37
    %p40 = scmp.ne.s32.totalorder %s23, %s39
    %p41 = scmp.eq.s32.totalorder %s15, 0
    %p42 = por %p40, %p41
    %s44 = sadd.s32 %s43, 1
    %p47 = scmp.eq.s32.totalorder %s9, 1
    %p48 = scmp.ne.s32.totalorder %s43, %s45
    %p49 = scmp.eq.s32.totalorder %s9, 0
    %p50 = por %p48, %p49
    %p51 = scmp.ne.s32.totalorder %s43, %s45
    %p52 = scmp.eq.s32.totalorder %s14, 1
    %p53 = por %p51, %p52
    %p54 = scmp.ne.s32.totalorder %s45, %s46
    %p55 = scmp.eq.s32.totalorder %s14, 0
    %p56 = por %p54, %p55
    %p57 = scmp.ne.s32.totalorder %s45, %s46
    %p58 = scmp.eq.s32.totalorder %s15, 1
    %p59 = por %p57, %p58
    %p61 = scmp.ne.s32.totalorder %s46, %s60
    %p62 = scmp.eq.s32.totalorder %s15, 0
    %p63 = por %p61, %p62
    %s65 = sadd.s32 %s64, 1
    %p68 = scmp.eq.s32.totalorder %s9, 1
    %p69 = scmp.ne.s32.totalorder %s64, %s66
    %p70 = scmp.eq.s32.totalorder %s9, 0
    %p71 = por %p69, %p70
    %p72 = scmp.ne.s32.totalorder %s64, %s66
    %p73 = scmp.eq.s32.totalorder %s14, 1
    %p74 = por %p72, %p73
    %p75 = scmp.ne.s32.totalorder %s66, %s67
    %p76 = scmp.eq.s32.totalorder %s14, 0
    %p77 = por %p75, %p76
    %p78 = scmp.ne.s32.totalorder %s66, %s67
    %p79 = scmp.eq.s32.totalorder %s15, 1
    %p80 = por %p78, %p79
    %p82 = scmp.ne.s32.totalorder %s67, %s81
    %p83 = scmp.eq.s32.totalorder %s15, 0
    %p84 = por %p82, %p83
    %s85 = ssub.s32 %s9, %s16
    %p86 = scmp.eq.s32.totalorder %s85, 0
    %s88 = sadd.s32 %s87, 1
    %s89 = scalar_select %p86, %s87, %s88
    %p92 = pneg %p86
    %p93 = scmp.eq.s32.totalorder %s9, 1
    %p94 = por %p92, %p93
    %p95 = scmp.ne.s32.totalorder %s87, %s90
    %p96 = scmp.eq.s32.totalorder %s9, 0
    %p97 = por %p95, %p96
    %p98 = scmp.ne.s32.totalorder %s87, %s90
    %p99 = scmp.eq.s32.totalorder %s14, 1
    %p100 = por %p98, %p99
    %p101 = scmp.ne.s32.totalorder %s90, %s91
    %p102 = scmp.eq.s32.totalorder %s14, 0
    %p103 = por %p101, %p102
    %p104 = scmp.ne.s32.totalorder %s90, %s91
    %p105 = scmp.eq.s32.totalorder %s15, 1
    %p106 = por %p104, %p105
    %p108 = scmp.ne.s32.totalorder %s91, %s107
    %p109 = scmp.eq.s32.totalorder %s15, 0
    %p110 = por %p108, %p109
    %p111 = scmp.le.s32.totalorder 1, %s9
    %p112 = scmp.lt.s32.totalorder %s9, 3
    %p113 = pnand %p111, %p112
    %p114 = pneg %p113
    // Predicated region
    $region9: #{convnet_cifar10_forward.4} parent=5 // pred_check
      _
    $region10: #{convnet_cifar10_forward.4} parent=5 // pred_check_branch
      %116 = sbr.rel (%p113) target = $region12
    $region11: #{convnet_cifar10_forward.4} parent=5 // pred_region
      %s117 = ssub.s32 %s9, 1
      // Predicated region
      $region13: #{convnet_cifar10_forward.4} parent=11 // pred_check
        %p118 = pneg %p56
      $region14: #{convnet_cifar10_forward.4} parent=11 // pred_check_branch
        %120 = sbr.rel (%p118) target = $region16
      $region15: #{convnet_cifar10_forward.4} parent=11 // pred_region
        _
      $region16: #{convnet_cifar10_forward.4} parent=11 // pred_fallthru
        _
      // Predicated region
      $region17: #{convnet_cifar10_forward.4} parent=11 // pred_check
        %p121 = pneg %p77
      $region18: #{convnet_cifar10_forward.4} parent=11 // pred_check_branch
        %123 = sbr.rel (%p121) target = $region20
      $region19: #{convnet_cifar10_forward.4} parent=11 // pred_region
        _
      $region20: #{convnet_cifar10_forward.4} parent=11 // pred_fallthru
        _
    $region12: #{convnet_cifar10_forward.4} parent=5 // pred_fallthru
      _
    %p124 = scmp.lt.s32.totalorder %s9, 2
    // Predicated region
    $region21: #{convnet_cifar10_forward.4} parent=5 // pred_check
      %p125 = pneg %p124
    $region22: #{convnet_cifar10_forward.4} parent=5 // pred_check_branch
      %127 = sbr.rel (%p125) target = $region24
    $region23: #{convnet_cifar10_forward.4} parent=5 // pred_region
      // Predicated region
      $region25: #{convnet_cifar10_forward.4} parent=23 // pred_check
        %p128 = pneg %p29
      $region26: #{convnet_cifar10_forward.4} parent=23 // pred_check_branch
        %130 = sbr.rel (%p128) target = $region28
      $region27: #{convnet_cifar10_forward.4} parent=23 // pred_region
        %s131 = smul.u32 32, %s9
        %p132 = scmp.lt.s32.totalorder %s131, 63
        %s133 = scalar_select %p132, %s131, 63
        %s134 = smul.addr %s133, 4
        %s135 = scalar_lea.vmem %s0, %s134
        %s136 = smul.u32 32, %s9
      $region28: #{convnet_cifar10_forward.4} parent=23 // pred_fallthru
        _
    $region24: #{convnet_cifar10_forward.4} parent=5 // pred_fallthru
      _
    %p137 = scmp.le.s32.totalorder 1, %s9
    %p138 = scmp.lt.s32.totalorder %s9, 3
    %p139 = pnand %p137, %p138
    %p140 = pneg %p139
    // Predicated region
    $region29: #{convnet_cifar10_forward.4} parent=5 // pred_check
      _
    $region30: #{convnet_cifar10_forward.4} parent=5 // pred_check_branch
      %142 = sbr.rel (%p139) target = $region32
    $region31: #{convnet_cifar10_forward.4} parent=5 // pred_region
      %s143 = ssub.s32 %s9, 1
      %s144 = smul.u32 32, %s14
      %p145 = scmp.lt.s32.totalorder %s144, 63
      %s146 = scalar_select %p145, %s144, 63
      %s147 = smul.addr %s146, 4
      %s148 = scalar_lea.vmem %s0, %s147
      %p149 = pneg %p35
      %p150 = pneg %p32
      %p151 = pneg %p56
      %p152 = pneg %p53
      %p153 = pneg %p77
      %p154 = pneg %p74
      %p155 = pneg %p103
      %p156 = pneg %p100
      %s157 = smul.u32 32, %s14
      %p158 = scmp.lt.s32.totalorder %s157, 63
      %s159 = scalar_select %p158, %s157, 63
      %s160 = smul.addr %s159, 4
      %s161 = scalar_lea.vmem %s3, %s160
      %s162 = smul.u32 32, %s14
      %p163 = scmp.lt.s32.totalorder %s162, 63
      %s164 = scalar_select %p163, %s162, 63
      %s165 = smul.addr %s164, 4
      %s166 = scalar_lea.vmem %s0, %s165
      %s167 = smul.u32 32, %s14
      %s168 = smul.u32 32, %s14
      %p169 = scmp.lt.s32.totalorder %s168, 63
      %s170 = scalar_select %p169, %s168, 63
      %s171 = smul.addr %s170, 4
      %s172 = scalar_lea.vmem %s3, %s171
      %s173 = smul.u32 32, %s14
      %v175 = vld [vmem:[%s166] sm:$0xf]
      %v176 = vld [vmem:[%s166 + $0x4] sm:$0xf]
      %v177 = vld [vmem:[%s166 + $0x8] sm:$0xf]
      %v178 = vld [vmem:[%s166 + $0xc] sm:$0xf]
      %v179 = vld [vmem:[%s166 + $0x10] sm:$0xf]
      %v180 = vld [vmem:[%s166 + $0x14] sm:$0xf]
      %v181 = vld [vmem:[%s166 + $0x18] sm:$0xf]
      %v182 = vld [vmem:[%s166 + $0x1c] sm:$0xf]
      %v183 = vld [vmem:[%s166 + $0x20] sm:$0xf]
      %v184 = vld [vmem:[%s166 + $0x24] sm:$0xf]
      %v185 = vld [vmem:[%s166 + $0x28] sm:$0xf]
      %v186 = vld [vmem:[%s166 + $0x2c] sm:$0xf]
      %v187 = vld [vmem:[%s166 + $0x30] sm:$0xf]
      %v188 = vld [vmem:[%s166 + $0x34] sm:$0xf]
      %v189 = vld [vmem:[%s166 + $0x38] sm:$0xf]
      %v190 = vld [vmem:[%s166 + $0x3c] sm:$0xf]
      %v191 = vld [vmem:[%s166 + $0x40] sm:$0xf]
      %v192 = vld [vmem:[%s166 + $0x44] sm:$0xf]
      %v193 = vld [vmem:[%s166 + $0x48] sm:$0xf]
      %v194 = vld [vmem:[%s166 + $0x4c] sm:$0xf]
      %v195 = vld [vmem:[%s166 + $0x50] sm:$0xf]
      %v196 = vld [vmem:[%s166 + $0x54] sm:$0xf]
      %v197 = vld [vmem:[%s166 + $0x58] sm:$0xf]
      %v198 = vld [vmem:[%s166 + $0x5c] sm:$0xf]
      %v199 = vld [vmem:[%s166 + $0x60] sm:$0xf]
      %v200 = vld [vmem:[%s166 + $0x64] sm:$0xf]
      %v201 = vld [vmem:[%s166 + $0x68] sm:$0xf]
      %v202 = vld [vmem:[%s166 + $0x6c] sm:$0xf]
      %v203 = vld [vmem:[%s166 + $0x70] sm:$0xf]
      %v204 = vld [vmem:[%s166 + $0x74] sm:$0xf]
      %v205 = vld [vmem:[%s166 + $0x78] sm:$0xf]
      %v206 = vld [vmem:[%s166 + $0x7c] sm:$0xf]
      %v207 = vld [vmem:[%s1] sm:$0xf]
      %v208 = vld [vmem:[%s1 + $0x4] sm:$0xf]
      %v209 = vld [vmem:[%s1 + $0x8] sm:$0xf]
      %v210 = vld [vmem:[%s1 + $0xc] sm:$0x3]
      %v211 = vld [vmem:[%s2] sm:$0x1]
      %v213 = vlaneseq
      %v214 = vshrl.u32 %v213, 7
      %v215 = vsub.s32 0, %v214
      %v216 = vrot.slane %v211, %v215
      %v250 = vunpack.c.l.b16 %v175
      %v251 = vunpack.c.l.b16 %v176
      %v252 = vunpack.c.l.b16 %v177
      %v253 = vunpack.c.l.b16 %v178
      %v254 = vunpack.c.l.b16 %v179
      %v255 = vunpack.c.l.b16 %v180
      %v256 = vunpack.c.l.b16 %v181
      %v257 = vunpack.c.l.b16 %v182
      %v258 = vunpack.c.l.b16 %v183
      %v259 = vunpack.c.l.b16 %v184
      %v260 = vunpack.c.l.b16 %v185
      %v261 = vunpack.c.l.b16 %v186
      %v262 = vunpack.c.l.b16 %v187
      %v263 = vunpack.c.l.b16 %v188
      %v264 = vunpack.c.l.b16 %v189
      %v265 = vunpack.c.l.b16 %v190
      %v266 = vunpack.c.l.b16 %v191
      %v267 = vunpack.c.l.b16 %v192
      %v268 = vunpack.c.l.b16 %v193
      %v269 = vunpack.c.l.b16 %v194
      %v270 = vunpack.c.l.b16 %v195
      %v271 = vunpack.c.l.b16 %v196
      %v272 = vunpack.c.l.b16 %v197
      %v273 = vunpack.c.l.b16 %v198
      %v274 = vunpack.c.l.b16 %v199
      %v275 = vunpack.c.l.b16 %v200
      %v276 = vunpack.c.l.b16 %v201
      %v277 = vunpack.c.l.b16 %v202
      %v278 = vunpack.c.l.b16 %v203
      %v279 = vunpack.c.l.b16 %v204
      %v280 = vunpack.c.l.b16 %v205
      %v281 = vunpack.c.l.b16 %v206
      %v282 = vpack.c.b16 %v251, %v250
      %v283 = vpack.c.b16 %v253, %v252
      %v284 = vpack.c.b16 %v255, %v254
      %v285 = vpack.c.b16 %v257, %v256
      %v286 = vpack.c.b16 %v259, %v258
      %v287 = vpack.c.b16 %v261, %v260
      %v288 = vpack.c.b16 %v263, %v262
      %v289 = vpack.c.b16 %v265, %v264
      %v290 = vpack.c.b16 %v267, %v266
      %v291 = vpack.c.b16 %v269, %v268
      %v292 = vpack.c.b16 %v271, %v270
      %v293 = vpack.c.b16 %v273, %v272
      %v294 = vpack.c.b16 %v275, %v274
      %v295 = vpack.c.b16 %v277, %v276
      %v296 = vpack.c.b16 %v279, %v278
      %v297 = vpack.c.b16 %v281, %v280
      %v302 = vunpack.c.l.b16 %v207
      %v303 = vunpack.c.l.b16 %v208
      %v304 = vunpack.c.l.b16 %v209
      %v305 = vunpack.c.l.b16 %v210
      %v306 = vpack.c.b16 %v303, %v302
      %v307 = vpack.c.b16 %v305, %v304
      %vm309 = vcmask 220160
      %v311 = vsel %vm309, %v282, 0
      %v314 = vsel %vm309, %v283, 0
      %v317 = vsel %vm309, %v284, 0
      %v320 = vsel %vm309, %v285, 0
      %v323 = vsel %vm309, %v286, 0
      %v326 = vsel %vm309, %v287, 0
      %v329 = vsel %vm309, %v288, 0
      %v332 = vsel %vm309, %v289, 0
      %v335 = vsel %vm309, %v290, 0
      %v338 = vsel %vm309, %v291, 0
      %v341 = vsel %vm309, %v292, 0
      %v344 = vsel %vm309, %v293, 0
      %v347 = vsel %vm309, %v294, 0
      %v350 = vsel %vm309, %v295, 0
      %v353 = vsel %vm309, %v296, 0
      %v356 = vsel %vm309, %v297, 0
      %vm358 = vcmask 1044480
      %vm359 = vcmask 1045504
      %v360 = vsel %vm358, 4294967295, 65535
      %v361 = vsel %vm359, %v360, 0
      %v363 = vand.u32 %v307, %v361
      %365 = vmatprep.subr.bf16.mxu0 0
      %366 = vmatpush1.bf16.msra.mxu0 %v306
      %367 = vmatprep.subr.bf16.mxu0 0
      %368 = vmatpush1.bf16.msra.mxu0 %v363
      %369 = vmatprep.subr.bf16.mxu0 0
      %370 = vmatpush1.bf16.msra.mxu0 0
      %371 = vmatprep.subr.bf16.mxu0 0
      %372 = vmatpush1.bf16.msra.mxu0 0
      %373 = vmatprep.subr.bf16.mxu0 0
      %374 = vmatpush1.bf16.msra.mxu0 0
      %375 = vmatprep.subr.bf16.mxu0 0
      %376 = vmatpush1.bf16.msra.mxu0 0
      %377 = vmatprep.subr.bf16.mxu0 0
      %378 = vmatpush1.bf16.msra.mxu0 0
      %379 = vmatprep.subr.bf16.mxu0 0
      %380 = vmatpush1.bf16.msra.mxu0 0
      %381 = vmatprep.subr.bf16.mxu0 0
      %382 = vmatpush1.bf16.msra.mxu0 0
      %383 = vmatprep.subr.bf16.mxu0 0
      %384 = vmatpush1.bf16.msra.mxu0 0
      %385 = vmatprep.subr.bf16.mxu0 0
      %386 = vmatpush1.bf16.msra.mxu0 0
      %387 = vmatprep.subr.bf16.mxu0 0
      %388 = vmatpush1.bf16.msra.mxu0 0
      %389 = vmatprep.subr.bf16.mxu0 0
      %390 = vmatpush1.bf16.msra.mxu0 0
      %391 = vmatprep.subr.bf16.mxu0 0
      %392 = vmatpush1.bf16.msra.mxu0 0
      %393 = vmatprep.subr.bf16.mxu0 0
      %394 = vmatpush1.bf16.msra.mxu0 0
      %395 = vmatprep.subr.bf16.mxu0 0
      %396 = vmatpush1.bf16.msra.mxu0 0
      %397 = vmatprep.mubr.bf16.mxu0 0
      %398 = vmatmul.mubr.bf16.gmra.mrb[0].mxu0 %v311
      %v399 = vpop.f32.mrb[0].mxu0
      %v400 = vadd.f32 %v216, %v399
      %v401 = vpop.f32.mrb[0].mxu0
      %v402 = vpop.f32.mrb[0].mxu0
      %v403 = vadd.f32 %v216, %v402
      %v404 = vpop.f32.mrb[0].mxu0
      %405 = vmatprep.mubr.bf16.mxu0 0
      %406 = vmatmul.mubr.bf16.gmra.mrb[0].mxu0 %v314
      %v407 = vpop.f32.mrb[0].mxu0
      %v408 = vadd.f32 %v216, %v407
      %v409 = vpop.f32.mrb[0].mxu0
      %v410 = vpop.f32.mrb[0].mxu0
      %v411 = vadd.f32 %v216, %v410
      %v412 = vpop.f32.mrb[0].mxu0
      %413 = vmatprep.mubr.bf16.mxu0 0
      %414 = vmatmul.mubr.bf16.gmra.mrb[0].mxu0 %v317
      %v415 = vpop.f32.mrb[0].mxu0
      %v416 = vadd.f32 %v216, %v415
      %v417 = vpop.f32.mrb[0].mxu0
      %v418 = vpop.f32.mrb[0].mxu0
      %v419 = vadd.f32 %v216, %v418
      %v420 = vpop.f32.mrb[0].mxu0
      %421 = vmatprep.mubr.bf16.mxu0 0
      %422 = vmatmul.mubr.bf16.gmra.mrb[0].mxu0 %v320
      %v423 = vpop.f32.mrb[0].mxu0
      %v424 = vadd.f32 %v216, %v423
      %v425 = vpop.f32.mrb[0].mxu0
      %v426 = vpop.f32.mrb[0].mxu0
      %v427 = vadd.f32 %v216, %v426
      %v428 = vpop.f32.mrb[0].mxu0
      %429 = vmatprep.mubr.bf16.mxu0 0
      %430 = vmatmul.mubr.bf16.gmra.mrb[0].mxu0 %v323
      %v431 = vpop.f32.mrb[0].mxu0
      %v432 = vadd.f32 %v216, %v431
      %v433 = vpop.f32.mrb[0].mxu0
      %v434 = vpop.f32.mrb[0].mxu0
      %v435 = vadd.f32 %v216, %v434
      %v436 = vpop.f32.mrb[0].mxu0
      %437 = vmatprep.mubr.bf16.mxu0 0
      %438 = vmatmul.mubr.bf16.gmra.mrb[0].mxu0 %v326
      %v439 = vpop.f32.mrb[0].mxu0
      %v440 = vadd.f32 %v216, %v439
      %v441 = vpop.f32.mrb[0].mxu0
      %v442 = vpop.f32.mrb[0].mxu0
      %v443 = vadd.f32 %v216, %v442
      %v444 = vpop.f32.mrb[0].mxu0
      %445 = vmatprep.mubr.bf16.mxu0 0
      %446 = vmatmul.mubr.bf16.gmra.mrb[0].mxu0 %v329
      %v447 = vpop.f32.mrb[0].mxu0
      %v448 = vadd.f32 %v216, %v447
      %v449 = vpop.f32.mrb[0].mxu0
      %v450 = vpop.f32.mrb[0].mxu0
      %v451 = vadd.f32 %v216, %v450
      %v452 = vpop.f32.mrb[0].mxu0
      %453 = vmatprep.mubr.bf16.mxu0 0
      %454 = vmatmul.mubr.bf16.gmra.mrb[0].mxu0 %v332
      %v455 = vpop.f32.mrb[0].mxu0
      %v456 = vadd.f32 %v216, %v455
      %v457 = vpop.f32.mrb[0].mxu0
      %v458 = vpop.f32.mrb[0].mxu0
      %v459 = vadd.f32 %v216, %v458
      %v460 = vpop.f32.mrb[0].mxu0
      %461 = vmatprep.mubr.bf16.mxu0 0
      %462 = vmatmul.mubr.bf16.gmra.mrb[0].mxu0 %v335
      %v463 = vpop.f32.mrb[0].mxu0
      %v464 = vadd.f32 %v216, %v463
      %v465 = vpop.f32.mrb[0].mxu0
      %v466 = vpop.f32.mrb[0].mxu0
      %v467 = vadd.f32 %v216, %v466
      %v468 = vpop.f32.mrb[0].mxu0
      %469 = vmatprep.mubr.bf16.mxu0 0
      %470 = vmatmul.mubr.bf16.gmra.mrb[0].mxu0 %v338
      %v471 = vpop.f32.mrb[0].mxu0
      %v472 = vadd.f32 %v216, %v471
      %v473 = vpop.f32.mrb[0].mxu0
      %v474 = vpop.f32.mrb[0].mxu0
      %v475 = vadd.f32 %v216, %v474
      %v476 = vpop.f32.mrb[0].mxu0
      %477 = vmatprep.mubr.bf16.mxu0 0
      %478 = vmatmul.mubr.bf16.gmra.mrb[0].mxu0 %v341
      %v479 = vpop.f32.mrb[0].mxu0
      %v480 = vadd.f32 %v216, %v479
      %v481 = vpop.f32.mrb[0].mxu0
      %v482 = vpop.f32.mrb[0].mxu0
      %v483 = vadd.f32 %v216, %v482
      %v484 = vpop.f32.mrb[0].mxu0
      %485 = vmatprep.mubr.bf16.mxu0 0
      %486 = vmatmul.mubr.bf16.gmra.mrb[0].mxu0 %v344
      %v487 = vpop.f32.mrb[0].mxu0
      %v488 = vadd.f32 %v216, %v487
      %v489 = vpop.f32.mrb[0].mxu0
      %v490 = vpop.f32.mrb[0].mxu0
      %v491 = vadd.f32 %v216, %v490
      %v492 = vpop.f32.mrb[0].mxu0
      %493 = vmatprep.mubr.bf16.mxu0 0
      %494 = vmatmul.mubr.bf16.gmra.mrb[0].mxu0 %v347
      %v495 = vpop.f32.mrb[0].mxu0
      %v496 = vadd.f32 %v216, %v495
      %v497 = vpop.f32.mrb[0].mxu0
      %v498 = vpop.f32.mrb[0].mxu0
      %v499 = vadd.f32 %v216, %v498
      %v500 = vpop.f32.mrb[0].mxu0
      %501 = vmatprep.mubr.bf16.mxu0 0
      %502 = vmatmul.mubr.bf16.gmra.mrb[0].mxu0 %v350
      %v503 = vpop.f32.mrb[0].mxu0
      %v504 = vadd.f32 %v216, %v503
      %v505 = vpop.f32.mrb[0].mxu0
      %v506 = vpop.f32.mrb[0].mxu0
      %v507 = vadd.f32 %v216, %v506
      %v508 = vpop.f32.mrb[0].mxu0
      %509 = vmatprep.mubr.bf16.mxu0 0
      %510 = vmatmul.mubr.bf16.gmra.mrb[0].mxu0 %v353
      %v511 = vpop.f32.mrb[0].mxu0
      %v512 = vadd.f32 %v216, %v511
      %v513 = vpop.f32.mrb[0].mxu0
      %v514 = vpop.f32.mrb[0].mxu0
      %v515 = vadd.f32 %v216, %v514
      %v516 = vpop.f32.mrb[0].mxu0
      %517 = vmatprep.mubr.bf16.mxu0 0
      %518 = vmatmul.mubr.bf16.gmra.mrb[0].mxu0 %v356
      %v519 = vpop.f32.mrb[0].mxu0
      %v520 = vadd.f32 %v216, %v519
      %v521 = vpop.f32.mrb[0].mxu0
      %v522 = vpop.f32.mrb[0].mxu0
      %v523 = vadd.f32 %v216, %v522
      %v524 = vpop.f32.mrb[0].mxu0
      %525 = vdwg.mxu0
      %vm526 = vcmp.ge.f32.partialorder %v400, 0.0
      %vm527 = vcmp.ge.f32.partialorder %v403, 0.0
      %vm528 = vcmp.ge.f32.partialorder %v408, 0.0
      %vm529 = vcmp.ge.f32.partialorder %v411, 0.0
      %vm530 = vcmp.ge.f32.partialorder %v416, 0.0
      %vm531 = vcmp.ge.f32.partialorder %v419, 0.0
      %vm532 = vcmp.ge.f32.partialorder %v424, 0.0
      %vm533 = vcmp.ge.f32.partialorder %v427, 0.0
      %vm534 = vcmp.ge.f32.partialorder %v432, 0.0
      %vm535 = vcmp.ge.f32.partialorder %v435, 0.0
      %vm536 = vcmp.ge.f32.partialorder %v440, 0.0
      %vm537 = vcmp.ge.f32.partialorder %v443, 0.0
      %vm538 = vcmp.ge.f32.partialorder %v448, 0.0
      %vm539 = vcmp.ge.f32.partialorder %v451, 0.0
      %vm540 = vcmp.ge.f32.partialorder %v456, 0.0
      %vm541 = vcmp.ge.f32.partialorder %v459, 0.0
      %vm542 = vcmp.ge.f32.partialorder %v464, 0.0
      %vm543 = vcmp.ge.f32.partialorder %v467, 0.0
      %vm544 = vcmp.ge.f32.partialorder %v472, 0.0
      %vm545 = vcmp.ge.f32.partialorder %v475, 0.0
      %vm546 = vcmp.ge.f32.partialorder %v480, 0.0
      %vm547 = vcmp.ge.f32.partialorder %v483, 0.0
      %vm548 = vcmp.ge.f32.partialorder %v488, 0.0
      %vm549 = vcmp.ge.f32.partialorder %v491, 0.0
      %vm550 = vcmp.ge.f32.partialorder %v496, 0.0
      %vm551 = vcmp.ge.f32.partialorder %v499, 0.0
      %vm552 = vcmp.ge.f32.partialorder %v504, 0.0
      %vm553 = vcmp.ge.f32.partialorder %v507, 0.0
      %vm554 = vcmp.ge.f32.partialorder %v512, 0.0
      %vm555 = vcmp.ge.f32.partialorder %v515, 0.0
      %vm556 = vcmp.ge.f32.partialorder %v520, 0.0
      %vm557 = vcmp.ge.f32.partialorder %v523, 0.0
      %v558 = vmul.f32 %v400, 0.2
      %v559 = vmul.f32 %v403, 0.2
      %v560 = vmul.f32 %v408, 0.2
      %v561 = vmul.f32 %v411, 0.2
      %v562 = vmul.f32 %v416, 0.2
      %v563 = vmul.f32 %v419, 0.2
      %v564 = vmul.f32 %v424, 0.2
      %v565 = vmul.f32 %v427, 0.2
      %v566 = vmul.f32 %v432, 0.2
      %v567 = vmul.f32 %v435, 0.2
      %v568 = vmul.f32 %v440, 0.2
      %v569 = vmul.f32 %v443, 0.2
      %v570 = vmul.f32 %v448, 0.2
      %v571 = vmul.f32 %v451, 0.2
      %v572 = vmul.f32 %v456, 0.2
      %v573 = vmul.f32 %v459, 0.2
      %v574 = vmul.f32 %v464, 0.2
      %v575 = vmul.f32 %v467, 0.2
      %v576 = vmul.f32 %v472, 0.2
      %v577 = vmul.f32 %v475, 0.2
      %v578 = vmul.f32 %v480, 0.2
      %v579 = vmul.f32 %v483, 0.2
      %v580 = vmul.f32 %v488, 0.2
      %v581 = vmul.f32 %v491, 0.2
      %v582 = vmul.f32 %v496, 0.2
      %v583 = vmul.f32 %v499, 0.2
      %v584 = vmul.f32 %v504, 0.2
      %v585 = vmul.f32 %v507, 0.2
      %v586 = vmul.f32 %v512, 0.2
      %v587 = vmul.f32 %v515, 0.2
      %v588 = vmul.f32 %v520, 0.2
      %v589 = vmul.f32 %v523, 0.2
      %v590 = vsel %vm526, %v400, %v558
      %v591 = vsel %vm527, %v403, %v559
      %v592 = vsel %vm528, %v408, %v560
      %v593 = vsel %vm529, %v411, %v561
      %v594 = vsel %vm530, %v416, %v562
      %v595 = vsel %vm531, %v419, %v563
      %v596 = vsel %vm532, %v424, %v564
      %v597 = vsel %vm533, %v427, %v565
      %v598 = vsel %vm534, %v432, %v566
      %v599 = vsel %vm535, %v435, %v567
      %v600 = vsel %vm536, %v440, %v568
      %v601 = vsel %vm537, %v443, %v569
      %v602 = vsel %vm538, %v448, %v570
      %v603 = vsel %vm539, %v451, %v571
      %v604 = vsel %vm540, %v456, %v572
      %v605 = vsel %vm541, %v459, %v573
      %v606 = vsel %vm542, %v464, %v574
      %v607 = vsel %vm543, %v467, %v575
      %v608 = vsel %vm544, %v472, %v576
      %v609 = vsel %vm545, %v475, %v577
      %v610 = vsel %vm546, %v480, %v578
      %v611 = vsel %vm547, %v483, %v579
      %v612 = vsel %vm548, %v488, %v580
      %v613 = vsel %vm549, %v491, %v581
      %v614 = vsel %vm550, %v496, %v582
      %v615 = vsel %vm551, %v499, %v583
      %v616 = vsel %vm552, %v504, %v584
      %v617 = vsel %vm553, %v507, %v585
      %v618 = vsel %vm554, %v512, %v586
      %v619 = vsel %vm555, %v515, %v587
      %v620 = vsel %vm556, %v520, %v588
      %v621 = vsel %vm557, %v523, %v589
      %v622 = vpack.c.bf16 %v591, %v590
      %v623 = vpack.c.bf16 %v593, %v592
      %v624 = vpack.c.bf16 %v595, %v594
      %v625 = vpack.c.bf16 %v597, %v596
      %v626 = vpack.c.bf16 %v599, %v598
      %v627 = vpack.c.bf16 %v601, %v600
      %v628 = vpack.c.bf16 %v603, %v602
      %v629 = vpack.c.bf16 %v605, %v604
      %v630 = vpack.c.bf16 %v607, %v606
      %v631 = vpack.c.bf16 %v609, %v608
      %v632 = vpack.c.bf16 %v611, %v610
      %v633 = vpack.c.bf16 %v613, %v612
      %v634 = vpack.c.bf16 %v615, %v614
      %v635 = vpack.c.bf16 %v617, %v616
      %v636 = vpack.c.bf16 %v619, %v618
      %v637 = vpack.c.bf16 %v621, %v620
      %v654 = vunpack.c.l.b16 %v622
      %v655 = vunpack.c.h.b16 %v622
      %v656 = vunpack.c.l.b16 %v623
      %v657 = vunpack.c.h.b16 %v623
      %v658 = vunpack.c.l.b16 %v624
      %v659 = vunpack.c.h.b16 %v624
      %v660 = vunpack.c.l.b16 %v625
      %v661 = vunpack.c.h.b16 %v625
      %v662 = vunpack.c.l.b16 %v626
      %v663 = vunpack.c.h.b16 %v626
      %v664 = vunpack.c.l.b16 %v627
      %v665 = vunpack.c.h.b16 %v627
      %v666 = vunpack.c.l.b16 %v628
      %v667 = vunpack.c.h.b16 %v628
      %v668 = vunpack.c.l.b16 %v629
      %v669 = vunpack.c.h.b16 %v629
      %v670 = vunpack.c.l.b16 %v630
      %v671 = vunpack.c.h.b16 %v630
      %v672 = vunpack.c.l.b16 %v631
      %v673 = vunpack.c.h.b16 %v631
      %v674 = vunpack.c.l.b16 %v632
      %v675 = vunpack.c.h.b16 %v632
      %v676 = vunpack.c.l.b16 %v633
      %v677 = vunpack.c.h.b16 %v633
      %v678 = vunpack.c.l.b16 %v634
      %v679 = vunpack.c.h.b16 %v634
      %v680 = vunpack.c.l.b16 %v635
      %v681 = vunpack.c.h.b16 %v635
      %v682 = vunpack.c.l.b16 %v636
      %v683 = vunpack.c.h.b16 %v636
      %v684 = vunpack.c.l.b16 %v637
      %v685 = vunpack.c.h.b16 %v637
      %v686 = vpack.c.b16 %v654, %v654
      %v687 = vpack.c.b16 %v655, %v655
      %v688 = vpack.c.b16 %v656, %v656
      %v689 = vpack.c.b16 %v657, %v657
      %v690 = vpack.c.b16 %v658, %v658
      %v691 = vpack.c.b16 %v659, %v659
      %v692 = vpack.c.b16 %v660, %v660
      %v693 = vpack.c.b16 %v661, %v661
      %v694 = vpack.c.b16 %v662, %v662
      %v695 = vpack.c.b16 %v663, %v663
      %v696 = vpack.c.b16 %v664, %v664
      %v697 = vpack.c.b16 %v665, %v665
      %v698 = vpack.c.b16 %v666, %v666
      %v699 = vpack.c.b16 %v667, %v667
      %v700 = vpack.c.b16 %v668, %v668
      %v701 = vpack.c.b16 %v669, %v669
      %v702 = vpack.c.b16 %v670, %v670
      %v703 = vpack.c.b16 %v671, %v671
      %v704 = vpack.c.b16 %v672, %v672
      %v705 = vpack.c.b16 %v673, %v673
      %v706 = vpack.c.b16 %v674, %v674
      %v707 = vpack.c.b16 %v675, %v675
      %v708 = vpack.c.b16 %v676, %v676
      %v709 = vpack.c.b16 %v677, %v677
      %v710 = vpack.c.b16 %v678, %v678
      %v711 = vpack.c.b16 %v679, %v679
      %v712 = vpack.c.b16 %v680, %v680
      %v713 = vpack.c.b16 %v681, %v681
      %v714 = vpack.c.b16 %v682, %v682
      %v715 = vpack.c.b16 %v683, %v683
      %v716 = vpack.c.b16 %v684, %v684
      %v717 = vpack.c.b16 %v685, %v685
      %vm750 = vcmask 125952
      %751 = vst.msk [vmem:[%s172] sm:$0xf] %vm750, %v686
      %752 = vst.msk [vmem:[%s172 + $0x4] sm:$0xf] %vm750, %v687
      %753 = vst.msk [vmem:[%s172 + $0x8] sm:$0xf] %vm750, %v688
      %754 = vst.msk [vmem:[%s172 + $0xc] sm:$0xf] %vm750, %v689
      %755 = vst.msk [vmem:[%s172 + $0x10] sm:$0xf] %vm750, %v690
      %756 = vst.msk [vmem:[%s172 + $0x14] sm:$0xf] %vm750, %v691
      %757 = vst.msk [vmem:[%s172 + $0x18] sm:$0xf] %vm750, %v692
      %758 = vst.msk [vmem:[%s172 + $0x1c] sm:$0xf] %vm750, %v693
      %759 = vst.msk [vmem:[%s172 + $0x20] sm:$0xf] %vm750, %v694
      %760 = vst.msk [vmem:[%s172 + $0x24] sm:$0xf] %vm750, %v695
      %761 = vst.msk [vmem:[%s172 + $0x28] sm:$0xf] %vm750, %v696
      %762 = vst.msk [vmem:[%s172 + $0x2c] sm:$0xf] %vm750, %v697
      %763 = vst.msk [vmem:[%s172 + $0x30] sm:$0xf] %vm750, %v698
      %764 = vst.msk [vmem:[%s172 + $0x34] sm:$0xf] %vm750, %v699
      %765 = vst.msk [vmem:[%s172 + $0x38] sm:$0xf] %vm750, %v700
      %766 = vst.msk [vmem:[%s172 + $0x3c] sm:$0xf] %vm750, %v701
      %767 = vst.msk [vmem:[%s172 + $0x40] sm:$0xf] %vm750, %v702
      %768 = vst.msk [vmem:[%s172 + $0x44] sm:$0xf] %vm750, %v703
      %769 = vst.msk [vmem:[%s172 + $0x48] sm:$0xf] %vm750, %v704
      %770 = vst.msk [vmem:[%s172 + $0x4c] sm:$0xf] %vm750, %v705
      %771 = vst.msk [vmem:[%s172 + $0x50] sm:$0xf] %vm750, %v706
      %772 = vst.msk [vmem:[%s172 + $0x54] sm:$0xf] %vm750, %v707
      %773 = vst.msk [vmem:[%s172 + $0x58] sm:$0xf] %vm750, %v708
      %774 = vst.msk [vmem:[%s172 + $0x5c] sm:$0xf] %vm750, %v709
      %775 = vst.msk [vmem:[%s172 + $0x60] sm:$0xf] %vm750, %v710
      %776 = vst.msk [vmem:[%s172 + $0x64] sm:$0xf] %vm750, %v711
      %777 = vst.msk [vmem:[%s172 + $0x68] sm:$0xf] %vm750, %v712
      %778 = vst.msk [vmem:[%s172 + $0x6c] sm:$0xf] %vm750, %v713
      %779 = vst.msk [vmem:[%s172 + $0x70] sm:$0xf] %vm750, %v714
      %780 = vst.msk [vmem:[%s172 + $0x74] sm:$0xf] %vm750, %v715
      %781 = vst.msk [vmem:[%s172 + $0x78] sm:$0xf] %vm750, %v716
      %782 = vst.msk [vmem:[%s172 + $0x7c] sm:$0xf] %vm750, %v717
      %s783 = smul.u32 32, %s14
      %p784 = scmp.lt.s32.totalorder %s783, 63
      %s785 = scalar_select %p784, %s783, 63
      %s786 = smul.addr %s785, 4
      %s787 = scalar_lea.vmem %s3, %s786
      // Predicated region
      $region33: #{convnet_cifar10_forward.4} parent=31 // pred_check
        %p788 = pneg %p100
      $region34: #{convnet_cifar10_forward.4} parent=31 // pred_check_branch
        %790 = sbr.rel (%p788) target = $region36
      $region35: #{convnet_cifar10_forward.4} parent=31 // pred_region
        %s791 = smul.u32 32, %s14
      $region36: #{convnet_cifar10_forward.4} parent=31 // pred_fallthru
        _
    $region32: #{convnet_cifar10_forward.4} parent=5 // pred_fallthru
      _
    %p792 = scmp.le.s32.totalorder 2, %s9
    // Predicated region
    $region37: #{convnet_cifar10_forward.4} parent=5 // pred_check
      %p793 = pneg %p792
    $region38: #{convnet_cifar10_forward.4} parent=5 // pred_check_branch
      %795 = sbr.rel (%p793) target = $region40
    $region39: #{convnet_cifar10_forward.4} parent=5 // pred_region
      %s796 = ssub.s32 %s9, 2
      // Predicated region
      $region41: #{convnet_cifar10_forward.4} parent=39 // pred_check
        %p797 = pneg %p106
      $region42: #{convnet_cifar10_forward.4} parent=39 // pred_check_branch
        %799 = sbr.rel (%p797) target = $region44
      $region43: #{convnet_cifar10_forward.4} parent=39 // pred_region
        %s800 = smul.u32 32, %s15
        %p801 = scmp.lt.s32.totalorder %s800, 63
        %s802 = scalar_select %p801, %s800, 63
        %s803 = smul.addr %s802, 4
        %s804 = scalar_lea.vmem %s3, %s803
      $region44: #{convnet_cifar10_forward.4} parent=39 // pred_fallthru
        _
    $region40: #{convnet_cifar10_forward.4} parent=5 // pred_fallthru
      _
  $region6: #{convnet_cifar10_forward.4} parent=0 // loop_footer
    %s13 = sadd.s32 1, %s9
  $region7: #{convnet_cifar10_forward.4} parent=0 // loop_footer_branch
    %8 = sbr.rel target = $region3
  $region8: #{convnet_cifar10_forward.4} parent=0 // loop_exit
    _

// kernel: convnet_cifar10_forward.5
$region0: #{convnet_cifar10_forward.5}
  #allocation0 [shape = 'u32[]', space=smem, size = 0x4, offset = 0x4, fixed_abs, tag = 'smem constant byte address 0x4 - core index']
  #allocation1 [shape = 'u32[144,128]{1,0:T(1,128)}', space=vmem, size = 0x12000, scoped, tag = 'internal scratch']
  %s0 = inlined_call_operand.vmem [shape: bf16[128,144], index: 0, kind: input, shape index: {}]
  %s1 = inlined_call_operand.vmem [shape: bf16[144,32], index: 1, kind: input, shape index: {}]
  %s2 = inlined_call_operand.vmem [shape: f32[1,32], index: 2, kind: input, shape index: {}]
  %s3 = inlined_call_operand.vmem [shape: f32[1,32], index: 3, kind: input, shape index: {}]
  %s4 = inlined_call_operand.vmem [shape: f32[1,32], index: 4, kind: input, shape index: {}]
  %s5 = inlined_call_operand.vmem [shape: bf16[128,32], index: 5, kind: output, shape index: {}]
  %s6 = sld [smem:[#allocation0]]
  $region30: #{convnet_cifar10_forward.5} parent=0
    _
  %s8 = ssub.s32 1, %s6
  %s9 = scalar_select 0, %s8, %s6
  // Predicated region
  $region2: #{convnet_cifar10_forward.5} parent=0 // pred_check
    _
  $region3: #{convnet_cifar10_forward.5} parent=0 // pred_check_branch
    %11 = sbr.rel (0) target = $region5
  $region4: #{convnet_cifar10_forward.5} parent=0 // pred_region
    _
  $region5: #{convnet_cifar10_forward.5} parent=0 // pred_fallthru
    _
  // Predicated region
  $region6: #{convnet_cifar10_forward.5} parent=0 // pred_check
    _
  $region7: #{convnet_cifar10_forward.5} parent=0 // pred_check_branch
    %13 = sbr.rel (0) target = $region9
  $region8: #{convnet_cifar10_forward.5} parent=0 // pred_region
    _
  $region9: #{convnet_cifar10_forward.5} parent=0 // pred_fallthru
    _
  // Predicated region
  $region10: #{convnet_cifar10_forward.5} parent=0 // pred_check
    _
  $region11: #{convnet_cifar10_forward.5} parent=0 // pred_check_branch
    %15 = sbr.rel (0) target = $region13
  $region12: #{convnet_cifar10_forward.5} parent=0 // pred_region
    _
  $region13: #{convnet_cifar10_forward.5} parent=0 // pred_fallthru
    _
  // Predicated region
  $region14: #{convnet_cifar10_forward.5} parent=0 // pred_check
    _
  $region15: #{convnet_cifar10_forward.5} parent=0 // pred_check_branch
    %17 = sbr.rel (0) target = $region17
  $region16: #{convnet_cifar10_forward.5} parent=0 // pred_region
    _
  $region17: #{convnet_cifar10_forward.5} parent=0 // pred_fallthru
    _
  // Predicated region
  $region18: #{convnet_cifar10_forward.5} parent=0 // pred_check
    _
  $region19: #{convnet_cifar10_forward.5} parent=0 // pred_check_branch
    %19 = sbr.rel (0) target = $region21
  $region20: #{convnet_cifar10_forward.5} parent=0 // pred_region
    _
  $region21: #{convnet_cifar10_forward.5} parent=0 // pred_fallthru
    _
  %v21 = vld [vmem:[%s0] sm:$0xff]
  %v22 = vld [vmem:[%s0 + $0x8] sm:$0xff]
  %v23 = vld [vmem:[%s0 + $0x10] sm:$0xff]
  %v24 = vld [vmem:[%s0 + $0x18] sm:$0xff]
  %v25 = vld [vmem:[%s0 + $0x20] sm:$0xff]
  %v26 = vld [vmem:[%s0 + $0x28] sm:$0xff]
  %v27 = vld [vmem:[%s0 + $0x30] sm:$0xff]
  %v28 = vld [vmem:[%s0 + $0x38] sm:$0xff]
  %v29 = vld [vmem:[%s0 + $0x40] sm:$0xff]
  %v30 = vld [vmem:[%s0 + $0x48] sm:$0xff]
  %v31 = vld [vmem:[%s0 + $0x50] sm:$0xff]
  %v32 = vld [vmem:[%s0 + $0x58] sm:$0xff]
  %v33 = vld [vmem:[%s0 + $0x60] sm:$0xff]
  %v34 = vld [vmem:[%s0 + $0x68] sm:$0xff]
  %v35 = vld [vmem:[%s0 + $0x70] sm:$0xff]
  %v36 = vld [vmem:[%s0 + $0x78] sm:$0xff]
  %v37 = vld [vmem:[%s1] sm:$0xf]
  %v38 = vld [vmem:[%s1 + $0x4] sm:$0xf]
  %v39 = vld [vmem:[%s1 + $0x8] sm:$0xf]
  %v40 = vld [vmem:[%s1 + $0xc] sm:$0xf]
  %v41 = vld [vmem:[%s1 + $0x10] sm:$0xf]
  %v42 = vld [vmem:[%s1 + $0x14] sm:$0xf]
  %v43 = vld [vmem:[%s1 + $0x18] sm:$0xf]
  %v44 = vld [vmem:[%s1 + $0x1c] sm:$0xf]
  %v45 = vld [vmem:[%s1 + $0x20] sm:$0xf]
  %v46 = vld [vmem:[%s1 + $0x24] sm:$0xf]
  %v47 = vld [vmem:[%s1 + $0x28] sm:$0xf]
  %v48 = vld [vmem:[%s1 + $0x2c] sm:$0xf]
  %v49 = vld [vmem:[%s1 + $0x30] sm:$0xf]
  %v50 = vld [vmem:[%s1 + $0x34] sm:$0xf]
  %v51 = vld [vmem:[%s1 + $0x38] sm:$0xf]
  %v52 = vld [vmem:[%s1 + $0x3c] sm:$0xf]
  %v53 = vld [vmem:[%s1 + $0x40] sm:$0xf]
  %v54 = vld [vmem:[%s1 + $0x44] sm:$0xf]
  %v55 = vld [vmem:[%s2] sm:$0x1]
  %v57 = vlaneseq
  %v58 = vshrl.u32 %v57, 7
  %v59 = vsub.s32 0, %v58
  %v60 = vrot.slane %v55, %v59
  %v78 = vunpack.c.l.b16 %v21
  %v79 = vunpack.c.h.b16 %v21
  %v80 = vunpack.c.l.b16 %v22
  %v81 = vunpack.c.h.b16 %v22
  %v82 = vunpack.c.l.b16 %v23
  %v83 = vunpack.c.h.b16 %v23
  %v84 = vunpack.c.l.b16 %v24
  %v85 = vunpack.c.h.b16 %v24
  %v86 = vunpack.c.l.b16 %v25
  %v87 = vunpack.c.h.b16 %v25
  %v88 = vunpack.c.l.b16 %v26
  %v89 = vunpack.c.h.b16 %v26
  %v90 = vunpack.c.l.b16 %v27
  %v91 = vunpack.c.h.b16 %v27
  %v92 = vunpack.c.l.b16 %v28
  %v93 = vunpack.c.h.b16 %v28
  %v94 = vunpack.c.l.b16 %v29
  %v95 = vunpack.c.h.b16 %v29
  %v96 = vunpack.c.l.b16 %v30
  %v97 = vunpack.c.h.b16 %v30
  %v98 = vunpack.c.l.b16 %v31
  %v99 = vunpack.c.h.b16 %v31
  %v100 = vunpack.c.l.b16 %v32
  %v101 = vunpack.c.h.b16 %v32
  %v102 = vunpack.c.l.b16 %v33
  %v103 = vunpack.c.h.b16 %v33
  %v104 = vunpack.c.l.b16 %v34
  %v105 = vunpack.c.h.b16 %v34
  %v106 = vunpack.c.l.b16 %v35
  %v107 = vunpack.c.h.b16 %v35
  %v108 = vunpack.c.l.b16 %v36
  %v109 = vunpack.c.h.b16 %v36
  %v110 = vpack.c.b16 %v80, %v78
  %v111 = vpack.c.b16 %v81, %v79
  %v112 = vpack.c.b16 %v84, %v82
  %v113 = vpack.c.b16 %v85, %v83
  %v114 = vpack.c.b16 %v88, %v86
  %v115 = vpack.c.b16 %v89, %v87
  %v116 = vpack.c.b16 %v92, %v90
  %v117 = vpack.c.b16 %v93, %v91
  %v118 = vpack.c.b16 %v96, %v94
  %v119 = vpack.c.b16 %v97, %v95
  %v120 = vpack.c.b16 %v100, %v98
  %v121 = vpack.c.b16 %v101, %v99
  %v122 = vpack.c.b16 %v104, %v102
  %v123 = vpack.c.b16 %v105, %v103
  %v124 = vpack.c.b16 %v108, %v106
  %v125 = vpack.c.b16 %v109, %v107
  %v152 = vunpack.c.l.b16 %v37
  %v153 = vunpack.c.l.b16 %v38
  %v154 = vunpack.c.l.b16 %v39
  %v155 = vunpack.c.l.b16 %v40
  %v156 = vunpack.c.l.b16 %v41
  %v157 = vunpack.c.l.b16 %v42
  %v158 = vunpack.c.l.b16 %v43
  %v159 = vunpack.c.l.b16 %v44
  %v160 = vunpack.c.l.b16 %v45
  %v161 = vunpack.c.l.b16 %v46
  %v162 = vunpack.c.l.b16 %v47
  %v163 = vunpack.c.l.b16 %v48
  %v164 = vunpack.c.l.b16 %v49
  %v165 = vunpack.c.l.b16 %v50
  %v166 = vunpack.c.l.b16 %v51
  %v167 = vunpack.c.l.b16 %v52
  %v168 = vunpack.c.l.b16 %v53
  %v169 = vunpack.c.l.b16 %v54
  %v170 = vpack.c.b16 %v153, %v152
  %v171 = vpack.c.b16 %v155, %v154
  %v172 = vpack.c.b16 %v157, %v156
  %v173 = vpack.c.b16 %v159, %v158
  %v174 = vpack.c.b16 %v161, %v160
  %v175 = vpack.c.b16 %v163, %v162
  %v176 = vpack.c.b16 %v165, %v164
  %v177 = vpack.c.b16 %v167, %v166
  %v178 = vpack.c.b16 %v169, %v168
  %vm188 = vcmask 130048
  %v190 = vsel %vm188, %v111, 0
  %v193 = vsel %vm188, %v113, 0
  %v196 = vsel %vm188, %v115, 0
  %v199 = vsel %vm188, %v117, 0
  %v202 = vsel %vm188, %v119, 0
  %v205 = vsel %vm188, %v121, 0
  %v208 = vsel %vm188, %v123, 0
  %v211 = vsel %vm188, %v125, 0
  %213 = vmatprep.subr.bf16.mxu0 0
  %214 = vmatpush1.bf16.msra.mxu0 %v170
  %215 = vmatprep.subr.bf16.mxu0 0
  %216 = vmatpush1.bf16.msra.mxu0 %v171
  %217 = vmatprep.subr.bf16.mxu0 0
  %218 = vmatpush1.bf16.msra.mxu0 %v172
  %219 = vmatprep.subr.bf16.mxu0 0
  %220 = vmatpush1.bf16.msra.mxu0 %v173
  %221 = vmatprep.subr.bf16.mxu0 0
  %222 = vmatpush1.bf16.msra.mxu0 %v174
  %223 = vmatprep.subr.bf16.mxu0 0
  %224 = vmatpush1.bf16.msra.mxu0 %v175
  %225 = vmatprep.subr.bf16.mxu0 0
  %226 = vmatpush1.bf16.msra.mxu0 %v176
  %227 = vmatprep.subr.bf16.mxu0 0
  %228 = vmatpush1.bf16.msra.mxu0 %v177
  %229 = vmatprep.subr.bf16.mxu0 0
  %230 = vmatpush1.bf16.msra.mxu0 %v178
  %231 = vmatprep.subr.bf16.mxu0 0
  %232 = vmatpush1.bf16.msra.mxu0 0
  %233 = vmatprep.subr.bf16.mxu0 0
  %234 = vmatpush1.bf16.msra.mxu0 0
  %235 = vmatprep.subr.bf16.mxu0 0
  %236 = vmatpush1.bf16.msra.mxu0 0
  %237 = vmatprep.subr.bf16.mxu0 0
  %238 = vmatpush1.bf16.msra.mxu0 0
  %239 = vmatprep.subr.bf16.mxu0 0
  %240 = vmatpush1.bf16.msra.mxu0 0
  %241 = vmatprep.subr.bf16.mxu0 0
  %242 = vmatpush1.bf16.msra.mxu0 0
  %243 = vmatprep.subr.bf16.mxu0 0
  %244 = vmatpush1.bf16.msra.mxu0 0
  %245 = vmatprep.mubr.bf16.mxu0 %v190
  %246 = vmatmul.mubr.bf16.gmra.mrb[0].mxu0 %v110
  %v247 = vpop.f32.mrb[0].mxu0
  %v248 = vadd.f32 %v60, %v247
  %v249 = vpop.f32.mrb[0].mxu0
  %v250 = vpop.f32.mrb[0].mxu0
  %v251 = vadd.f32 %v60, %v250
  %v252 = vpop.f32.mrb[0].mxu0
  %253 = vmatprep.mubr.bf16.mxu0 %v193
  %254 = vmatmul.mubr.bf16.gmra.mrb[0].mxu0 %v112
  %v255 = vpop.f32.mrb[0].mxu0
  %v256 = vadd.f32 %v60, %v255
  %v257 = vpop.f32.mrb[0].mxu0
  %v258 = vpop.f32.mrb[0].mxu0
  %v259 = vadd.f32 %v60, %v258
  %v260 = vpop.f32.mrb[0].mxu0
  %261 = vmatprep.mubr.bf16.mxu0 %v196
  %262 = vmatmul.mubr.bf16.gmra.mrb[0].mxu0 %v114
  %v263 = vpop.f32.mrb[0].mxu0
  %v264 = vadd.f32 %v60, %v263
  %v265 = vpop.f32.mrb[0].mxu0
  %v266 = vpop.f32.mrb[0].mxu0
  %v267 = vadd.f32 %v60, %v266
  %v268 = vpop.f32.mrb[0].mxu0
  %269 = vmatprep.mubr.bf16.mxu0 %v199
  %270 = vmatmul.mubr.bf16.gmra.mrb[0].mxu0 %v116
  %v271 = vpop.f32.mrb[0].mxu0
  %v272 = vadd.f32 %v60, %v271
  %v273 = vpop.f32.mrb[0].mxu0
  %v274 = vpop.f32.mrb[0].mxu0
  %v275 = vadd.f32 %v60, %v274
  %v276 = vpop.f32.mrb[0].mxu0
  %277 = vmatprep.mubr.bf16.mxu0 %v202
  %278 = vmatmul.mubr.bf16.gmra.mrb[0].mxu0 %v118
  %v279 = vpop.f32.mrb[0].mxu0
  %v280 = vadd.f32 %v60, %v279
  %v281 = vpop.f32.mrb[0].mxu0
  %v282 = vpop.f32.mrb[0].mxu0
  %v283 = vadd.f32 %v60, %v282
  %v284 = vpop.f32.mrb[0].mxu0
  %285 = vmatprep.mubr.bf16.mxu0 %v205
  %286 = vmatmul.mubr.bf16.gmra.mrb[0].mxu0 %v120
  %v287 = vpop.f32.mrb[0].mxu0
  %v288 = vadd.f32 %v60, %v287
  %v289 = vpop.f32.mrb[0].mxu0
  %v290 = vpop.f32.mrb[0].mxu0
  %v291 = vadd.f32 %v60, %v290
  %v292 = vpop.f32.mrb[0].mxu0
  %293 = vmatprep.mubr.bf16.mxu0 %v208
  %294 = vmatmul.mubr.bf16.gmra.mrb[0].mxu0 %v122
  %v295 = vpop.f32.mrb[0].mxu0
  %v296 = vadd.f32 %v60, %v295
  %v297 = vpop.f32.mrb[0].mxu0
  %v298 = vpop.f32.mrb[0].mxu0
  %v299 = vadd.f32 %v60, %v298
  %v300 = vpop.f32.mrb[0].mxu0
  %301 = vmatprep.mubr.bf16.mxu0 %v211
  %302 = vmatmul.mubr.bf16.gmra.mrb[0].mxu0 %v124
  %v303 = vpop.f32.mrb[0].mxu0
  %v304 = vadd.f32 %v60, %v303
  %v305 = vpop.f32.mrb[0].mxu0
  %v306 = vpop.f32.mrb[0].mxu0
  %v307 = vadd.f32 %v60, %v306
  %v308 = vpop.f32.mrb[0].mxu0
  %309 = vdwg.mxu0
  %vm310 = vcmp.ge.f32.partialorder %v248, 0.0
  %vm311 = vcmp.ge.f32.partialorder %v251, 0.0
  %vm312 = vcmp.ge.f32.partialorder %v256, 0.0
  %vm313 = vcmp.ge.f32.partialorder %v259, 0.0
  %vm314 = vcmp.ge.f32.partialorder %v264, 0.0
  %vm315 = vcmp.ge.f32.partialorder %v267, 0.0
  %vm316 = vcmp.ge.f32.partialorder %v272, 0.0
  %vm317 = vcmp.ge.f32.partialorder %v275, 0.0
  %vm318 = vcmp.ge.f32.partialorder %v280, 0.0
  %vm319 = vcmp.ge.f32.partialorder %v283, 0.0
  %vm320 = vcmp.ge.f32.partialorder %v288, 0.0
  %vm321 = vcmp.ge.f32.partialorder %v291, 0.0
  %vm322 = vcmp.ge.f32.partialorder %v296, 0.0
  %vm323 = vcmp.ge.f32.partialorder %v299, 0.0
  %vm324 = vcmp.ge.f32.partialorder %v304, 0.0
  %vm325 = vcmp.ge.f32.partialorder %v307, 0.0
  %v326 = vmul.f32 %v248, 0.2
  %v327 = vmul.f32 %v251, 0.2
  %v328 = vmul.f32 %v256, 0.2
  %v329 = vmul.f32 %v259, 0.2
  %v330 = vmul.f32 %v264, 0.2
  %v331 = vmul.f32 %v267, 0.2
  %v332 = vmul.f32 %v272, 0.2
  %v333 = vmul.f32 %v275, 0.2
  %v334 = vmul.f32 %v280, 0.2
  %v335 = vmul.f32 %v283, 0.2
  %v336 = vmul.f32 %v288, 0.2
  %v337 = vmul.f32 %v291, 0.2
  %v338 = vmul.f32 %v296, 0.2
  %v339 = vmul.f32 %v299, 0.2
  %v340 = vmul.f32 %v304, 0.2
  %v341 = vmul.f32 %v307, 0.2
  %v342 = vsel %vm310, %v248, %v326
  %v343 = vsel %vm311, %v251, %v327
  %v344 = vsel %vm312, %v256, %v328
  %v345 = vsel %vm313, %v259, %v329
  %v346 = vsel %vm314, %v264, %v330
  %v347 = vsel %vm315, %v267, %v331
  %v348 = vsel %vm316, %v272, %v332
  %v349 = vsel %vm317, %v275, %v333
  %v350 = vsel %vm318, %v280, %v334
  %v351 = vsel %vm319, %v283, %v335
  %v352 = vsel %vm320, %v288, %v336
  %v353 = vsel %vm321, %v291, %v337
  %v354 = vsel %vm322, %v296, %v338
  %v355 = vsel %vm323, %v299, %v339
  %v356 = vsel %vm324, %v304, %v340
  %v357 = vsel %vm325, %v307, %v341
  %vm358 = vcmask 261120
  %v359 = vsel %vm358, %v342, 0.0
  %v360 = vsel %vm358, %v343, 0.0
  %v361 = vadd.f32 %v359, %v360
  %v362 = vsel %vm358, %v344, 0.0
  %v363 = vadd.f32 %v361, %v362
  %v364 = vsel %vm358, %v345, 0.0
  %v365 = vadd.f32 %v363, %v364
  %v366 = vsel %vm358, %v346, 0.0
  %v367 = vadd.f32 %v365, %v366
  %v368 = vsel %vm358, %v347, 0.0
  %v369 = vadd.f32 %v367, %v368
  %v370 = vsel %vm358, %v348, 0.0
  %v371 = vadd.f32 %v369, %v370
  %v372 = vsel %vm358, %v349, 0.0
  %v373 = vadd.f32 %v371, %v372
  %v374 = vsel %vm358, %v350, 0.0
  %v375 = vadd.f32 %v373, %v374
  %v376 = vsel %vm358, %v351, 0.0
  %v377 = vadd.f32 %v375, %v376
  %v378 = vsel %vm358, %v352, 0.0
  %v379 = vadd.f32 %v377, %v378
  %v380 = vsel %vm358, %v353, 0.0
  %v381 = vadd.f32 %v379, %v380
  %v382 = vsel %vm358, %v354, 0.0
  %v383 = vadd.f32 %v381, %v382
  %v384 = vsel %vm358, %v355, 0.0
  %v385 = vadd.f32 %v383, %v384
  %v386 = vsel %vm358, %v356, 0.0
  %v387 = vadd.f32 %v385, %v386
  %v388 = vsel %vm358, %v357, 0.0
  %v389 = vadd.f32 %v387, %v388
  %v390 = vrot.slane %v389, 4
  %v391 = vadd.f32 %v389, %v390
  %v392 = vrot.slane %v391, 2
  %v393 = vadd.f32 %v391, %v392
  %v394 = vrot.slane %v393, 1
  %v395 = vadd.f32 %v393, %v394
  %v396 = vmul.f32 %v395, 0.0078125
  %v397 = vmul.f32 %v342, %v342
  %v398 = vmul.f32 %v343, %v343
  %v399 = vmul.f32 %v344, %v344
  %v400 = vmul.f32 %v345, %v345
  %v401 = vmul.f32 %v346, %v346
  %v402 = vmul.f32 %v347, %v347
  %v403 = vmul.f32 %v348, %v348
  %v404 = vmul.f32 %v349, %v349
  %v405 = vmul.f32 %v350, %v350
  %v406 = vmul.f32 %v351, %v351
  %v407 = vmul.f32 %v352, %v352
  %v408 = vmul.f32 %v353, %v353
  %v409 = vmul.f32 %v354, %v354
  %v410 = vmul.f32 %v355, %v355
  %v411 = vmul.f32 %v356, %v356
  %v412 = vmul.f32 %v357, %v357
  %v413 = vsel %vm358, %v397, 0.0
  %v414 = vsel %vm358, %v398, 0.0
  %v415 = vadd.f32 %v413, %v414
  %v416 = vsel %vm358, %v399, 0.0
  %v417 = vadd.f32 %v415, %v416
  %v418 = vsel %vm358, %v400, 0.0
  %v419 = vadd.f32 %v417, %v418
  %v420 = vsel %vm358, %v401, 0.0
  %v421 = vadd.f32 %v419, %v420
  %v422 = vsel %vm358, %v402, 0.0
  %v423 = vadd.f32 %v421, %v422
  %v424 = vsel %vm358, %v403, 0.0
  %v425 = vadd.f32 %v423, %v424
  %v426 = vsel %vm358, %v404, 0.0
  %v427 = vadd.f32 %v425, %v426
  %v428 = vsel %vm358, %v405, 0.0
  %v429 = vadd.f32 %v427, %v428
  %v430 = vsel %vm358, %v406, 0.0
  %v431 = vadd.f32 %v429, %v430
  %v432 = vsel %vm358, %v407, 0.0
  %v433 = vadd.f32 %v431, %v432
  %v434 = vsel %vm358, %v408, 0.0
  %v435 = vadd.f32 %v433, %v434
  %v436 = vsel %vm358, %v409, 0.0
  %v437 = vadd.f32 %v435, %v436
  %v438 = vsel %vm358, %v410, 0.0
  %v439 = vadd.f32 %v437, %v438
  %v440 = vsel %vm358, %v411, 0.0
  %v441 = vadd.f32 %v439, %v440
  %v442 = vsel %vm358, %v412, 0.0
  %v443 = vadd.f32 %v441, %v442
  %v444 = vrot.slane %v443, 4
  %v445 = vadd.f32 %v443, %v444
  %v446 = vrot.slane %v445, 2
  %v447 = vadd.f32 %v445, %v446
  %v448 = vrot.slane %v447, 1
  %v449 = vadd.f32 %v447, %v448
  %v450 = vmul.f32 %v449, 0.0078125
  %v451 = vmul.f32 %v396, %v396
  %v452 = vsub.f32 %v450, %v451
  %v453 = vsub.f32 %v342, %v396
  %v454 = vsub.f32 %v343, %v396
  %v455 = vsub.f32 %v344, %v396
  %v456 = vsub.f32 %v345, %v396
  %v457 = vsub.f32 %v346, %v396
  %v458 = vsub.f32 %v347, %v396
  %v459 = vsub.f32 %v348, %v396
  %v460 = vsub.f32 %v349, %v396
  %v461 = vsub.f32 %v350, %v396
  %v462 = vsub.f32 %v351, %v396
  %v463 = vsub.f32 %v352, %v396
  %v464 = vsub.f32 %v353, %v396
  %v465 = vsub.f32 %v354, %v396
  %v466 = vsub.f32 %v355, %v396
  %v467 = vsub.f32 %v356, %v396
  %v468 = vsub.f32 %v357, %v396
  %v469 = vadd.f32 %v452, 0.8
  %v470 = vrsqrt.pop %v469
  %v471 = vmul.f32 %v453, %v470
  %v472 = vmul.f32 %v454, %v470
  %v473 = vmul.f32 %v455, %v470
  %v474 = vmul.f32 %v456, %v470
  %v475 = vmul.f32 %v457, %v470
  %v476 = vmul.f32 %v458, %v470
  %v477 = vmul.f32 %v459, %v470
  %v478 = vmul.f32 %v460, %v470
  %v479 = vmul.f32 %v461, %v470
  %v480 = vmul.f32 %v462, %v470
  %v481 = vmul.f32 %v463, %v470
  %v482 = vmul.f32 %v464, %v470
  %v483 = vmul.f32 %v465, %v470
  %v484 = vmul.f32 %v466, %v470
  %v485 = vmul.f32 %v467, %v470
  %v486 = vmul.f32 %v468, %v470
  %v487 = vld [vmem:[%s3] sm:$0x1]
  %v489 = vlaneseq
  %v490 = vshrl.u32 %v489, 7
  %v491 = vsub.s32 0, %v490
  %v492 = vrot.slane %v487, %v491
  %v494 = vmul.f32 %v471, %v492
  %v495 = vmul.f32 %v472, %v492
  %v496 = vmul.f32 %v473, %v492
  %v497 = vmul.f32 %v474, %v492
  %v498 = vmul.f32 %v475, %v492
  %v499 = vmul.f32 %v476, %v492
  %v500 = vmul.f32 %v477, %v492
  %v501 = vmul.f32 %v478, %v492
  %v502 = vmul.f32 %v479, %v492
  %v503 = vmul.f32 %v480, %v492
  %v504 = vmul.f32 %v481, %v492
  %v505 = vmul.f32 %v482, %v492
  %v506 = vmul.f32 %v483, %v492
  %v507 = vmul.f32 %v484, %v492
  %v508 = vmul.f32 %v485, %v492
  %v509 = vmul.f32 %v486, %v492
  %v510 = vld [vmem:[%s4] sm:$0x1]
  %v512 = vlaneseq
  %v513 = vshrl.u32 %v512, 7
  %v514 = vsub.s32 0, %v513
  %v515 = vrot.slane %v510, %v514
  %v517 = vadd.f32 %v494, %v515
  %v518 = vadd.f32 %v495, %v515
  %v519 = vadd.f32 %v496, %v515
  %v520 = vadd.f32 %v497, %v515
  %v521 = vadd.f32 %v498, %v515
  %v522 = vadd.f32 %v499, %v515
  %v523 = vadd.f32 %v500, %v515
  %v524 = vadd.f32 %v501, %v515
  %v525 = vadd.f32 %v502, %v515
  %v526 = vadd.f32 %v503, %v515
  %v527 = vadd.f32 %v504, %v515
  %v528 = vadd.f32 %v505, %v515
  %v529 = vadd.f32 %v506, %v515
  %v530 = vadd.f32 %v507, %v515
  %v531 = vadd.f32 %v508, %v515
  %v532 = vadd.f32 %v509, %v515
  %v533 = vpack.c.bf16 %v518, %v517
  %v534 = vpack.c.bf16 %v520, %v519
  %v535 = vpack.c.bf16 %v522, %v521
  %v536 = vpack.c.bf16 %v524, %v523
  %v537 = vpack.c.bf16 %v526, %v525
  %v538 = vpack.c.bf16 %v528, %v527
  %v539 = vpack.c.bf16 %v530, %v529
  %v540 = vpack.c.bf16 %v532, %v531
  %v549 = vunpack.c.l.b16 %v533
  %v550 = vunpack.c.h.b16 %v533
  %v551 = vunpack.c.l.b16 %v534
  %v552 = vunpack.c.h.b16 %v534
  %v553 = vunpack.c.l.b16 %v535
  %v554 = vunpack.c.h.b16 %v535
  %v555 = vunpack.c.l.b16 %v536
  %v556 = vunpack.c.h.b16 %v536
  %v557 = vunpack.c.l.b16 %v537
  %v558 = vunpack.c.h.b16 %v537
  %v559 = vunpack.c.l.b16 %v538
  %v560 = vunpack.c.h.b16 %v538
  %v561 = vunpack.c.l.b16 %v539
  %v562 = vunpack.c.h.b16 %v539
  %v563 = vunpack.c.l.b16 %v540
  %v564 = vunpack.c.h.b16 %v540
  %v565 = vpack.c.b16 %v549, %v549
  %v566 = vpack.c.b16 %v550, %v550
  %v567 = vpack.c.b16 %v551, %v551
  %v568 = vpack.c.b16 %v552, %v552
  %v569 = vpack.c.b16 %v553, %v553
  %v570 = vpack.c.b16 %v554, %v554
  %v571 = vpack.c.b16 %v555, %v555
  %v572 = vpack.c.b16 %v556, %v556
  %v573 = vpack.c.b16 %v557, %v557
  %v574 = vpack.c.b16 %v558, %v558
  %v575 = vpack.c.b16 %v559, %v559
  %v576 = vpack.c.b16 %v560, %v560
  %v577 = vpack.c.b16 %v561, %v561
  %v578 = vpack.c.b16 %v562, %v562
  %v579 = vpack.c.b16 %v563, %v563
  %v580 = vpack.c.b16 %v564, %v564
  %vm597 = vcmask 257024
  %598 = vst.msk [vmem:[%s5] sm:$0xf] %vm597, %v565
  %599 = vst.msk [vmem:[%s5 + $0x4] sm:$0xf] %vm597, %v566
  %600 = vst.msk [vmem:[%s5 + $0x8] sm:$0xf] %vm597, %v567
  %601 = vst.msk [vmem:[%s5 + $0xc] sm:$0xf] %vm597, %v568
  %602 = vst.msk [vmem:[%s5 + $0x10] sm:$0xf] %vm597, %v569
  %603 = vst.msk [vmem:[%s5 + $0x14] sm:$0xf] %vm597, %v570
  %604 = vst.msk [vmem:[%s5 + $0x18] sm:$0xf] %vm597, %v571
  %605 = vst.msk [vmem:[%s5 + $0x1c] sm:$0xf] %vm597, %v572
  %606 = vst.msk [vmem:[%s5 + $0x20] sm:$0xf] %vm597, %v573
  %607 = vst.msk [vmem:[%s5 + $0x24] sm:$0xf] %vm597, %v574
  %608 = vst.msk [vmem:[%s5 + $0x28] sm:$0xf] %vm597, %v575
  %609 = vst.msk [vmem:[%s5 + $0x2c] sm:$0xf] %vm597, %v576
  %610 = vst.msk [vmem:[%s5 + $0x30] sm:$0xf] %vm597, %v577
  %611 = vst.msk [vmem:[%s5 + $0x34] sm:$0xf] %vm597, %v578
  %612 = vst.msk [vmem:[%s5 + $0x38] sm:$0xf] %vm597, %v579
  %613 = vst.msk [vmem:[%s5 + $0x3c] sm:$0xf] %vm597, %v580
  // Predicated region
  $region22: #{convnet_cifar10_forward.5} parent=0 // pred_check
    _
  $region23: #{convnet_cifar10_forward.5} parent=0 // pred_check_branch
    %615 = sbr.rel (0) target = $region25
  $region24: #{convnet_cifar10_forward.5} parent=0 // pred_region
    _
  $region25: #{convnet_cifar10_forward.5} parent=0 // pred_fallthru
    _
  // Predicated region
  $region26: #{convnet_cifar10_forward.5} parent=0 // pred_check
    _
  $region27: #{convnet_cifar10_forward.5} parent=0 // pred_check_branch
    %617 = sbr.rel (0) target = $region29
  $region28: #{convnet_cifar10_forward.5} parent=0 // pred_region
    _
  $region29: #{convnet_cifar10_forward.5} parent=0 // pred_fallthru
    _

// kernel: convnet_cifar10_forward.6
$region0: #{convnet_cifar10_forward.6}
  #allocation0 [shape = 'u32[]', space=smem, size = 0x4, offset = 0x4, fixed_abs, tag = 'smem constant byte address 0x4 - core index']
  #allocation1 [shape = 'u32[144,128]{1,0:T(1,128)}', space=vmem, size = 0x12000, scoped, tag = 'internal scratch']
  %s0 = inlined_call_operand.vmem [shape: bf16[32,288], index: 0, kind: input, shape index: {}]
  %s1 = inlined_call_operand.vmem [shape: bf16[288,64], index: 1, kind: input, shape index: {}]
  %s2 = inlined_call_operand.vmem [shape: f32[1,64], index: 2, kind: input, shape index: {}]
  %s3 = inlined_call_operand.vmem [shape: f32[1,64], index: 3, kind: input, shape index: {}]
  %s4 = inlined_call_operand.vmem [shape: f32[1,64], index: 4, kind: input, shape index: {}]
  %s5 = inlined_call_operand.vmem [shape: bf16[32,64], index: 5, kind: output, shape index: {}]
  %s6 = sld [smem:[#allocation0]]
  $region30: #{convnet_cifar10_forward.6} parent=0
    _
  %s8 = ssub.s32 1, %s6
  %s9 = scalar_select 0, %s8, %s6
  // Predicated region
  $region2: #{convnet_cifar10_forward.6} parent=0 // pred_check
    _
  $region3: #{convnet_cifar10_forward.6} parent=0 // pred_check_branch
    %11 = sbr.rel (0) target = $region5
  $region4: #{convnet_cifar10_forward.6} parent=0 // pred_region
    _
  $region5: #{convnet_cifar10_forward.6} parent=0 // pred_fallthru
    _
  // Predicated region
  $region6: #{convnet_cifar10_forward.6} parent=0 // pred_check
    _
  $region7: #{convnet_cifar10_forward.6} parent=0 // pred_check_branch
    %13 = sbr.rel (0) target = $region9
  $region8: #{convnet_cifar10_forward.6} parent=0 // pred_region
    _
  $region9: #{convnet_cifar10_forward.6} parent=0 // pred_fallthru
    _
  // Predicated region
  $region10: #{convnet_cifar10_forward.6} parent=0 // pred_check
    _
  $region11: #{convnet_cifar10_forward.6} parent=0 // pred_check_branch
    %15 = sbr.rel (0) target = $region13
  $region12: #{convnet_cifar10_forward.6} parent=0 // pred_region
    _
  $region13: #{convnet_cifar10_forward.6} parent=0 // pred_fallthru
    _
  // Predicated region
  $region14: #{convnet_cifar10_forward.6} parent=0 // pred_check
    _
  $region15: #{convnet_cifar10_forward.6} parent=0 // pred_check_branch
    %17 = sbr.rel (0) target = $region17
  $region16: #{convnet_cifar10_forward.6} parent=0 // pred_region
    _
  $region17: #{convnet_cifar10_forward.6} parent=0 // pred_fallthru
    _
  // Predicated region
  $region18: #{convnet_cifar10_forward.6} parent=0 // pred_check
    _
  $region19: #{convnet_cifar10_forward.6} parent=0 // pred_check_branch
    %19 = sbr.rel (0) target = $region21
  $region20: #{convnet_cifar10_forward.6} parent=0 // pred_region
    _
  $region21: #{convnet_cifar10_forward.6} parent=0 // pred_fallthru
    _
  %v21 = vld [vmem:[%s0] sm:$0xff]
  %v22 = vld [vmem:[%s0 + $0x8] sm:$0xf]
  %v23 = vld [vmem:[%s0 + $0xc] sm:$0xff]
  %v24 = vld [vmem:[%s0 + $0x14] sm:$0xf]
  %v25 = vld [vmem:[%s0 + $0x18] sm:$0xff]
  %v26 = vld [vmem:[%s0 + $0x20] sm:$0xf]
  %v27 = vld [vmem:[%s0 + $0x24] sm:$0xff]
  %v28 = vld [vmem:[%s0 + $0x2c] sm:$0xf]
  %v29 = vld [vmem:[%s1] sm:$0xf]
  %v30 = vld [vmem:[%s1 + $0x4] sm:$0xf]
  %v31 = vld [vmem:[%s1 + $0x8] sm:$0xf]
  %v32 = vld [vmem:[%s1 + $0xc] sm:$0xf]
  %v33 = vld [vmem:[%s1 + $0x10] sm:$0xf]
  %v34 = vld [vmem:[%s1 + $0x14] sm:$0xf]
  %v35 = vld [vmem:[%s1 + $0x18] sm:$0xf]
  %v36 = vld [vmem:[%s1 + $0x1c] sm:$0xf]
  %v37 = vld [vmem:[%s1 + $0x20] sm:$0xf]
  %v38 = vld [vmem:[%s1 + $0x24] sm:$0xf]
  %v39 = vld [vmem:[%s1 + $0x28] sm:$0xf]
  %v40 = vld [vmem:[%s1 + $0x2c] sm:$0xf]
  %v41 = vld [vmem:[%s1 + $0x30] sm:$0xf]
  %v42 = vld [vmem:[%s1 + $0x34] sm:$0xf]
  %v43 = vld [vmem:[%s1 + $0x38] sm:$0xf]
  %v44 = vld [vmem:[%s1 + $0x3c] sm:$0xf]
  %v45 = vld [vmem:[%s1 + $0x40] sm:$0xf]
  %v46 = vld [vmem:[%s1 + $0x44] sm:$0xf]
  %v47 = vld [vmem:[%s1 + $0x48] sm:$0xf]
  %v48 = vld [vmem:[%s1 + $0x4c] sm:$0xf]
  %v49 = vld [vmem:[%s1 + $0x50] sm:$0xf]
  %v50 = vld [vmem:[%s1 + $0x54] sm:$0xf]
  %v51 = vld [vmem:[%s1 + $0x58] sm:$0xf]
  %v52 = vld [vmem:[%s1 + $0x5c] sm:$0xf]
  %v53 = vld [vmem:[%s1 + $0x60] sm:$0xf]
  %v54 = vld [vmem:[%s1 + $0x64] sm:$0xf]
  %v55 = vld [vmem:[%s1 + $0x68] sm:$0xf]
  %v56 = vld [vmem:[%s1 + $0x6c] sm:$0xf]
  %v57 = vld [vmem:[%s1 + $0x70] sm:$0xf]
  %v58 = vld [vmem:[%s1 + $0x74] sm:$0xf]
  %v59 = vld [vmem:[%s1 + $0x78] sm:$0xf]
  %v60 = vld [vmem:[%s1 + $0x7c] sm:$0xf]
  %v61 = vld [vmem:[%s1 + $0x80] sm:$0xf]
  %v62 = vld [vmem:[%s1 + $0x84] sm:$0xf]
  %v63 = vld [vmem:[%s1 + $0x88] sm:$0xf]
  %v64 = vld [vmem:[%s1 + $0x8c] sm:$0xf]
  %v65 = vld [vmem:[%s2] sm:$0x1]
  %v67 = vlaneseq
  %v68 = vshrl.u32 %v67, 7
  %v69 = vsub.s32 0, %v68
  %v70 = vrot.slane %v65, %v69
  %v80 = vunpack.c.l.b16 %v21
  %v81 = vunpack.c.h.b16 %v21
  %v82 = vunpack.c.l.b16 %v22
  %v83 = vunpack.c.l.b16 %v23
  %v84 = vunpack.c.h.b16 %v23
  %v85 = vunpack.c.l.b16 %v24
  %v86 = vunpack.c.l.b16 %v25
  %v87 = vunpack.c.h.b16 %v25
  %v88 = vunpack.c.l.b16 %v26
  %v89 = vunpack.c.l.b16 %v27
  %v90 = vunpack.c.h.b16 %v27
  %v91 = vunpack.c.l.b16 %v28
  %v92 = vpack.c.b16 %v83, %v80
  %v93 = vpack.c.b16 %v84, %v81
  %v94 = vpack.c.b16 %v85, %v82
  %v95 = vpack.c.b16 %v89, %v86
  %v96 = vpack.c.b16 %v90, %v87
  %v97 = vpack.c.b16 %v91, %v88
  %v138 = vunpack.c.l.b16 %v29
  %v139 = vunpack.c.l.b16 %v30
  %v140 = vunpack.c.l.b16 %v31
  %v141 = vunpack.c.l.b16 %v32
  %v142 = vunpack.c.l.b16 %v33
  %v143 = vunpack.c.l.b16 %v34
  %v144 = vunpack.c.l.b16 %v35
  %v145 = vunpack.c.l.b16 %v36
  %v146 = vunpack.c.l.b16 %v37
  %v147 = vunpack.c.l.b16 %v38
  %v148 = vunpack.c.l.b16 %v39
  %v149 = vunpack.c.l.b16 %v40
  %v150 = vunpack.c.l.b16 %v41
  %v151 = vunpack.c.l.b16 %v42
  %v152 = vunpack.c.l.b16 %v43
  %v153 = vunpack.c.l.b16 %v44
  %v154 = vunpack.c.l.b16 %v45
  %v155 = vunpack.c.l.b16 %v46
  %v156 = vunpack.c.l.b16 %v47
  %v157 = vunpack.c.l.b16 %v48
  %v158 = vunpack.c.l.b16 %v49
  %v159 = vunpack.c.l.b16 %v50
  %v160 = vunpack.c.l.b16 %v51
  %v161 = vunpack.c.l.b16 %v52
  %v162 = vunpack.c.l.b16 %v53
  %v163 = vunpack.c.l.b16 %v54
  %v164 = vunpack.c.l.b16 %v55
  %v165 = vunpack.c.l.b16 %v56
  %v166 = vunpack.c.l.b16 %v57
  %v167 = vunpack.c.l.b16 %v58
  %v168 = vunpack.c.l.b16 %v59
  %v169 = vunpack.c.l.b16 %v60
  %v170 = vunpack.c.l.b16 %v61
  %v171 = vunpack.c.l.b16 %v62
  %v172 = vunpack.c.l.b16 %v63
  %v173 = vunpack.c.l.b16 %v64
  %v174 = vpack.c.b16 %v139, %v138
  %v175 = vpack.c.b16 %v141, %v140
  %v176 = vpack.c.b16 %v143, %v142
  %v177 = vpack.c.b16 %v145, %v144
  %v178 = vpack.c.b16 %v147, %v146
  %v179 = vpack.c.b16 %v149, %v148
  %v180 = vpack.c.b16 %v151, %v150
  %v181 = vpack.c.b16 %v153, %v152
  %v182 = vpack.c.b16 %v155, %v154
  %v183 = vpack.c.b16 %v157, %v156
  %v184 = vpack.c.b16 %v159, %v158
  %v185 = vpack.c.b16 %v161, %v160
  %v186 = vpack.c.b16 %v163, %v162
  %v187 = vpack.c.b16 %v165, %v164
  %v188 = vpack.c.b16 %v167, %v166
  %v189 = vpack.c.b16 %v169, %v168
  %v190 = vpack.c.b16 %v171, %v170
  %v191 = vpack.c.b16 %v173, %v172
  %vm210 = vcmask 261120
  %v212 = vsel %vm210, %v94, 0
  %v215 = vsel %vm210, %v97, 0
  %217 = vmatprep.subr.bf16.mxu0 0
  %218 = vmatpush1.bf16.msra.mxu0 %v174
  %219 = vmatprep.subr.bf16.mxu0 0
  %220 = vmatpush1.bf16.msra.mxu0 %v175
  %221 = vmatprep.subr.bf16.mxu0 0
  %222 = vmatpush1.bf16.msra.mxu0 %v176
  %223 = vmatprep.subr.bf16.mxu0 0
  %224 = vmatpush1.bf16.msra.mxu0 %v177
  %225 = vmatprep.subr.bf16.mxu0 0
  %226 = vmatpush1.bf16.msra.mxu0 %v178
  %227 = vmatprep.subr.bf16.mxu0 0
  %228 = vmatpush1.bf16.msra.mxu0 %v179
  %229 = vmatprep.subr.bf16.mxu0 0
  %230 = vmatpush1.bf16.msra.mxu0 %v180
  %231 = vmatprep.subr.bf16.mxu0 0
  %232 = vmatpush1.bf16.msra.mxu0 %v181
  %233 = vmatprep.subr.bf16.mxu0 0
  %234 = vmatpush1.bf16.msra.mxu0 %v182
  %235 = vmatprep.subr.bf16.mxu0 0
  %236 = vmatpush1.bf16.msra.mxu0 %v183
  %237 = vmatprep.subr.bf16.mxu0 0
  %238 = vmatpush1.bf16.msra.mxu0 %v184
  %239 = vmatprep.subr.bf16.mxu0 0
  %240 = vmatpush1.bf16.msra.mxu0 %v185
  %241 = vmatprep.subr.bf16.mxu0 0
  %242 = vmatpush1.bf16.msra.mxu0 %v186
  %243 = vmatprep.subr.bf16.mxu0 0
  %244 = vmatpush1.bf16.msra.mxu0 %v187
  %245 = vmatprep.subr.bf16.mxu0 0
  %246 = vmatpush1.bf16.msra.mxu0 %v188
  %247 = vmatprep.subr.bf16.mxu0 0
  %248 = vmatpush1.bf16.msra.mxu0 %v189
  %249 = vmatprep.mubr.bf16.mxu0 %v93
  %250 = vmatmul.mubr.bf16.gmra.mrb[0].mxu0 %v92
  %v251 = vpop.f32.mrb[0].mxu0
  %v252 = vadd.f32 %v70, %v251
  %v253 = vpop.f32.mrb[0].mxu0
  %v254 = vpop.f32.mrb[0].mxu0
  %v255 = vadd.f32 %v70, %v254
  %v256 = vpop.f32.mrb[0].mxu0
  %257 = vmatprep.mubr.bf16.mxu0 %v96
  %258 = vmatmul.mubr.bf16.gmra.mrb[0].mxu0 %v95
  %v259 = vpop.f32.mrb[0].mxu0
  %v260 = vadd.f32 %v70, %v259
  %v261 = vpop.f32.mrb[0].mxu0
  %v262 = vpop.f32.mrb[0].mxu0
  %v263 = vadd.f32 %v70, %v262
  %v264 = vpop.f32.mrb[0].mxu0
  %265 = vdwg.mxu0
  %266 = vmatprep.subr.bf16.mxu0 0
  %267 = vmatpush1.bf16.msra.mxu0 %v190
  %268 = vmatprep.subr.bf16.mxu0 0
  %269 = vmatpush1.bf16.msra.mxu0 %v191
  %270 = vmatprep.subr.bf16.mxu0 0
  %271 = vmatpush1.bf16.msra.mxu0 0
  %272 = vmatprep.subr.bf16.mxu0 0
  %273 = vmatpush1.bf16.msra.mxu0 0
  %274 = vmatprep.subr.bf16.mxu0 0
  %275 = vmatpush1.bf16.msra.mxu0 0
  %276 = vmatprep.subr.bf16.mxu0 0
  %277 = vmatpush1.bf16.msra.mxu0 0
  %278 = vmatprep.subr.bf16.mxu0 0
  %279 = vmatpush1.bf16.msra.mxu0 0
  %280 = vmatprep.subr.bf16.mxu0 0
  %281 = vmatpush1.bf16.msra.mxu0 0
  %282 = vmatprep.subr.bf16.mxu0 0
  %283 = vmatpush1.bf16.msra.mxu0 0
  %284 = vmatprep.subr.bf16.mxu0 0
  %285 = vmatpush1.bf16.msra.mxu0 0
  %286 = vmatprep.subr.bf16.mxu0 0
  %287 = vmatpush1.bf16.msra.mxu0 0
  %288 = vmatprep.subr.bf16.mxu0 0
  %289 = vmatpush1.bf16.msra.mxu0 0
  %290 = vmatprep.subr.bf16.mxu0 0
  %291 = vmatpush1.bf16.msra.mxu0 0
  %292 = vmatprep.subr.bf16.mxu0 0
  %293 = vmatpush1.bf16.msra.mxu0 0
  %294 = vmatprep.subr.bf16.mxu0 0
  %295 = vmatpush1.bf16.msra.mxu0 0
  %296 = vmatprep.subr.bf16.mxu0 0
  %297 = vmatpush1.bf16.msra.mxu0 0
  %298 = vmatprep.mubr.bf16.mxu0 0
  %299 = vmatmul.mubr.bf16.gmra.mrb[0].mxu0 %v212
  %v300 = vpop.f32.mrb[0].mxu0
  %v301 = vadd.f32 %v252, %v300
  %v302 = vpop.f32.mrb[0].mxu0
  %v303 = vpop.f32.mrb[0].mxu0
  %v304 = vadd.f32 %v255, %v303
  %v305 = vpop.f32.mrb[0].mxu0
  %306 = vmatprep.mubr.bf16.mxu0 0
  %307 = vmatmul.mubr.bf16.gmra.mrb[0].mxu0 %v215
  %v308 = vpop.f32.mrb[0].mxu0
  %v309 = vadd.f32 %v260, %v308
  %v310 = vpop.f32.mrb[0].mxu0
  %v311 = vpop.f32.mrb[0].mxu0
  %v312 = vadd.f32 %v263, %v311
  %v313 = vpop.f32.mrb[0].mxu0
  %314 = vdwg.mxu0
  %vm315 = vcmp.ge.f32.partialorder %v301, 0.0
  %vm316 = vcmp.ge.f32.partialorder %v304, 0.0
  %vm317 = vcmp.ge.f32.partialorder %v309, 0.0
  %vm318 = vcmp.ge.f32.partialorder %v312, 0.0
  %v319 = vmul.f32 %v301, 0.2
  %v320 = vmul.f32 %v304, 0.2
  %v321 = vmul.f32 %v309, 0.2
  %v322 = vmul.f32 %v312, 0.2
  %v323 = vsel %vm315, %v301, %v319
  %v324 = vsel %vm316, %v304, %v320
  %v325 = vsel %vm317, %v309, %v321
  %v326 = vsel %vm318, %v312, %v322
  %vm327 = vcmask 523264
  %v328 = vsel %vm327, %v323, 0.0
  %v329 = vsel %vm327, %v324, 0.0
  %v330 = vadd.f32 %v328, %v329
  %v331 = vsel %vm327, %v325, 0.0
  %v332 = vadd.f32 %v330, %v331
  %v333 = vsel %vm327, %v326, 0.0
  %v334 = vadd.f32 %v332, %v333
  %v335 = vrot.slane %v334, 4
  %v336 = vadd.f32 %v334, %v335
  %v337 = vrot.slane %v336, 2
  %v338 = vadd.f32 %v336, %v337
  %v339 = vrot.slane %v338, 1
  %v340 = vadd.f32 %v338, %v339
  %v341 = vmul.f32 %v340, 0.03125
  %v342 = vmul.f32 %v323, %v323
  %v343 = vmul.f32 %v324, %v324
  %v344 = vmul.f32 %v325, %v325
  %v345 = vmul.f32 %v326, %v326
  %v346 = vsel %vm327, %v342, 0.0
  %v347 = vsel %vm327, %v343, 0.0
  %v348 = vadd.f32 %v346, %v347
  %v349 = vsel %vm327, %v344, 0.0
  %v350 = vadd.f32 %v348, %v349
  %v351 = vsel %vm327, %v345, 0.0
  %v352 = vadd.f32 %v350, %v351
  %v353 = vrot.slane %v352, 4
  %v354 = vadd.f32 %v352, %v353
  %v355 = vrot.slane %v354, 2
  %v356 = vadd.f32 %v354, %v355
  %v357 = vrot.slane %v356, 1
  %v358 = vadd.f32 %v356, %v357
  %v359 = vmul.f32 %v358, 0.03125
  %v360 = vmul.f32 %v341, %v341
  %v361 = vsub.f32 %v359, %v360
  %v362 = vsub.f32 %v323, %v341
  %v363 = vsub.f32 %v324, %v341
  %v364 = vsub.f32 %v325, %v341
  %v365 = vsub.f32 %v326, %v341
  %v366 = vadd.f32 %v361, 0.8
  %v367 = vrsqrt.pop %v366
  %v368 = vmul.f32 %v362, %v367
  %v369 = vmul.f32 %v363, %v367
  %v370 = vmul.f32 %v364, %v367
  %v371 = vmul.f32 %v365, %v367
  %v372 = vld [vmem:[%s3] sm:$0x1]
  %v374 = vlaneseq
  %v375 = vshrl.u32 %v374, 7
  %v376 = vsub.s32 0, %v375
  %v377 = vrot.slane %v372, %v376
  %v379 = vmul.f32 %v368, %v377
  %v380 = vmul.f32 %v369, %v377
  %v381 = vmul.f32 %v370, %v377
  %v382 = vmul.f32 %v371, %v377
  %v383 = vld [vmem:[%s4] sm:$0x1]
  %v385 = vlaneseq
  %v386 = vshrl.u32 %v385, 7
  %v387 = vsub.s32 0, %v386
  %v388 = vrot.slane %v383, %v387
  %v390 = vadd.f32 %v379, %v388
  %v391 = vadd.f32 %v380, %v388
  %v392 = vadd.f32 %v381, %v388
  %v393 = vadd.f32 %v382, %v388
  %v394 = vpack.c.bf16 %v391, %v390
  %v395 = vpack.c.bf16 %v393, %v392
  %v398 = vunpack.c.l.b16 %v394
  %v399 = vunpack.c.h.b16 %v394
  %v400 = vunpack.c.l.b16 %v395
  %v401 = vunpack.c.h.b16 %v395
  %v402 = vpack.c.b16 %v398, %v398
  %v403 = vpack.c.b16 %v399, %v399
  %v404 = vpack.c.b16 %v400, %v400
  %v405 = vpack.c.b16 %v401, %v401
  %vm410 = vcmask 519168
  %411 = vst.msk [vmem:[%s5] sm:$0xf] %vm410, %v402
  %412 = vst.msk [vmem:[%s5 + $0x4] sm:$0xf] %vm410, %v403
  %413 = vst.msk [vmem:[%s5 + $0x8] sm:$0xf] %vm410, %v404
  %414 = vst.msk [vmem:[%s5 + $0xc] sm:$0xf] %vm410, %v405
  // Predicated region
  $region22: #{convnet_cifar10_forward.6} parent=0 // pred_check
    _
  $region23: #{convnet_cifar10_forward.6} parent=0 // pred_check_branch
    %416 = sbr.rel (0) target = $region25
  $region24: #{convnet_cifar10_forward.6} parent=0 // pred_region
    _
  $region25: #{convnet_cifar10_forward.6} parent=0 // pred_fallthru
    _
  // Predicated region
  $region26: #{convnet_cifar10_forward.6} parent=0 // pred_check
    _
  $region27: #{convnet_cifar10_forward.6} parent=0 // pred_check_branch
    %418 = sbr.rel (0) target = $region29
  $region28: #{convnet_cifar10_forward.6} parent=0 // pred_region
    _
  $region29: #{convnet_cifar10_forward.6} parent=0 // pred_fallthru
    _

// kernel: convnet_cifar10_forward.7
$region0: #{convnet_cifar10_forward.7}
  #allocation0 [shape = 'u32[]', space=smem, size = 0x4, offset = 0x4, fixed_abs, tag = 'smem constant byte address 0x4 - core index']
  #allocation1 [shape = 'u32[144,128]{1,0:T(1,128)}', space=vmem, size = 0x12000, scoped, tag = 'internal scratch']
  %s0 = inlined_call_operand.vmem [shape: bf16[8,576], index: 0, kind: input, shape index: {}]
  %s1 = inlined_call_operand.vmem [shape: bf16[576,128], index: 1, kind: input, shape index: {}]
  %s2 = inlined_call_operand.vmem [shape: f32[1,128], index: 2, kind: input, shape index: {}]
  %s3 = inlined_call_operand.vmem [shape: f32[1,128], index: 3, kind: input, shape index: {}]
  %s4 = inlined_call_operand.vmem [shape: f32[1,128], index: 4, kind: input, shape index: {}]
  %s5 = inlined_call_operand.vmem [shape: bf16[4,128,384], index: 5, kind: input, shape index: {}]
  %s6 = inlined_call_operand.vmem [shape: f32[1,384], index: 6, kind: input, shape index: {}]
  %s7 = inlined_call_operand.hbm [shape: f32[2,384], index: 7, kind: output, shape index: {}]
  %s8 = sld [smem:[#allocation0]]
  $region38: #{convnet_cifar10_forward.7} parent=0
    _
  %s10 = ssub.s32 1, %s8
  %s11 = scalar_select 0, %s10, %s8
  $region1: #{convnet_cifar10_forward.7} parent=0
    #allocation2 [shape = 'u8[3072]{0}', space=vmem, size = 0xc00, scoped, tag = 'output window, operand 0, single buffered']
    #allocation3 [shape = 's32[1]{0}', space=sflag, size = 0x4, scoped, tag = 'scoped memory for convnet_cifar10_forward.7']
    %12 = vsyncpa [#allocation3], 0
    // Predicated region
    $region2: #{convnet_cifar10_forward.7} parent=1 // pred_check
      _
    $region3: #{convnet_cifar10_forward.7} parent=1 // pred_check_branch
      %14 = sbr.rel (0) target = $region5
    $region4: #{convnet_cifar10_forward.7} parent=1 // pred_region
      _
    $region5: #{convnet_cifar10_forward.7} parent=1 // pred_fallthru
      _
    // Predicated region
    $region6: #{convnet_cifar10_forward.7} parent=1 // pred_check
      _
    $region7: #{convnet_cifar10_forward.7} parent=1 // pred_check_branch
      %16 = sbr.rel (0) target = $region9
    $region8: #{convnet_cifar10_forward.7} parent=1 // pred_region
      _
    $region9: #{convnet_cifar10_forward.7} parent=1 // pred_fallthru
      _
    // Predicated region
    $region10: #{convnet_cifar10_forward.7} parent=1 // pred_check
      _
    $region11: #{convnet_cifar10_forward.7} parent=1 // pred_check_branch
      %18 = sbr.rel (0) target = $region13
    $region12: #{convnet_cifar10_forward.7} parent=1 // pred_region
      _
    $region13: #{convnet_cifar10_forward.7} parent=1 // pred_fallthru
      _
    // Predicated region
    $region14: #{convnet_cifar10_forward.7} parent=1 // pred_check
      _
    $region15: #{convnet_cifar10_forward.7} parent=1 // pred_check_branch
      %20 = sbr.rel (0) target = $region17
    $region16: #{convnet_cifar10_forward.7} parent=1 // pred_region
      _
    $region17: #{convnet_cifar10_forward.7} parent=1 // pred_fallthru
      _
    // Predicated region
    $region18: #{convnet_cifar10_forward.7} parent=1 // pred_check
      _
    $region19: #{convnet_cifar10_forward.7} parent=1 // pred_check_branch
      %22 = sbr.rel (0) target = $region21
    $region20: #{convnet_cifar10_forward.7} parent=1 // pred_region
      _
    $region21: #{convnet_cifar10_forward.7} parent=1 // pred_fallthru
      _
    // Predicated region
    $region22: #{convnet_cifar10_forward.7} parent=1 // pred_check
      _
    $region23: #{convnet_cifar10_forward.7} parent=1 // pred_check_branch
      %24 = sbr.rel (0) target = $region25
    $region24: #{convnet_cifar10_forward.7} parent=1 // pred_region
      _
    $region25: #{convnet_cifar10_forward.7} parent=1 // pred_fallthru
      _
    // Predicated region
    $region26: #{convnet_cifar10_forward.7} parent=1 // pred_check
      _
    $region27: #{convnet_cifar10_forward.7} parent=1 // pred_check_branch
      %26 = sbr.rel (0) target = $region29
    $region28: #{convnet_cifar10_forward.7} parent=1 // pred_region
      _
    $region29: #{convnet_cifar10_forward.7} parent=1 // pred_fallthru
      _
    %v28 = vld [vmem:[%s0] sm:$0xff]
    %v29 = vld [vmem:[%s0 + $0x8] sm:$0xff]
    %v30 = vld [vmem:[%s0 + $0x10] sm:$0xf]
    %v31 = vld [vmem:[%s1] sm:$0xf]
    %v32 = vld [vmem:[%s1 + $0x4] sm:$0xf]
    %v33 = vld [vmem:[%s1 + $0x8] sm:$0xf]
    %v34 = vld [vmem:[%s1 + $0xc] sm:$0xf]
    %v35 = vld [vmem:[%s1 + $0x10] sm:$0xf]
    %v36 = vld [vmem:[%s1 + $0x14] sm:$0xf]
    %v37 = vld [vmem:[%s1 + $0x18] sm:$0xf]
    %v38 = vld [vmem:[%s1 + $0x1c] sm:$0xf]
    %v39 = vld [vmem:[%s1 + $0x20] sm:$0xf]
    %v40 = vld [vmem:[%s1 + $0x24] sm:$0xf]
    %v41 = vld [vmem:[%s1 + $0x28] sm:$0xf]
    %v42 = vld [vmem:[%s1 + $0x2c] sm:$0xf]
    %v43 = vld [vmem:[%s1 + $0x30] sm:$0xf]
    %v44 = vld [vmem:[%s1 + $0x34] sm:$0xf]
    %v45 = vld [vmem:[%s1 + $0x38] sm:$0xf]
    %v46 = vld [vmem:[%s1 + $0x3c] sm:$0xf]
    %v47 = vld [vmem:[%s1 + $0x40] sm:$0xf]
    %v48 = vld [vmem:[%s1 + $0x44] sm:$0xf]
    %v49 = vld [vmem:[%s1 + $0x48] sm:$0xf]
    %v50 = vld [vmem:[%s1 + $0x4c] sm:$0xf]
    %v51 = vld [vmem:[%s1 + $0x50] sm:$0xf]
    %v52 = vld [vmem:[%s1 + $0x54] sm:$0xf]
    %v53 = vld [vmem:[%s1 + $0x58] sm:$0xf]
    %v54 = vld [vmem:[%s1 + $0x5c] sm:$0xf]
    %v55 = vld [vmem:[%s1 + $0x60] sm:$0xf]
    %v56 = vld [vmem:[%s1 + $0x64] sm:$0xf]
    %v57 = vld [vmem:[%s1 + $0x68] sm:$0xf]
    %v58 = vld [vmem:[%s1 + $0x6c] sm:$0xf]
    %v59 = vld [vmem:[%s1 + $0x70] sm:$0xf]
    %v60 = vld [vmem:[%s1 + $0x74] sm:$0xf]
    %v61 = vld [vmem:[%s1 + $0x78] sm:$0xf]
    %v62 = vld [vmem:[%s1 + $0x7c] sm:$0xf]
    %v63 = vld [vmem:[%s1 + $0x80] sm:$0xf]
    %v64 = vld [vmem:[%s1 + $0x84] sm:$0xf]
    %v65 = vld [vmem:[%s1 + $0x88] sm:$0xf]
    %v66 = vld [vmem:[%s1 + $0x8c] sm:$0xf]
    %v67 = vld [vmem:[%s1 + $0x90] sm:$0xf]
    %v68 = vld [vmem:[%s1 + $0x94] sm:$0xf]
    %v69 = vld [vmem:[%s1 + $0x98] sm:$0xf]
    %v70 = vld [vmem:[%s1 + $0x9c] sm:$0xf]
    %v71 = vld [vmem:[%s1 + $0xa0] sm:$0xf]
    %v72 = vld [vmem:[%s1 + $0xa4] sm:$0xf]
    %v73 = vld [vmem:[%s1 + $0xa8] sm:$0xf]
    %v74 = vld [vmem:[%s1 + $0xac] sm:$0xf]
    %v75 = vld [vmem:[%s1 + $0xb0] sm:$0xf]
    %v76 = vld [vmem:[%s1 + $0xb4] sm:$0xf]
    %v77 = vld [vmem:[%s1 + $0xb8] sm:$0xf]
    %v78 = vld [vmem:[%s1 + $0xbc] sm:$0xf]
    %v79 = vld [vmem:[%s1 + $0xc0] sm:$0xf]
    %v80 = vld [vmem:[%s1 + $0xc4] sm:$0xf]
    %v81 = vld [vmem:[%s1 + $0xc8] sm:$0xf]
    %v82 = vld [vmem:[%s1 + $0xcc] sm:$0xf]
    %v83 = vld [vmem:[%s1 + $0xd0] sm:$0xf]
    %v84 = vld [vmem:[%s1 + $0xd4] sm:$0xf]
    %v85 = vld [vmem:[%s1 + $0xd8] sm:$0xf]
    %v86 = vld [vmem:[%s1 + $0xdc] sm:$0xf]
    %v87 = vld [vmem:[%s1 + $0xe0] sm:$0xf]
    %v88 = vld [vmem:[%s1 + $0xe4] sm:$0xf]
    %v89 = vld [vmem:[%s1 + $0xe8] sm:$0xf]
    %v90 = vld [vmem:[%s1 + $0xec] sm:$0xf]
    %v91 = vld [vmem:[%s1 + $0xf0] sm:$0xf]
    %v92 = vld [vmem:[%s1 + $0xf4] sm:$0xf]
    %v93 = vld [vmem:[%s1 + $0xf8] sm:$0xf]
    %v94 = vld [vmem:[%s1 + $0xfc] sm:$0xf]
    %v95 = vld [vmem:[%s1 + $0x100] sm:$0xf]
    %v96 = vld [vmem:[%s1 + $0x104] sm:$0xf]
    %v97 = vld [vmem:[%s1 + $0x108] sm:$0xf]
    %v98 = vld [vmem:[%s1 + $0x10c] sm:$0xf]
    %v99 = vld [vmem:[%s1 + $0x110] sm:$0xf]
    %v100 = vld [vmem:[%s1 + $0x114] sm:$0xf]
    %v101 = vld [vmem:[%s1 + $0x118] sm:$0xf]
    %v102 = vld [vmem:[%s1 + $0x11c] sm:$0xf]
    %v103 = vld [vmem:[%s2] sm:$0x1]
    %v105 = vlaneseq
    %v106 = vshrl.u32 %v105, 7
    %v107 = vsub.s32 0, %v106
    %v108 = vrot.slane %v103, %v107
    %v113 = vunpack.c.l.b16 %v28
    %v114 = vunpack.c.h.b16 %v28
    %v115 = vunpack.c.l.b16 %v29
    %v116 = vunpack.c.h.b16 %v29
    %v117 = vunpack.c.l.b16 %v30
    %v118 = vpack.c.b16 %v113, %v113
    %v119 = vpack.c.b16 %v114, %v114
    %v120 = vpack.c.b16 %v115, %v115
    %v121 = vpack.c.b16 %v116, %v116
    %v122 = vpack.c.b16 %v117, %v117
    %v199 = vunpack.c.l.b16 %v31
    %v200 = vunpack.c.l.b16 %v32
    %v201 = vunpack.c.l.b16 %v33
    %v202 = vunpack.c.l.b16 %v34
    %v203 = vunpack.c.l.b16 %v35
    %v204 = vunpack.c.l.b16 %v36
    %v205 = vunpack.c.l.b16 %v37
    %v206 = vunpack.c.l.b16 %v38
    %v207 = vunpack.c.l.b16 %v39
    %v208 = vunpack.c.l.b16 %v40
    %v209 = vunpack.c.l.b16 %v41
    %v210 = vunpack.c.l.b16 %v42
    %v211 = vunpack.c.l.b16 %v43
    %v212 = vunpack.c.l.b16 %v44
    %v213 = vunpack.c.l.b16 %v45
    %v214 = vunpack.c.l.b16 %v46
    %v215 = vunpack.c.l.b16 %v47
    %v216 = vunpack.c.l.b16 %v48
    %v217 = vunpack.c.l.b16 %v49
    %v218 = vunpack.c.l.b16 %v50
    %v219 = vunpack.c.l.b16 %v51
    %v220 = vunpack.c.l.b16 %v52
    %v221 = vunpack.c.l.b16 %v53
    %v222 = vunpack.c.l.b16 %v54
    %v223 = vunpack.c.l.b16 %v55
    %v224 = vunpack.c.l.b16 %v56
    %v225 = vunpack.c.l.b16 %v57
    %v226 = vunpack.c.l.b16 %v58
    %v227 = vunpack.c.l.b16 %v59
    %v228 = vunpack.c.l.b16 %v60
    %v229 = vunpack.c.l.b16 %v61
    %v230 = vunpack.c.l.b16 %v62
    %v231 = vunpack.c.l.b16 %v63
    %v232 = vunpack.c.l.b16 %v64
    %v233 = vunpack.c.l.b16 %v65
    %v234 = vunpack.c.l.b16 %v66
    %v235 = vunpack.c.l.b16 %v67
    %v236 = vunpack.c.l.b16 %v68
    %v237 = vunpack.c.l.b16 %v69
    %v238 = vunpack.c.l.b16 %v70
    %v239 = vunpack.c.l.b16 %v71
    %v240 = vunpack.c.l.b16 %v72
    %v241 = vunpack.c.l.b16 %v73
    %v242 = vunpack.c.l.b16 %v74
    %v243 = vunpack.c.l.b16 %v75
    %v244 = vunpack.c.l.b16 %v76
    %v245 = vunpack.c.l.b16 %v77
    %v246 = vunpack.c.l.b16 %v78
    %v247 = vunpack.c.l.b16 %v79
    %v248 = vunpack.c.l.b16 %v80
    %v249 = vunpack.c.l.b16 %v81
    %v250 = vunpack.c.l.b16 %v82
    %v251 = vunpack.c.l.b16 %v83
    %v252 = vunpack.c.l.b16 %v84
    %v253 = vunpack.c.l.b16 %v85
    %v254 = vunpack.c.l.b16 %v86
    %v255 = vunpack.c.l.b16 %v87
    %v256 = vunpack.c.l.b16 %v88
    %v257 = vunpack.c.l.b16 %v89
    %v258 = vunpack.c.l.b16 %v90
    %v259 = vunpack.c.l.b16 %v91
    %v260 = vunpack.c.l.b16 %v92
    %v261 = vunpack.c.l.b16 %v93
    %v262 = vunpack.c.l.b16 %v94
    %v263 = vunpack.c.l.b16 %v95
    %v264 = vunpack.c.l.b16 %v96
    %v265 = vunpack.c.l.b16 %v97
    %v266 = vunpack.c.l.b16 %v98
    %v267 = vunpack.c.l.b16 %v99
    %v268 = vunpack.c.l.b16 %v100
    %v269 = vunpack.c.l.b16 %v101
    %v270 = vunpack.c.l.b16 %v102
    %v271 = vpack.c.b16 %v200, %v199
    %v272 = vpack.c.b16 %v202, %v201
    %v273 = vpack.c.b16 %v204, %v203
    %v274 = vpack.c.b16 %v206, %v205
    %v275 = vpack.c.b16 %v208, %v207
    %v276 = vpack.c.b16 %v210, %v209
    %v277 = vpack.c.b16 %v212, %v211
    %v278 = vpack.c.b16 %v214, %v213
    %v279 = vpack.c.b16 %v216, %v215
    %v280 = vpack.c.b16 %v218, %v217
    %v281 = vpack.c.b16 %v220, %v219
    %v282 = vpack.c.b16 %v222, %v221
    %v283 = vpack.c.b16 %v224, %v223
    %v284 = vpack.c.b16 %v226, %v225
    %v285 = vpack.c.b16 %v228, %v227
    %v286 = vpack.c.b16 %v230, %v229
    %v287 = vpack.c.b16 %v232, %v231
    %v288 = vpack.c.b16 %v234, %v233
    %v289 = vpack.c.b16 %v236, %v235
    %v290 = vpack.c.b16 %v238, %v237
    %v291 = vpack.c.b16 %v240, %v239
    %v292 = vpack.c.b16 %v242, %v241
    %v293 = vpack.c.b16 %v244, %v243
    %v294 = vpack.c.b16 %v246, %v245
    %v295 = vpack.c.b16 %v248, %v247
    %v296 = vpack.c.b16 %v250, %v249
    %v297 = vpack.c.b16 %v252, %v251
    %v298 = vpack.c.b16 %v254, %v253
    %v299 = vpack.c.b16 %v256, %v255
    %v300 = vpack.c.b16 %v258, %v257
    %v301 = vpack.c.b16 %v260, %v259
    %v302 = vpack.c.b16 %v262, %v261
    %v303 = vpack.c.b16 %v264, %v263
    %v304 = vpack.c.b16 %v266, %v265
    %v305 = vpack.c.b16 %v268, %v267
    %v306 = vpack.c.b16 %v270, %v269
    %vm343 = vcmask 523264
    %v345 = vsel %vm343, %v122, 0
    %347 = vmatprep.subr.bf16.mxu0 0
    %348 = vmatpush1.bf16.msra.mxu0 %v271
    %349 = vmatprep.subr.bf16.mxu0 0
    %350 = vmatpush1.bf16.msra.mxu0 %v272
    %351 = vmatprep.subr.bf16.mxu0 0
    %352 = vmatpush1.bf16.msra.mxu0 %v273
    %353 = vmatprep.subr.bf16.mxu0 0
    %354 = vmatpush1.bf16.msra.mxu0 %v274
    %355 = vmatprep.subr.bf16.mxu0 0
    %356 = vmatpush1.bf16.msra.mxu0 %v275
    %357 = vmatprep.subr.bf16.mxu0 0
    %358 = vmatpush1.bf16.msra.mxu0 %v276
    %359 = vmatprep.subr.bf16.mxu0 0
    %360 = vmatpush1.bf16.msra.mxu0 %v277
    %361 = vmatprep.subr.bf16.mxu0 0
    %362 = vmatpush1.bf16.msra.mxu0 %v278
    %363 = vmatprep.subr.bf16.mxu0 0
    %364 = vmatpush1.bf16.msra.mxu0 %v279
    %365 = vmatprep.subr.bf16.mxu0 0
    %366 = vmatpush1.bf16.msra.mxu0 %v280
    %367 = vmatprep.subr.bf16.mxu0 0
    %368 = vmatpush1.bf16.msra.mxu0 %v281
    %369 = vmatprep.subr.bf16.mxu0 0
    %370 = vmatpush1.bf16.msra.mxu0 %v282
    %371 = vmatprep.subr.bf16.mxu0 0
    %372 = vmatpush1.bf16.msra.mxu0 %v283
    %373 = vmatprep.subr.bf16.mxu0 0
    %374 = vmatpush1.bf16.msra.mxu0 %v284
    %375 = vmatprep.subr.bf16.mxu0 0
    %376 = vmatpush1.bf16.msra.mxu0 %v285
    %377 = vmatprep.subr.bf16.mxu0 0
    %378 = vmatpush1.bf16.msra.mxu0 %v286
    %379 = vmatprep.mubr.bf16.mxu0 %v119
    %380 = vmatmul.mubr.bf16.gmra.mrb[0].mxu0 %v118
    %v381 = vpop.f32.mrb[0].mxu0
    %v382 = vadd.f32 %v108, %v381
    %v383 = vpop.f32.mrb[0].mxu0
    %v384 = vpop.f32.mrb[0].mxu0
    %v385 = vpop.f32.mrb[0].mxu0
    %386 = vdwg.mxu0
    %387 = vmatprep.subr.bf16.mxu0 0
    %388 = vmatpush1.bf16.msra.mxu0 %v287
    %389 = vmatprep.subr.bf16.mxu0 0
    %390 = vmatpush1.bf16.msra.mxu0 %v288
    %391 = vmatprep.subr.bf16.mxu0 0
    %392 = vmatpush1.bf16.msra.mxu0 %v289
    %393 = vmatprep.subr.bf16.mxu0 0
    %394 = vmatpush1.bf16.msra.mxu0 %v290
    %395 = vmatprep.subr.bf16.mxu0 0
    %396 = vmatpush1.bf16.msra.mxu0 %v291
    %397 = vmatprep.subr.bf16.mxu0 0
    %398 = vmatpush1.bf16.msra.mxu0 %v292
    %399 = vmatprep.subr.bf16.mxu0 0
    %400 = vmatpush1.bf16.msra.mxu0 %v293
    %401 = vmatprep.subr.bf16.mxu0 0
    %402 = vmatpush1.bf16.msra.mxu0 %v294
    %403 = vmatprep.subr.bf16.mxu0 0
    %404 = vmatpush1.bf16.msra.mxu0 %v295
    %405 = vmatprep.subr.bf16.mxu0 0
    %406 = vmatpush1.bf16.msra.mxu0 %v296
    %407 = vmatprep.subr.bf16.mxu0 0
    %408 = vmatpush1.bf16.msra.mxu0 %v297
    %409 = vmatprep.subr.bf16.mxu0 0
    %410 = vmatpush1.bf16.msra.mxu0 %v298
    %411 = vmatprep.subr.bf16.mxu0 0
    %412 = vmatpush1.bf16.msra.mxu0 %v299
    %413 = vmatprep.subr.bf16.mxu0 0
    %414 = vmatpush1.bf16.msra.mxu0 %v300
    %415 = vmatprep.subr.bf16.mxu0 0
    %416 = vmatpush1.bf16.msra.mxu0 %v301
    %417 = vmatprep.subr.bf16.mxu0 0
    %418 = vmatpush1.bf16.msra.mxu0 %v302
    %419 = vmatprep.mubr.bf16.mxu0 %v121
    %420 = vmatmul.mubr.bf16.gmra.mrb[0].mxu0 %v120
    %v421 = vpop.f32.mrb[0].mxu0
    %v422 = vadd.f32 %v382, %v421
    %v423 = vpop.f32.mrb[0].mxu0
    %v424 = vpop.f32.mrb[0].mxu0
    %v425 = vpop.f32.mrb[0].mxu0
    %426 = vdwg.mxu0
    %427 = vmatprep.subr.bf16.mxu0 0
    %428 = vmatpush1.bf16.msra.mxu0 %v303
    %429 = vmatprep.subr.bf16.mxu0 0
    %430 = vmatpush1.bf16.msra.mxu0 %v304
    %431 = vmatprep.subr.bf16.mxu0 0
    %432 = vmatpush1.bf16.msra.mxu0 %v305
    %433 = vmatprep.subr.bf16.mxu0 0
    %434 = vmatpush1.bf16.msra.mxu0 %v306
    %435 = vmatprep.subr.bf16.mxu0 0
    %436 = vmatpush1.bf16.msra.mxu0 0
    %437 = vmatprep.subr.bf16.mxu0 0
    %438 = vmatpush1.bf16.msra.mxu0 0
    %439 = vmatprep.subr.bf16.mxu0 0
    %440 = vmatpush1.bf16.msra.mxu0 0
    %441 = vmatprep.subr.bf16.mxu0 0
    %442 = vmatpush1.bf16.msra.mxu0 0
    %443 = vmatprep.subr.bf16.mxu0 0
    %444 = vmatpush1.bf16.msra.mxu0 0
    %445 = vmatprep.subr.bf16.mxu0 0
    %446 = vmatpush1.bf16.msra.mxu0 0
    %447 = vmatprep.subr.bf16.mxu0 0
    %448 = vmatpush1.bf16.msra.mxu0 0
    %449 = vmatprep.subr.bf16.mxu0 0
    %450 = vmatpush1.bf16.msra.mxu0 0
    %451 = vmatprep.subr.bf16.mxu0 0
    %452 = vmatpush1.bf16.msra.mxu0 0
    %453 = vmatprep.subr.bf16.mxu0 0
    %454 = vmatpush1.bf16.msra.mxu0 0
    %455 = vmatprep.subr.bf16.mxu0 0
    %456 = vmatpush1.bf16.msra.mxu0 0
    %457 = vmatprep.subr.bf16.mxu0 0
    %458 = vmatpush1.bf16.msra.mxu0 0
    %459 = vmatprep.mubr.bf16.mxu0 0
    %460 = vmatmul.mubr.bf16.gmra.mrb[0].mxu0 %v345
    %v461 = vpop.f32.mrb[0].mxu0
    %v462 = vadd.f32 %v422, %v461
    %v463 = vpop.f32.mrb[0].mxu0
    %v464 = vpop.f32.mrb[0].mxu0
    %v465 = vpop.f32.mrb[0].mxu0
    %466 = vdwg.mxu0
    %vm467 = vcmp.ge.f32.partialorder %v462, 0.0
    %v468 = vmul.f32 %v462, 0.2
    %v469 = vsel %vm467, %v462, %v468
    %v470 = vrot.slane %v469, 4
    %v471 = vadd.f32 %v469, %v470
    %v472 = vrot.slane %v471, 2
    %v473 = vadd.f32 %v471, %v472
    %v474 = vrot.slane %v473, 1
    %v475 = vadd.f32 %v473, %v474
    %v476 = vmul.f32 %v475, 0.125
    %v477 = vmul.f32 %v469, %v469
    %v478 = vrot.slane %v477, 4
    %v479 = vadd.f32 %v477, %v478
    %v480 = vrot.slane %v479, 2
    %v481 = vadd.f32 %v479, %v480
    %v482 = vrot.slane %v481, 1
    %v483 = vadd.f32 %v481, %v482
    %v484 = vmul.f32 %v483, 0.125
    %v485 = vmul.f32 %v476, %v476
    %v486 = vsub.f32 %v484, %v485
    %v487 = vsub.f32 %v469, %v476
    %v488 = vadd.f32 %v486, 0.8
    %v489 = vrsqrt.pop %v488
    %v490 = vmul.f32 %v487, %v489
    %v491 = vld [vmem:[%s3] sm:$0x1]
    %v493 = vlaneseq
    %v494 = vshrl.u32 %v493, 7
    %v495 = vsub.s32 0, %v494
    %v496 = vrot.slane %v491, %v495
    %v498 = vmul.f32 %v490, %v496
    %v499 = vld [vmem:[%s4] sm:$0x1]
    %v501 = vlaneseq
    %v502 = vshrl.u32 %v501, 7
    %v503 = vsub.s32 0, %v502
    %v504 = vrot.slane %v499, %v503
    %v506 = vadd.f32 %v498, %v504
    %v507 = vpack.c.bf16 %v506, %v506
    %v508 = vld [vmem:[%s5] sm:$0xff]
    %v509 = vld [vmem:[%s5 + $0x8] sm:$0xf]
    %v510 = vld [vmem:[%s5 + $0xc] sm:$0xff]
    %v511 = vld [vmem:[%s5 + $0x14] sm:$0xf]
    %v512 = vld [vmem:[%s5 + $0x18] sm:$0xff]
    %v513 = vld [vmem:[%s5 + $0x20] sm:$0xf]
    %v514 = vld [vmem:[%s5 + $0x24] sm:$0xff]
    %v515 = vld [vmem:[%s5 + $0x2c] sm:$0xf]
    %v516 = vld [vmem:[%s5 + $0x30] sm:$0xff]
    %v517 = vld [vmem:[%s5 + $0x38] sm:$0xf]
    %v518 = vld [vmem:[%s5 + $0x3c] sm:$0xff]
    %v519 = vld [vmem:[%s5 + $0x44] sm:$0xf]
    %v520 = vld [vmem:[%s5 + $0x48] sm:$0xff]
    %v521 = vld [vmem:[%s5 + $0x50] sm:$0xf]
    %v522 = vld [vmem:[%s5 + $0x54] sm:$0xff]
    %v523 = vld [vmem:[%s5 + $0x5c] sm:$0xf]
    %v524 = vld [vmem:[%s5 + $0x60] sm:$0xff]
    %v525 = vld [vmem:[%s5 + $0x68] sm:$0xf]
    %v526 = vld [vmem:[%s5 + $0x6c] sm:$0xff]
    %v527 = vld [vmem:[%s5 + $0x74] sm:$0xf]
    %v528 = vld [vmem:[%s5 + $0x78] sm:$0xff]
    %v529 = vld [vmem:[%s5 + $0x80] sm:$0xf]
    %v530 = vld [vmem:[%s5 + $0x84] sm:$0xff]
    %v531 = vld [vmem:[%s5 + $0x8c] sm:$0xf]
    %v532 = vld [vmem:[%s5 + $0x90] sm:$0xff]
    %v533 = vld [vmem:[%s5 + $0x98] sm:$0xf]
    %v534 = vld [vmem:[%s5 + $0x9c] sm:$0xff]
    %v535 = vld [vmem:[%s5 + $0xa4] sm:$0xf]
    %v536 = vld [vmem:[%s5 + $0xa8] sm:$0xff]
    %v537 = vld [vmem:[%s5 + $0xb0] sm:$0xf]
    %v538 = vld [vmem:[%s5 + $0xb4] sm:$0xff]
    %v539 = vld [vmem:[%s5 + $0xbc] sm:$0xf]
    %s540 = scalar_lea.vmem %s5, 192
    %v541 = vld [vmem:[%s540] sm:$0xff]
    %v542 = vld [vmem:[%s540 + $0x8] sm:$0xf]
    %v543 = vld [vmem:[%s540 + $0xc] sm:$0xff]
    %v544 = vld [vmem:[%s540 + $0x14] sm:$0xf]
    %v545 = vld [vmem:[%s540 + $0x18] sm:$0xff]
    %v546 = vld [vmem:[%s540 + $0x20] sm:$0xf]
    %v547 = vld [vmem:[%s540 + $0x24] sm:$0xff]
    %v548 = vld [vmem:[%s540 + $0x2c] sm:$0xf]
    %v549 = vld [vmem:[%s540 + $0x30] sm:$0xff]
    %v550 = vld [vmem:[%s540 + $0x38] sm:$0xf]
    %v551 = vld [vmem:[%s540 + $0x3c] sm:$0xff]
    %v552 = vld [vmem:[%s540 + $0x44] sm:$0xf]
    %v553 = vld [vmem:[%s540 + $0x48] sm:$0xff]
    %v554 = vld [vmem:[%s540 + $0x50] sm:$0xf]
    %v555 = vld [vmem:[%s540 + $0x54] sm:$0xff]
    %v556 = vld [vmem:[%s540 + $0x5c] sm:$0xf]
    %v557 = vld [vmem:[%s540 + $0x60] sm:$0xff]
    %v558 = vld [vmem:[%s540 + $0x68] sm:$0xf]
    %v559 = vld [vmem:[%s540 + $0x6c] sm:$0xff]
    %v560 = vld [vmem:[%s540 + $0x74] sm:$0xf]
    %v561 = vld [vmem:[%s540 + $0x78] sm:$0xff]
    %v562 = vld [vmem:[%s540 + $0x80] sm:$0xf]
    %v563 = vld [vmem:[%s540 + $0x84] sm:$0xff]
    %v564 = vld [vmem:[%s540 + $0x8c] sm:$0xf]
    %v565 = vld [vmem:[%s540 + $0x90] sm:$0xff]
    %v566 = vld [vmem:[%s540 + $0x98] sm:$0xf]
    %v567 = vld [vmem:[%s540 + $0x9c] sm:$0xff]
    %v568 = vld [vmem:[%s540 + $0xa4] sm:$0xf]
    %v569 = vld [vmem:[%s540 + $0xa8] sm:$0xff]
    %v570 = vld [vmem:[%s540 + $0xb0] sm:$0xf]
    %v571 = vld [vmem:[%s540 + $0xb4] sm:$0xff]
    %v572 = vld [vmem:[%s540 + $0xbc] sm:$0xf]
    %v574 = vrot.slane %v507, 1
    %v608 = vunpack.c.l.b16 %v541
    %v609 = vunpack.c.h.b16 %v541
    %v610 = vunpack.c.l.b16 %v542
    %v611 = vunpack.c.l.b16 %v543
    %v612 = vunpack.c.h.b16 %v543
    %v613 = vunpack.c.l.b16 %v544
    %v614 = vunpack.c.l.b16 %v545
    %v615 = vunpack.c.h.b16 %v545
    %v616 = vunpack.c.l.b16 %v546
    %v617 = vunpack.c.l.b16 %v547
    %v618 = vunpack.c.h.b16 %v547
    %v619 = vunpack.c.l.b16 %v548
    %v620 = vunpack.c.l.b16 %v549
    %v621 = vunpack.c.h.b16 %v549
    %v622 = vunpack.c.l.b16 %v550
    %v623 = vunpack.c.l.b16 %v551
    %v624 = vunpack.c.h.b16 %v551
    %v625 = vunpack.c.l.b16 %v552
    %v626 = vunpack.c.l.b16 %v553
    %v627 = vunpack.c.h.b16 %v553
    %v628 = vunpack.c.l.b16 %v554
    %v629 = vunpack.c.l.b16 %v555
    %v630 = vunpack.c.h.b16 %v555
    %v631 = vunpack.c.l.b16 %v556
    %v632 = vunpack.c.l.b16 %v557
    %v633 = vunpack.c.h.b16 %v557
    %v634 = vunpack.c.l.b16 %v558
    %v635 = vunpack.c.l.b16 %v559
    %v636 = vunpack.c.h.b16 %v559
    %v637 = vunpack.c.l.b16 %v560
    %v638 = vunpack.c.l.b16 %v561
    %v639 = vunpack.c.h.b16 %v561
    %v640 = vunpack.c.l.b16 %v562
    %v641 = vunpack.c.l.b16 %v563
    %v642 = vunpack.c.h.b16 %v563
    %v643 = vunpack.c.l.b16 %v564
    %v644 = vunpack.c.l.b16 %v565
    %v645 = vunpack.c.h.b16 %v565
    %v646 = vunpack.c.l.b16 %v566
    %v647 = vunpack.c.l.b16 %v567
    %v648 = vunpack.c.h.b16 %v567
    %v649 = vunpack.c.l.b16 %v568
    %v650 = vunpack.c.l.b16 %v569
    %v651 = vunpack.c.h.b16 %v569
    %v652 = vunpack.c.l.b16 %v570
    %v653 = vunpack.c.l.b16 %v571
    %v654 = vunpack.c.h.b16 %v571
    %v655 = vunpack.c.l.b16 %v572
    %v656 = vpack.c.b16 %v611, %v608
    %v657 = vpack.c.b16 %v612, %v609
    %v658 = vpack.c.b16 %v613, %v610
    %v659 = vpack.c.b16 %v617, %v614
    %v660 = vpack.c.b16 %v618, %v615
    %v661 = vpack.c.b16 %v619, %v616
    %v662 = vpack.c.b16 %v623, %v620
    %v663 = vpack.c.b16 %v624, %v621
    %v664 = vpack.c.b16 %v625, %v622
    %v665 = vpack.c.b16 %v629, %v626
    %v666 = vpack.c.b16 %v630, %v627
    %v667 = vpack.c.b16 %v631, %v628
    %v668 = vpack.c.b16 %v635, %v632
    %v669 = vpack.c.b16 %v636, %v633
    %v670 = vpack.c.b16 %v637, %v634
    %v671 = vpack.c.b16 %v641, %v638
    %v672 = vpack.c.b16 %v642, %v639
    %v673 = vpack.c.b16 %v643, %v640
    %v674 = vpack.c.b16 %v647, %v644
    %v675 = vpack.c.b16 %v648, %v645
    %v676 = vpack.c.b16 %v649, %v646
    %v677 = vpack.c.b16 %v653, %v650
    %v678 = vpack.c.b16 %v654, %v651
    %v679 = vpack.c.b16 %v655, %v652
    %704 = vmatprep.subr.bf16.mxu0 %v657
    %705 = vmatpush1.bf16.msra.mxu0 %v656
    %706 = vmatprep.subr.bf16.mxu0 %v660
    %707 = vmatpush1.bf16.msra.mxu0 %v659
    %708 = vmatprep.subr.bf16.mxu0 %v663
    %709 = vmatpush1.bf16.msra.mxu0 %v662
    %710 = vmatprep.subr.bf16.mxu0 %v666
    %711 = vmatpush1.bf16.msra.mxu0 %v665
    %712 = vmatprep.subr.bf16.mxu0 %v669
    %713 = vmatpush1.bf16.msra.mxu0 %v668
    %714 = vmatprep.subr.bf16.mxu0 %v672
    %715 = vmatpush1.bf16.msra.mxu0 %v671
    %716 = vmatprep.subr.bf16.mxu0 %v675
    %717 = vmatpush1.bf16.msra.mxu0 %v674
    %718 = vmatprep.subr.bf16.mxu0 %v678
    %719 = vmatpush1.bf16.msra.mxu0 %v677
    %720 = vmatprep.subr.bf16.mxu0 0
    %721 = vmatpush1.bf16.msra.mxu0 0
    %722 = vmatprep.subr.bf16.mxu0 0
    %723 = vmatpush1.bf16.msra.mxu0 0
    %724 = vmatprep.subr.bf16.mxu0 0
    %725 = vmatpush1.bf16.msra.mxu0 0
    %726 = vmatprep.subr.bf16.mxu0 0
    %727 = vmatpush1.bf16.msra.mxu0 0
    %728 = vmatprep.subr.bf16.mxu0 0
    %729 = vmatpush1.bf16.msra.mxu0 0
    %730 = vmatprep.subr.bf16.mxu0 0
    %731 = vmatpush1.bf16.msra.mxu0 0
    %732 = vmatprep.subr.bf16.mxu0 0
    %733 = vmatpush1.bf16.msra.mxu0 0
    %734 = vmatprep.subr.bf16.mxu0 0
    %735 = vmatpush1.bf16.msra.mxu0 0
    %736 = vmatprep.mubr.bf16.mxu0 0
    %737 = vmatmul.mubr.bf16.gmra.mrb[0].mxu0 %v574
    %v738 = vpop.f32.mrb[0].mxu0
    %v739 = vadd.f32 0.0, %v738
    %v740 = vpop.f32.mrb[0].mxu0
    %v741 = vadd.f32 0.0, %v740
    %v742 = vpop.f32.mrb[0].mxu0
    %v743 = vpop.f32.mrb[0].mxu0
    %744 = vdwg.mxu0
    %745 = vmatprep.subr.bf16.mxu0 0
    %746 = vmatpush1.bf16.msra.mxu0 %v658
    %747 = vmatprep.subr.bf16.mxu0 0
    %748 = vmatpush1.bf16.msra.mxu0 %v661
    %749 = vmatprep.subr.bf16.mxu0 0
    %750 = vmatpush1.bf16.msra.mxu0 %v664
    %751 = vmatprep.subr.bf16.mxu0 0
    %752 = vmatpush1.bf16.msra.mxu0 %v667
    %753 = vmatprep.subr.bf16.mxu0 0
    %754 = vmatpush1.bf16.msra.mxu0 %v670
    %755 = vmatprep.subr.bf16.mxu0 0
    %756 = vmatpush1.bf16.msra.mxu0 %v673
    %757 = vmatprep.subr.bf16.mxu0 0
    %758 = vmatpush1.bf16.msra.mxu0 %v676
    %759 = vmatprep.subr.bf16.mxu0 0
    %760 = vmatpush1.bf16.msra.mxu0 %v679
    %761 = vmatprep.subr.bf16.mxu0 0
    %762 = vmatpush1.bf16.msra.mxu0 0
    %763 = vmatprep.subr.bf16.mxu0 0
    %764 = vmatpush1.bf16.msra.mxu0 0
    %765 = vmatprep.subr.bf16.mxu0 0
    %766 = vmatpush1.bf16.msra.mxu0 0
    %767 = vmatprep.subr.bf16.mxu0 0
    %768 = vmatpush1.bf16.msra.mxu0 0
    %769 = vmatprep.subr.bf16.mxu0 0
    %770 = vmatpush1.bf16.msra.mxu0 0
    %771 = vmatprep.subr.bf16.mxu0 0
    %772 = vmatpush1.bf16.msra.mxu0 0
    %773 = vmatprep.subr.bf16.mxu0 0
    %774 = vmatpush1.bf16.msra.mxu0 0
    %775 = vmatprep.subr.bf16.mxu0 0
    %776 = vmatpush1.bf16.msra.mxu0 0
    %777 = vmatprep.mubr.bf16.mxu0 0
    %778 = vmatmul.mubr.bf16.gmra.mrb[0].mxu0 %v574
    %v779 = vpop.f32.mrb[0].mxu0
    %v780 = vadd.f32 0.0, %v779
    %v781 = vpop.f32.mrb[0].mxu0
    %v782 = vpop.f32.mrb[0].mxu0
    %v783 = vpop.f32.mrb[0].mxu0
    %784 = vdwg.mxu0
    %v817 = vunpack.c.l.b16 %v508
    %v818 = vunpack.c.h.b16 %v508
    %v819 = vunpack.c.l.b16 %v509
    %v820 = vunpack.c.l.b16 %v510
    %v821 = vunpack.c.h.b16 %v510
    %v822 = vunpack.c.l.b16 %v511
    %v823 = vunpack.c.l.b16 %v512
    %v824 = vunpack.c.h.b16 %v512
    %v825 = vunpack.c.l.b16 %v513
    %v826 = vunpack.c.l.b16 %v514
    %v827 = vunpack.c.h.b16 %v514
    %v828 = vunpack.c.l.b16 %v515
    %v829 = vunpack.c.l.b16 %v516
    %v830 = vunpack.c.h.b16 %v516
    %v831 = vunpack.c.l.b16 %v517
    %v832 = vunpack.c.l.b16 %v518
    %v833 = vunpack.c.h.b16 %v518
    %v834 = vunpack.c.l.b16 %v519
    %v835 = vunpack.c.l.b16 %v520
    %v836 = vunpack.c.h.b16 %v520
    %v837 = vunpack.c.l.b16 %v521
    %v838 = vunpack.c.l.b16 %v522
    %v839 = vunpack.c.h.b16 %v522
    %v840 = vunpack.c.l.b16 %v523
    %v841 = vunpack.c.l.b16 %v524
    %v842 = vunpack.c.h.b16 %v524
    %v843 = vunpack.c.l.b16 %v525
    %v844 = vunpack.c.l.b16 %v526
    %v845 = vunpack.c.h.b16 %v526
    %v846 = vunpack.c.l.b16 %v527
    %v847 = vunpack.c.l.b16 %v528
    %v848 = vunpack.c.h.b16 %v528
    %v849 = vunpack.c.l.b16 %v529
    %v850 = vunpack.c.l.b16 %v530
    %v851 = vunpack.c.h.b16 %v530
    %v852 = vunpack.c.l.b16 %v531
    %v853 = vunpack.c.l.b16 %v532
    %v854 = vunpack.c.h.b16 %v532
    %v855 = vunpack.c.l.b16 %v533
    %v856 = vunpack.c.l.b16 %v534
    %v857 = vunpack.c.h.b16 %v534
    %v858 = vunpack.c.l.b16 %v535
    %v859 = vunpack.c.l.b16 %v536
    %v860 = vunpack.c.h.b16 %v536
    %v861 = vunpack.c.l.b16 %v537
    %v862 = vunpack.c.l.b16 %v538
    %v863 = vunpack.c.h.b16 %v538
    %v864 = vunpack.c.l.b16 %v539
    %v865 = vpack.c.b16 %v820, %v817
    %v866 = vpack.c.b16 %v821, %v818
    %v867 = vpack.c.b16 %v822, %v819
    %v868 = vpack.c.b16 %v826, %v823
    %v869 = vpack.c.b16 %v827, %v824
    %v870 = vpack.c.b16 %v828, %v825
    %v871 = vpack.c.b16 %v832, %v829
    %v872 = vpack.c.b16 %v833, %v830
    %v873 = vpack.c.b16 %v834, %v831
    %v874 = vpack.c.b16 %v838, %v835
    %v875 = vpack.c.b16 %v839, %v836
    %v876 = vpack.c.b16 %v840, %v837
    %v877 = vpack.c.b16 %v844, %v841
    %v878 = vpack.c.b16 %v845, %v842
    %v879 = vpack.c.b16 %v846, %v843
    %v880 = vpack.c.b16 %v850, %v847
    %v881 = vpack.c.b16 %v851, %v848
    %v882 = vpack.c.b16 %v852, %v849
    %v883 = vpack.c.b16 %v856, %v853
    %v884 = vpack.c.b16 %v857, %v854
    %v885 = vpack.c.b16 %v858, %v855
    %v886 = vpack.c.b16 %v862, %v859
    %v887 = vpack.c.b16 %v863, %v860
    %v888 = vpack.c.b16 %v864, %v861
    %913 = vmatprep.subr.bf16.mxu0 %v866
    %914 = vmatpush1.bf16.msra.mxu0 %v865
    %915 = vmatprep.subr.bf16.mxu0 %v869
    %916 = vmatpush1.bf16.msra.mxu0 %v868
    %917 = vmatprep.subr.bf16.mxu0 %v872
    %918 = vmatpush1.bf16.msra.mxu0 %v871
    %919 = vmatprep.subr.bf16.mxu0 %v875
    %920 = vmatpush1.bf16.msra.mxu0 %v874
    %921 = vmatprep.subr.bf16.mxu0 %v878
    %922 = vmatpush1.bf16.msra.mxu0 %v877
    %923 = vmatprep.subr.bf16.mxu0 %v881
    %924 = vmatpush1.bf16.msra.mxu0 %v880
    %925 = vmatprep.subr.bf16.mxu0 %v884
    %926 = vmatpush1.bf16.msra.mxu0 %v883
    %927 = vmatprep.subr.bf16.mxu0 %v887
    %928 = vmatpush1.bf16.msra.mxu0 %v886
    %929 = vmatprep.subr.bf16.mxu0 0
    %930 = vmatpush1.bf16.msra.mxu0 0
    %931 = vmatprep.subr.bf16.mxu0 0
    %932 = vmatpush1.bf16.msra.mxu0 0
    %933 = vmatprep.subr.bf16.mxu0 0
    %934 = vmatpush1.bf16.msra.mxu0 0
    %935 = vmatprep.subr.bf16.mxu0 0
    %936 = vmatpush1.bf16.msra.mxu0 0
    %937 = vmatprep.subr.bf16.mxu0 0
    %938 = vmatpush1.bf16.msra.mxu0 0
    %939 = vmatprep.subr.bf16.mxu0 0
    %940 = vmatpush1.bf16.msra.mxu0 0
    %941 = vmatprep.subr.bf16.mxu0 0
    %942 = vmatpush1.bf16.msra.mxu0 0
    %943 = vmatprep.subr.bf16.mxu0 0
    %944 = vmatpush1.bf16.msra.mxu0 0
    %945 = vmatprep.mubr.bf16.mxu0 0
    %946 = vmatmul.mubr.bf16.gmra.mrb[0].mxu0 %v507
    %v947 = vpop.f32.mrb[0].mxu0
    %v948 = vadd.f32 %v739, %v947
    %v949 = vpop.f32.mrb[0].mxu0
    %v950 = vadd.f32 %v741, %v949
    %v951 = vpop.f32.mrb[0].mxu0
    %v952 = vpop.f32.mrb[0].mxu0
    %953 = vdwg.mxu0
    %954 = vmatprep.subr.bf16.mxu0 0
    %955 = vmatpush1.bf16.msra.mxu0 %v867
    %956 = vmatprep.subr.bf16.mxu0 0
    %957 = vmatpush1.bf16.msra.mxu0 %v870
    %958 = vmatprep.subr.bf16.mxu0 0
    %959 = vmatpush1.bf16.msra.mxu0 %v873
    %960 = vmatprep.subr.bf16.mxu0 0
    %961 = vmatpush1.bf16.msra.mxu0 %v876
    %962 = vmatprep.subr.bf16.mxu0 0
    %963 = vmatpush1.bf16.msra.mxu0 %v879
    %964 = vmatprep.subr.bf16.mxu0 0
    %965 = vmatpush1.bf16.msra.mxu0 %v882
    %966 = vmatprep.subr.bf16.mxu0 0
    %967 = vmatpush1.bf16.msra.mxu0 %v885
    %968 = vmatprep.subr.bf16.mxu0 0
    %969 = vmatpush1.bf16.msra.mxu0 %v888
    %970 = vmatprep.subr.bf16.mxu0 0
    %971 = vmatpush1.bf16.msra.mxu0 0
    %972 = vmatprep.subr.bf16.mxu0 0
    %973 = vmatpush1.bf16.msra.mxu0 0
    %974 = vmatprep.subr.bf16.mxu0 0
    %975 = vmatpush1.bf16.msra.mxu0 0
    %976 = vmatprep.subr.bf16.mxu0 0
    %977 = vmatpush1.bf16.msra.mxu0 0
    %978 = vmatprep.subr.bf16.mxu0 0
    %979 = vmatpush1.bf16.msra.mxu0 0
    %980 = vmatprep.subr.bf16.mxu0 0
    %981 = vmatpush1.bf16.msra.mxu0 0
    %982 = vmatprep.subr.bf16.mxu0 0
    %983 = vmatpush1.bf16.msra.mxu0 0
    %984 = vmatprep.subr.bf16.mxu0 0
    %985 = vmatpush1.bf16.msra.mxu0 0
    %986 = vmatprep.mubr.bf16.mxu0 0
    %987 = vmatmul.mubr.bf16.gmra.mrb[0].mxu0 %v507
    %v988 = vpop.f32.mrb[0].mxu0
    %v989 = vadd.f32 %v780, %v988
    %v990 = vpop.f32.mrb[0].mxu0
    %v991 = vpop.f32.mrb[0].mxu0
    %v992 = vpop.f32.mrb[0].mxu0
    %993 = vdwg.mxu0
    %s994 = scalar_lea.vmem %s5, 384
    %v995 = vld [vmem:[%s994] sm:$0xff]
    %v996 = vld [vmem:[%s994 + $0x8] sm:$0xf]
    %v997 = vld [vmem:[%s994 + $0xc] sm:$0xff]
    %v998 = vld [vmem:[%s994 + $0x14] sm:$0xf]
    %v999 = vld [vmem:[%s994 + $0x18] sm:$0xff]
    %v1000 = vld [vmem:[%s994 + $0x20] sm:$0xf]
    %v1001 = vld [vmem:[%s994 + $0x24] sm:$0xff]
    %v1002 = vld [vmem:[%s994 + $0x2c] sm:$0xf]
    %v1003 = vld [vmem:[%s994 + $0x30] sm:$0xff]
    %v1004 = vld [vmem:[%s994 + $0x38] sm:$0xf]
    %v1005 = vld [vmem:[%s994 + $0x3c] sm:$0xff]
    %v1006 = vld [vmem:[%s994 + $0x44] sm:$0xf]
    %v1007 = vld [vmem:[%s994 + $0x48] sm:$0xff]
    %v1008 = vld [vmem:[%s994 + $0x50] sm:$0xf]
    %v1009 = vld [vmem:[%s994 + $0x54] sm:$0xff]
    %v1010 = vld [vmem:[%s994 + $0x5c] sm:$0xf]
    %v1011 = vld [vmem:[%s994 + $0x60] sm:$0xff]
    %v1012 = vld [vmem:[%s994 + $0x68] sm:$0xf]
    %v1013 = vld [vmem:[%s994 + $0x6c] sm:$0xff]
    %v1014 = vld [vmem:[%s994 + $0x74] sm:$0xf]
    %v1015 = vld [vmem:[%s994 + $0x78] sm:$0xff]
    %v1016 = vld [vmem:[%s994 + $0x80] sm:$0xf]
    %v1017 = vld [vmem:[%s994 + $0x84] sm:$0xff]
    %v1018 = vld [vmem:[%s994 + $0x8c] sm:$0xf]
    %v1019 = vld [vmem:[%s994 + $0x90] sm:$0xff]
    %v1020 = vld [vmem:[%s994 + $0x98] sm:$0xf]
    %v1021 = vld [vmem:[%s994 + $0x9c] sm:$0xff]
    %v1022 = vld [vmem:[%s994 + $0xa4] sm:$0xf]
    %v1023 = vld [vmem:[%s994 + $0xa8] sm:$0xff]
    %v1024 = vld [vmem:[%s994 + $0xb0] sm:$0xf]
    %v1025 = vld [vmem:[%s994 + $0xb4] sm:$0xff]
    %v1026 = vld [vmem:[%s994 + $0xbc] sm:$0xf]
    %v1027 = vrot.slane %v507, 2
    %v1061 = vunpack.c.l.b16 %v995
    %v1062 = vunpack.c.h.b16 %v995
    %v1063 = vunpack.c.l.b16 %v996
    %v1064 = vunpack.c.l.b16 %v997
    %v1065 = vunpack.c.h.b16 %v997
    %v1066 = vunpack.c.l.b16 %v998
    %v1067 = vunpack.c.l.b16 %v999
    %v1068 = vunpack.c.h.b16 %v999
    %v1069 = vunpack.c.l.b16 %v1000
    %v1070 = vunpack.c.l.b16 %v1001
    %v1071 = vunpack.c.h.b16 %v1001
    %v1072 = vunpack.c.l.b16 %v1002
    %v1073 = vunpack.c.l.b16 %v1003
    %v1074 = vunpack.c.h.b16 %v1003
    %v1075 = vunpack.c.l.b16 %v1004
    %v1076 = vunpack.c.l.b16 %v1005
    %v1077 = vunpack.c.h.b16 %v1005
    %v1078 = vunpack.c.l.b16 %v1006
    %v1079 = vunpack.c.l.b16 %v1007
    %v1080 = vunpack.c.h.b16 %v1007
    %v1081 = vunpack.c.l.b16 %v1008
    %v1082 = vunpack.c.l.b16 %v1009
    %v1083 = vunpack.c.h.b16 %v1009
    %v1084 = vunpack.c.l.b16 %v1010
    %v1085 = vunpack.c.l.b16 %v1011
    %v1086 = vunpack.c.h.b16 %v1011
    %v1087 = vunpack.c.l.b16 %v1012
    %v1088 = vunpack.c.l.b16 %v1013
    %v1089 = vunpack.c.h.b16 %v1013
    %v1090 = vunpack.c.l.b16 %v1014
    %v1091 = vunpack.c.l.b16 %v1015
    %v1092 = vunpack.c.h.b16 %v1015
    %v1093 = vunpack.c.l.b16 %v1016
    %v1094 = vunpack.c.l.b16 %v1017
    %v1095 = vunpack.c.h.b16 %v1017
    %v1096 = vunpack.c.l.b16 %v1018
    %v1097 = vunpack.c.l.b16 %v1019
    %v1098 = vunpack.c.h.b16 %v1019
    %v1099 = vunpack.c.l.b16 %v1020
    %v1100 = vunpack.c.l.b16 %v1021
    %v1101 = vunpack.c.h.b16 %v1021
    %v1102 = vunpack.c.l.b16 %v1022
    %v1103 = vunpack.c.l.b16 %v1023
    %v1104 = vunpack.c.h.b16 %v1023
    %v1105 = vunpack.c.l.b16 %v1024
    %v1106 = vunpack.c.l.b16 %v1025
    %v1107 = vunpack.c.h.b16 %v1025
    %v1108 = vunpack.c.l.b16 %v1026
    %v1109 = vpack.c.b16 %v1064, %v1061
    %v1110 = vpack.c.b16 %v1065, %v1062
    %v1111 = vpack.c.b16 %v1066, %v1063
    %v1112 = vpack.c.b16 %v1070, %v1067
    %v1113 = vpack.c.b16 %v1071, %v1068
    %v1114 = vpack.c.b16 %v1072, %v1069
    %v1115 = vpack.c.b16 %v1076, %v1073
    %v1116 = vpack.c.b16 %v1077, %v1074
    %v1117 = vpack.c.b16 %v1078, %v1075
    %v1118 = vpack.c.b16 %v1082, %v1079
    %v1119 = vpack.c.b16 %v1083, %v1080
    %v1120 = vpack.c.b16 %v1084, %v1081
    %v1121 = vpack.c.b16 %v1088, %v1085
    %v1122 = vpack.c.b16 %v1089, %v1086
    %v1123 = vpack.c.b16 %v1090, %v1087
    %v1124 = vpack.c.b16 %v1094, %v1091
    %v1125 = vpack.c.b16 %v1095, %v1092
    %v1126 = vpack.c.b16 %v1096, %v1093
    %v1127 = vpack.c.b16 %v1100, %v1097
    %v1128 = vpack.c.b16 %v1101, %v1098
    %v1129 = vpack.c.b16 %v1102, %v1099
    %v1130 = vpack.c.b16 %v1106, %v1103
    %v1131 = vpack.c.b16 %v1107, %v1104
    %v1132 = vpack.c.b16 %v1108, %v1105
    %1157 = vmatprep.subr.bf16.mxu0 %v1110
    %1158 = vmatpush1.bf16.msra.mxu0 %v1109
    %1159 = vmatprep.subr.bf16.mxu0 %v1113
    %1160 = vmatpush1.bf16.msra.mxu0 %v1112
    %1161 = vmatprep.subr.bf16.mxu0 %v1116
    %1162 = vmatpush1.bf16.msra.mxu0 %v1115
    %1163 = vmatprep.subr.bf16.mxu0 %v1119
    %1164 = vmatpush1.bf16.msra.mxu0 %v1118
    %1165 = vmatprep.subr.bf16.mxu0 %v1122
    %1166 = vmatpush1.bf16.msra.mxu0 %v1121
    %1167 = vmatprep.subr.bf16.mxu0 %v1125
    %1168 = vmatpush1.bf16.msra.mxu0 %v1124
    %1169 = vmatprep.subr.bf16.mxu0 %v1128
    %1170 = vmatpush1.bf16.msra.mxu0 %v1127
    %1171 = vmatprep.subr.bf16.mxu0 %v1131
    %1172 = vmatpush1.bf16.msra.mxu0 %v1130
    %1173 = vmatprep.subr.bf16.mxu0 0
    %1174 = vmatpush1.bf16.msra.mxu0 0
    %1175 = vmatprep.subr.bf16.mxu0 0
    %1176 = vmatpush1.bf16.msra.mxu0 0
    %1177 = vmatprep.subr.bf16.mxu0 0
    %1178 = vmatpush1.bf16.msra.mxu0 0
    %1179 = vmatprep.subr.bf16.mxu0 0
    %1180 = vmatpush1.bf16.msra.mxu0 0
    %1181 = vmatprep.subr.bf16.mxu0 0
    %1182 = vmatpush1.bf16.msra.mxu0 0
    %1183 = vmatprep.subr.bf16.mxu0 0
    %1184 = vmatpush1.bf16.msra.mxu0 0
    %1185 = vmatprep.subr.bf16.mxu0 0
    %1186 = vmatpush1.bf16.msra.mxu0 0
    %1187 = vmatprep.subr.bf16.mxu0 0
    %1188 = vmatpush1.bf16.msra.mxu0 0
    %1189 = vmatprep.mubr.bf16.mxu0 0
    %1190 = vmatmul.mubr.bf16.gmra.mrb[0].mxu0 %v1027
    %v1191 = vpop.f32.mrb[0].mxu0
    %v1192 = vadd.f32 0.0, %v1191
    %v1193 = vpop.f32.mrb[0].mxu0
    %v1194 = vadd.f32 0.0, %v1193
    %v1195 = vpop.f32.mrb[0].mxu0
    %v1196 = vpop.f32.mrb[0].mxu0
    %1197 = vdwg.mxu0
    %1198 = vmatprep.subr.bf16.mxu0 0
    %1199 = vmatpush1.bf16.msra.mxu0 %v1111
    %1200 = vmatprep.subr.bf16.mxu0 0
    %1201 = vmatpush1.bf16.msra.mxu0 %v1114
    %1202 = vmatprep.subr.bf16.mxu0 0
    %1203 = vmatpush1.bf16.msra.mxu0 %v1117
    %1204 = vmatprep.subr.bf16.mxu0 0
    %1205 = vmatpush1.bf16.msra.mxu0 %v1120
    %1206 = vmatprep.subr.bf16.mxu0 0
    %1207 = vmatpush1.bf16.msra.mxu0 %v1123
    %1208 = vmatprep.subr.bf16.mxu0 0
    %1209 = vmatpush1.bf16.msra.mxu0 %v1126
    %1210 = vmatprep.subr.bf16.mxu0 0
    %1211 = vmatpush1.bf16.msra.mxu0 %v1129
    %1212 = vmatprep.subr.bf16.mxu0 0
    %1213 = vmatpush1.bf16.msra.mxu0 %v1132
    %1214 = vmatprep.subr.bf16.mxu0 0
    %1215 = vmatpush1.bf16.msra.mxu0 0
    %1216 = vmatprep.subr.bf16.mxu0 0
    %1217 = vmatpush1.bf16.msra.mxu0 0
    %1218 = vmatprep.subr.bf16.mxu0 0
    %1219 = vmatpush1.bf16.msra.mxu0 0
    %1220 = vmatprep.subr.bf16.mxu0 0
    %1221 = vmatpush1.bf16.msra.mxu0 0
    %1222 = vmatprep.subr.bf16.mxu0 0
    %1223 = vmatpush1.bf16.msra.mxu0 0
    %1224 = vmatprep.subr.bf16.mxu0 0
    %1225 = vmatpush1.bf16.msra.mxu0 0
    %1226 = vmatprep.subr.bf16.mxu0 0
    %1227 = vmatpush1.bf16.msra.mxu0 0
    %1228 = vmatprep.subr.bf16.mxu0 0
    %1229 = vmatpush1.bf16.msra.mxu0 0
    %1230 = vmatprep.mubr.bf16.mxu0 0
    %1231 = vmatmul.mubr.bf16.gmra.mrb[0].mxu0 %v1027
    %v1232 = vpop.f32.mrb[0].mxu0
    %v1233 = vadd.f32 0.0, %v1232
    %v1234 = vpop.f32.mrb[0].mxu0
    %v1235 = vpop.f32.mrb[0].mxu0
    %v1236 = vpop.f32.mrb[0].mxu0
    %1237 = vdwg.mxu0
    %v1238 = vadd.f32 %v948, %v1192
    %v1239 = vadd.f32 %v950, %v1194
    %v1240 = vadd.f32 %v989, %v1233
    %s1241 = scalar_lea.vmem %s5, 576
    %v1242 = vld [vmem:[%s1241] sm:$0xff]
    %v1243 = vld [vmem:[%s1241 + $0x8] sm:$0xf]
    %v1244 = vld [vmem:[%s1241 + $0xc] sm:$0xff]
    %v1245 = vld [vmem:[%s1241 + $0x14] sm:$0xf]
    %v1246 = vld [vmem:[%s1241 + $0x18] sm:$0xff]
    %v1247 = vld [vmem:[%s1241 + $0x20] sm:$0xf]
    %v1248 = vld [vmem:[%s1241 + $0x24] sm:$0xff]
    %v1249 = vld [vmem:[%s1241 + $0x2c] sm:$0xf]
    %v1250 = vld [vmem:[%s1241 + $0x30] sm:$0xff]
    %v1251 = vld [vmem:[%s1241 + $0x38] sm:$0xf]
    %v1252 = vld [vmem:[%s1241 + $0x3c] sm:$0xff]
    %v1253 = vld [vmem:[%s1241 + $0x44] sm:$0xf]
    %v1254 = vld [vmem:[%s1241 + $0x48] sm:$0xff]
    %v1255 = vld [vmem:[%s1241 + $0x50] sm:$0xf]
    %v1256 = vld [vmem:[%s1241 + $0x54] sm:$0xff]
    %v1257 = vld [vmem:[%s1241 + $0x5c] sm:$0xf]
    %v1258 = vld [vmem:[%s1241 + $0x60] sm:$0xff]
    %v1259 = vld [vmem:[%s1241 + $0x68] sm:$0xf]
    %v1260 = vld [vmem:[%s1241 + $0x6c] sm:$0xff]
    %v1261 = vld [vmem:[%s1241 + $0x74] sm:$0xf]
    %v1262 = vld [vmem:[%s1241 + $0x78] sm:$0xff]
    %v1263 = vld [vmem:[%s1241 + $0x80] sm:$0xf]
    %v1264 = vld [vmem:[%s1241 + $0x84] sm:$0xff]
    %v1265 = vld [vmem:[%s1241 + $0x8c] sm:$0xf]
    %v1266 = vld [vmem:[%s1241 + $0x90] sm:$0xff]
    %v1267 = vld [vmem:[%s1241 + $0x98] sm:$0xf]
    %v1268 = vld [vmem:[%s1241 + $0x9c] sm:$0xff]
    %v1269 = vld [vmem:[%s1241 + $0xa4] sm:$0xf]
    %v1270 = vld [vmem:[%s1241 + $0xa8] sm:$0xff]
    %v1271 = vld [vmem:[%s1241 + $0xb0] sm:$0xf]
    %v1272 = vld [vmem:[%s1241 + $0xb4] sm:$0xff]
    %v1273 = vld [vmem:[%s1241 + $0xbc] sm:$0xf]
    %v1274 = vrot.slane %v507, 3
    %v1308 = vunpack.c.l.b16 %v1242
    %v1309 = vunpack.c.h.b16 %v1242
    %v1310 = vunpack.c.l.b16 %v1243
    %v1311 = vunpack.c.l.b16 %v1244
    %v1312 = vunpack.c.h.b16 %v1244
    %v1313 = vunpack.c.l.b16 %v1245
    %v1314 = vunpack.c.l.b16 %v1246
    %v1315 = vunpack.c.h.b16 %v1246
    %v1316 = vunpack.c.l.b16 %v1247
    %v1317 = vunpack.c.l.b16 %v1248
    %v1318 = vunpack.c.h.b16 %v1248
    %v1319 = vunpack.c.l.b16 %v1249
    %v1320 = vunpack.c.l.b16 %v1250
    %v1321 = vunpack.c.h.b16 %v1250
    %v1322 = vunpack.c.l.b16 %v1251
    %v1323 = vunpack.c.l.b16 %v1252
    %v1324 = vunpack.c.h.b16 %v1252
    %v1325 = vunpack.c.l.b16 %v1253
    %v1326 = vunpack.c.l.b16 %v1254
    %v1327 = vunpack.c.h.b16 %v1254
    %v1328 = vunpack.c.l.b16 %v1255
    %v1329 = vunpack.c.l.b16 %v1256
    %v1330 = vunpack.c.h.b16 %v1256
    %v1331 = vunpack.c.l.b16 %v1257
    %v1332 = vunpack.c.l.b16 %v1258
    %v1333 = vunpack.c.h.b16 %v1258
    %v1334 = vunpack.c.l.b16 %v1259
    %v1335 = vunpack.c.l.b16 %v1260
    %v1336 = vunpack.c.h.b16 %v1260
    %v1337 = vunpack.c.l.b16 %v1261
    %v1338 = vunpack.c.l.b16 %v1262
    %v1339 = vunpack.c.h.b16 %v1262
    %v1340 = vunpack.c.l.b16 %v1263
    %v1341 = vunpack.c.l.b16 %v1264
    %v1342 = vunpack.c.h.b16 %v1264
    %v1343 = vunpack.c.l.b16 %v1265
    %v1344 = vunpack.c.l.b16 %v1266
    %v1345 = vunpack.c.h.b16 %v1266
    %v1346 = vunpack.c.l.b16 %v1267
    %v1347 = vunpack.c.l.b16 %v1268
    %v1348 = vunpack.c.h.b16 %v1268
    %v1349 = vunpack.c.l.b16 %v1269
    %v1350 = vunpack.c.l.b16 %v1270
    %v1351 = vunpack.c.h.b16 %v1270
    %v1352 = vunpack.c.l.b16 %v1271
    %v1353 = vunpack.c.l.b16 %v1272
    %v1354 = vunpack.c.h.b16 %v1272
    %v1355 = vunpack.c.l.b16 %v1273
    %v1356 = vpack.c.b16 %v1311, %v1308
    %v1357 = vpack.c.b16 %v1312, %v1309
    %v1358 = vpack.c.b16 %v1313, %v1310
    %v1359 = vpack.c.b16 %v1317, %v1314
    %v1360 = vpack.c.b16 %v1318, %v1315
    %v1361 = vpack.c.b16 %v1319, %v1316
    %v1362 = vpack.c.b16 %v1323, %v1320
    %v1363 = vpack.c.b16 %v1324, %v1321
    %v1364 = vpack.c.b16 %v1325, %v1322
    %v1365 = vpack.c.b16 %v1329, %v1326
    %v1366 = vpack.c.b16 %v1330, %v1327
    %v1367 = vpack.c.b16 %v1331, %v1328
    %v1368 = vpack.c.b16 %v1335, %v1332
    %v1369 = vpack.c.b16 %v1336, %v1333
    %v1370 = vpack.c.b16 %v1337, %v1334
    %v1371 = vpack.c.b16 %v1341, %v1338
    %v1372 = vpack.c.b16 %v1342, %v1339
    %v1373 = vpack.c.b16 %v1343, %v1340
    %v1374 = vpack.c.b16 %v1347, %v1344
    %v1375 = vpack.c.b16 %v1348, %v1345
    %v1376 = vpack.c.b16 %v1349, %v1346
    %v1377 = vpack.c.b16 %v1353, %v1350
    %v1378 = vpack.c.b16 %v1354, %v1351
    %v1379 = vpack.c.b16 %v1355, %v1352
    %1404 = vmatprep.subr.bf16.mxu0 %v1357
    %1405 = vmatpush1.bf16.msra.mxu0 %v1356
    %1406 = vmatprep.subr.bf16.mxu0 %v1360
    %1407 = vmatpush1.bf16.msra.mxu0 %v1359
    %1408 = vmatprep.subr.bf16.mxu0 %v1363
    %1409 = vmatpush1.bf16.msra.mxu0 %v1362
    %1410 = vmatprep.subr.bf16.mxu0 %v1366
    %1411 = vmatpush1.bf16.msra.mxu0 %v1365
    %1412 = vmatprep.subr.bf16.mxu0 %v1369
    %1413 = vmatpush1.bf16.msra.mxu0 %v1368
    %1414 = vmatprep.subr.bf16.mxu0 %v1372
    %1415 = vmatpush1.bf16.msra.mxu0 %v1371
    %1416 = vmatprep.subr.bf16.mxu0 %v1375
    %1417 = vmatpush1.bf16.msra.mxu0 %v1374
    %1418 = vmatprep.subr.bf16.mxu0 %v1378
    %1419 = vmatpush1.bf16.msra.mxu0 %v1377
    %1420 = vmatprep.subr.bf16.mxu0 0
    %1421 = vmatpush1.bf16.msra.mxu0 0
    %1422 = vmatprep.subr.bf16.mxu0 0
    %1423 = vmatpush1.bf16.msra.mxu0 0
    %1424 = vmatprep.subr.bf16.mxu0 0
    %1425 = vmatpush1.bf16.msra.mxu0 0
    %1426 = vmatprep.subr.bf16.mxu0 0
    %1427 = vmatpush1.bf16.msra.mxu0 0
    %1428 = vmatprep.subr.bf16.mxu0 0
    %1429 = vmatpush1.bf16.msra.mxu0 0
    %1430 = vmatprep.subr.bf16.mxu0 0
    %1431 = vmatpush1.bf16.msra.mxu0 0
    %1432 = vmatprep.subr.bf16.mxu0 0
    %1433 = vmatpush1.bf16.msra.mxu0 0
    %1434 = vmatprep.subr.bf16.mxu0 0
    %1435 = vmatpush1.bf16.msra.mxu0 0
    %1436 = vmatprep.mubr.bf16.mxu0 0
    %1437 = vmatmul.mubr.bf16.gmra.mrb[0].mxu0 %v1274
    %v1438 = vpop.f32.mrb[0].mxu0
    %v1439 = vadd.f32 0.0, %v1438
    %v1440 = vpop.f32.mrb[0].mxu0
    %v1441 = vadd.f32 0.0, %v1440
    %v1442 = vpop.f32.mrb[0].mxu0
    %v1443 = vpop.f32.mrb[0].mxu0
    %1444 = vdwg.mxu0
    %1445 = vmatprep.subr.bf16.mxu0 0
    %1446 = vmatpush1.bf16.msra.mxu0 %v1358
    %1447 = vmatprep.subr.bf16.mxu0 0
    %1448 = vmatpush1.bf16.msra.mxu0 %v1361
    %1449 = vmatprep.subr.bf16.mxu0 0
    %1450 = vmatpush1.bf16.msra.mxu0 %v1364
    %1451 = vmatprep.subr.bf16.mxu0 0
    %1452 = vmatpush1.bf16.msra.mxu0 %v1367
    %1453 = vmatprep.subr.bf16.mxu0 0
    %1454 = vmatpush1.bf16.msra.mxu0 %v1370
    %1455 = vmatprep.subr.bf16.mxu0 0
    %1456 = vmatpush1.bf16.msra.mxu0 %v1373
    %1457 = vmatprep.subr.bf16.mxu0 0
    %1458 = vmatpush1.bf16.msra.mxu0 %v1376
    %1459 = vmatprep.subr.bf16.mxu0 0
    %1460 = vmatpush1.bf16.msra.mxu0 %v1379
    %1461 = vmatprep.subr.bf16.mxu0 0
    %1462 = vmatpush1.bf16.msra.mxu0 0
    %1463 = vmatprep.subr.bf16.mxu0 0
    %1464 = vmatpush1.bf16.msra.mxu0 0
    %1465 = vmatprep.subr.bf16.mxu0 0
    %1466 = vmatpush1.bf16.msra.mxu0 0
    %1467 = vmatprep.subr.bf16.mxu0 0
    %1468 = vmatpush1.bf16.msra.mxu0 0
    %1469 = vmatprep.subr.bf16.mxu0 0
    %1470 = vmatpush1.bf16.msra.mxu0 0
    %1471 = vmatprep.subr.bf16.mxu0 0
    %1472 = vmatpush1.bf16.msra.mxu0 0
    %1473 = vmatprep.subr.bf16.mxu0 0
    %1474 = vmatpush1.bf16.msra.mxu0 0
    %1475 = vmatprep.subr.bf16.mxu0 0
    %1476 = vmatpush1.bf16.msra.mxu0 0
    %1477 = vmatprep.mubr.bf16.mxu0 0
    %1478 = vmatmul.mubr.bf16.gmra.mrb[0].mxu0 %v1274
    %v1479 = vpop.f32.mrb[0].mxu0
    %v1480 = vadd.f32 0.0, %v1479
    %v1481 = vpop.f32.mrb[0].mxu0
    %v1482 = vpop.f32.mrb[0].mxu0
    %v1483 = vpop.f32.mrb[0].mxu0
    %1484 = vdwg.mxu0
    %v1485 = vadd.f32 %v1238, %v1439
    %v1486 = vadd.f32 %v1239, %v1441
    %v1487 = vadd.f32 %v1240, %v1480
    %v1488 = vld [vmem:[%s6] sm:$0x7]
    %v1490 = vlaneseq
    %v1491 = vshrl.u32 %v1490, 7
    %v1492 = vsub.s32 0, %v1491
    %v1493 = vrot.slane %v1488, %v1492
    %v1494 = vlaneseq
    %v1495 = vshrl.u32 %v1494, 7
    %v1496 = vsub.s32 1, %v1495
    %v1497 = vrot.slane %v1488, %v1496
    %v1498 = vlaneseq
    %v1499 = vshrl.u32 %v1498, 7
    %v1500 = vsub.s32 2, %v1499
    %v1501 = vrot.slane %v1488, %v1500
    %v1505 = vadd.f32 %v1485, %v1493
    %v1506 = vadd.f32 %v1486, %v1497
    %v1507 = vadd.f32 %v1487, %v1501
    %v1511 = vcombine.low %v1505, %v1506
    %v1513 = vunpack.c.l.s4 1983009808
    %v1514 = vunpack.c.0.s8 %v1513
    %v1515 = vlaneseq
    %v1516 = vshrl.u32 %v1515, 7
    %v1517 = vsub.s32 %v1514, %v1516
    %v1518 = vrot.slane %v1511, %v1517
    %v1520 = vunpack.c.l.s4 1983009808
    %v1521 = vunpack.c.0.s8 %v1520
    %v1522 = vlaneseq
    %v1523 = vshrl.u32 %v1522, 7
    %v1524 = vsub.s32 %v1521, %v1523
    %v1525 = vrot.slane %v1507, %v1524
    %v1526 = vcombine.low %v1518, %v1525
    %1528 = vst [vmem:[#allocation2] sm:$0x3f] %v1526
    // Predicated region
    $region30: #{convnet_cifar10_forward.7} parent=1 // pred_check
      _
    $region31: #{convnet_cifar10_forward.7} parent=1 // pred_check_branch
      %1530 = sbr.rel (0) target = $region33
    $region32: #{convnet_cifar10_forward.7} parent=1 // pred_region
      %s1532 = ssub.s32 96, 96
      %1533 = vsyncadd [#allocation3], %s1532
      %s1535 = sshll.u32 [#allocation2], 4
      %s1536 = int_to_ptr.vmem [resolvable:$true] %s1535
      %1538 = dma.vmem_to_hbm [thread:$0]  %s1536, 96, %s7, [#allocation3]
    $region33: #{convnet_cifar10_forward.7} parent=1 // pred_fallthru
      _
    // Predicated region
    $region34: #{convnet_cifar10_forward.7} parent=1 // pred_check
      _
    $region35: #{convnet_cifar10_forward.7} parent=1 // pred_check_branch
      %1540 = sbr.rel (0) target = $region37
    $region36: #{convnet_cifar10_forward.7} parent=1 // pred_region
      %1541 = dma.done [#allocation3], 96
    $region37: #{convnet_cifar10_forward.7} parent=1 // pred_fallthru
      _
    %1542 = vsyncpa [#allocation3], 1

</llo_original>
